<compile_context>
chip_gen: v7x
topology: tpu7x:2x2x1
jax: 0.10.0
libtpu: 0.0.40
codegen_flags: <defaults>
</compile_context>

<pallas_src>
import functools

import jax
import jax.numpy as jnp
from jax.experimental import pallas as pl
from jax.experimental.pallas import tpu as pltpu


def _round_up(x, m):
    return (x + m - 1) // m * m


def _pick_tile_m(M, block_m):
    """Row-tile size: multiple of 16 (bf16 packs 2 rows/sublane); >= 2 grid
    steps whenever M allows so the 'parallel' axis can shard across v7x's two
    TensorCores; capped at block_m to bound VMEM."""
    if M >= 2 * block_m:
        return block_m
    return min(_round_up(max(pl.cdiv(M, 2), 1), 16), block_m)


# ---------------------------------------------------------------------------
# Pallas kernel: fused  y = relu(x @ w + b); bf16 operands, f32 acc, bf16 out
# ---------------------------------------------------------------------------
def _linear_kernel(x_ref, w_ref, b_ref, o_ref, *, relu):
    acc = jnp.dot(x_ref[...], w_ref[...], preferred_element_type=jnp.float32)
    acc = acc + b_ref[...]                  # (1, N) broadcasts over rows
    if relu:
        acc = jnp.maximum(acc, 0.0)
    o_ref[...] = acc.astype(o_ref.dtype)


def pallas_linear(x, w, b2, *, relu, block_m=1024, out_dtype=jnp.bfloat16):
    """x: (M, K) bf16, w: (K, N) bf16, b2: (1, N) f32 -> (M, N) out_dtype.

    Tiles the M axis with a ragged cdiv grid (padded reads on the last block,
    OOB writes dropped); K and N ride as full blocks so the weight plus one
    row tile easily fit VMEM (double-buffered) on v5e/v6e/v7x."""
    M, K = x.shape
    K2, N = w.shape
    assert K == K2, (K, K2)
    tm = _pick_tile_m(M, block_m)
    grid_m = pl.cdiv(M, tm)
    cost = pl.CostEstimate(
        flops=2 * M * K * N,
        transcendentals=0,
        bytes_accessed=(M * K * x.dtype.itemsize + K * N * w.dtype.itemsize
                        + N * 4 + M * N * jnp.dtype(out_dtype).itemsize))
    return pl.pallas_call(
        functools.partial(_linear_kernel, relu=relu),
        out_shape=jax.ShapeDtypeStruct((M, N), out_dtype),
        grid=(grid_m,),
        in_specs=[
            pl.BlockSpec((tm, K), lambda i: (i, 0)),
            pl.BlockSpec((K, N), lambda i: (0, 0)),
            pl.BlockSpec((1, N), lambda i: (0, 0)),
        ],
        out_specs=pl.BlockSpec((tm, N), lambda i: (i, 0)),
        compiler_params=pltpu.CompilerParams(
            dimension_semantics=("parallel",)),
        cost_estimate=cost,
    )(x, w, b2)


# ---------------------------------------------------------------------------
# Fused head + action MLP in ONE pallas_call:
#   q2 = relu(a3(relu(a2(relu(a1(act))))))
#   h1 = relu(l1(q1_flat))
#   q  = l3(relu(l2([h1, q2])))          (concat eliminated via split l2)
# ---------------------------------------------------------------------------
def _fused_head_kernel(q1_ref, act_ref,
                       wa1_ref, ba1_ref, wa2_ref, ba2_ref, wa3_ref, ba3_ref,
                       wl1_ref, bl1_ref, w2a_ref, w2b_ref, bl2_ref,
                       wl3_ref, bl3_ref, o_ref):
    f32, bf16 = jnp.float32, jnp.bfloat16
    # action branch
    q2 = jnp.dot(act_ref[...], wa1_ref[...], preferred_element_type=f32)
    q2 = jnp.maximum(q2 + ba1_ref[...], 0.0).astype(bf16)
    q2 = jnp.dot(q2, wa2_ref[...], preferred_element_type=f32)
    q2 = jnp.maximum(q2 + ba2_ref[...], 0.0).astype(bf16)
    q2 = jnp.dot(q2, wa3_ref[...], preferred_element_type=f32)
    q2 = jnp.maximum(q2 + ba3_ref[...], 0.0).astype(bf16)
    # obs branch tail
    h1 = jnp.dot(q1_ref[...], wl1_ref[...], preferred_element_type=f32)
    h1 = jnp.maximum(h1 + bl1_ref[...], 0.0).astype(bf16)
    # l2 on the (never materialized) concat [h1, q2], then l3
    h = (jnp.dot(h1, w2a_ref[...], preferred_element_type=f32)
         + jnp.dot(q2, w2b_ref[...], preferred_element_type=f32))
    h = jnp.maximum(h + bl2_ref[...], 0.0).astype(bf16)
    out = jnp.dot(h, wl3_ref[...], preferred_element_type=f32) + bl3_ref[...]
    o_ref[...] = out.astype(o_ref.dtype)


def fused_head(q1f_bf16, act_bf16, p, *, block_m=512):
    wa1, ba1 = p["a1"]
    wa2, ba2 = p["a2"]
    wa3, ba3 = p["a3"]
    wl1, bl1 = p["l1"]
    w2a, w2b, bl2 = p["l2a"], p["l2b"], p["bl2"]
    wl3, bl3 = p["l3"]
    M, K1 = q1f_bf16.shape
    Ka = act_bf16.shape[1]
    H1, H2 = wl1.shape[1], w2a.shape[1]
    act_dim = wl3.shape[1]
    tm = _pick_tile_m(M, block_m)
    grid_m = pl.cdiv(M, tm)
    full = lambda a: pl.BlockSpec(a.shape, lambda i: (0, 0))
    weight_elems = (Ka * 64 + 64 * 64 + 64 * H1 + K1 * H1
                    + (H1 + H1) * H2 + H2 * act_dim)
    cost = pl.CostEstimate(
        flops=2 * M * (Ka * 64 + 64 * 64 + 64 * H1 + K1 * H1 + H1 * H2
                       + H1 * H2 + H2 * act_dim),
        transcendentals=0,
        bytes_accessed=(M * (K1 + Ka) * 2 + weight_elems * 2
                        + M * act_dim * 4))
    return pl.pallas_call(
        _fused_head_kernel,
        out_shape=jax.ShapeDtypeStruct((M, act_dim), jnp.float32),
        grid=(grid_m,),
        in_specs=[pl.BlockSpec((tm, K1), lambda i: (i, 0)),
                  pl.BlockSpec((tm, Ka), lambda i: (i, 0)),
                  full(wa1), full(ba1), full(wa2), full(ba2),
                  full(wa3), full(ba3),
                  full(wl1), full(bl1), full(w2a), full(w2b), full(bl2),
                  full(wl3), full(bl3)],
        out_specs=pl.BlockSpec((tm, act_dim), lambda i: (i, 0)),
        compiler_params=pltpu.CompilerParams(
            dimension_semantics=("parallel",)),
        cost_estimate=cost,
    )(q1f_bf16, act_bf16, wa1, ba1, wa2, ba2, wa3, ba3,
      wl1, bl1, w2a, w2b, bl2, wl3, bl3)


# ---------------------------------------------------------------------------
# Conv2d (valid padding) via NHWC im2col (bf16) + Pallas matmul
# ---------------------------------------------------------------------------
def _im2col_nhwc(x, k, s):
    """x: (N, H, W, C) bf16 -> (N*OH*OW, k*k*C) bf16; feature order (ki,kj,c).

    Plain-JAX glue (strided slices + concat) in bf16.
    # TODO(synk): move patch extraction in-kernel (per-sample VMEM-resident
    # image + strided pl.ds loads) so the k^2-expanded patch tensor never
    # touches HBM; it remains the dominant HBM cost of the conv path.
    """
    N, H, W, C = x.shape
    OH = (H - k) // s + 1
    OW = (W - k) // s + 1
    cols = []
    for i in range(k):
        for j in range(k):
            cols.append(x[:, i:i + s * OH:s, j:j + s * OW:s, :])  # (N,OH,OW,C)
    p = jnp.concatenate(cols, axis=-1)                 # (N, OH, OW, k*k*C)
    return p.reshape(N * OH * OW, k * k * C), OH, OW


def conv2d_relu_nhwc(x_nhwc_bf16, conv_p, *, kernel, stride, block_m=1024):
    """conv_p = (wm, b2), wm: (k*k*C, out_ch) bf16 with rows ordered (ki,kj,c).
    Returns NHWC bf16 activations with ReLU applied."""
    wm, b2 = conv_p
    patches, OH, OW = _im2col_nhwc(x_nhwc_bf16, kernel, stride)
    y = pallas_linear(patches, wm, b2, relu=True, block_m=block_m,
                      out_dtype=jnp.bfloat16)
    N = x_nhwc_bf16.shape[0]
    return y.reshape(N, OH, OW, wm.shape[1])


# ---------------------------------------------------------------------------
# Parameter init (PyTorch layouts) + one-time conversion to kernel layouts
# ---------------------------------------------------------------------------
def init_params(key, obs_channels, act_dim):
    """PyTorch-layout params: conv (O,I,k,k); linear stored as (in,out)=W.T."""
    keys = jax.random.split(key, 18)

    def lin(kw, kb, fan_in, fan_out):
        lim = 1.0 / float(fan_in) ** 0.5
        w = jax.random.uniform(kw, (fan_in, fan_out), jnp.float32, -lim, lim)
        b = jax.random.uniform(kb, (fan_out,), jnp.float32, -lim, lim)
        return w, b

    def conv(kw, kb, out_ch, in_ch, k):
        lim = 1.0 / float(in_ch * k * k) ** 0.5
        w = jax.random.uniform(kw, (out_ch, in_ch, k, k), jnp.float32, -lim, lim)
        b = jax.random.uniform(kb, (out_ch,), jnp.float32, -lim, lim)
        return w, b

    return {
        "a1": lin(keys[0], keys[1], act_dim, 64),
        "a2": lin(keys[2], keys[3], 64, 64),
        "a3": lin(keys[4], keys[5], 64, 512),
        "c1": conv(keys[6], keys[7], 32, obs_channels, 8),
        "c2": conv(keys[8], keys[9], 64, 32, 4),
        "c3": conv(keys[10], keys[11], 64, 64, 3),
        "l1": lin(keys[12], keys[13], 1024, 512),
        "l2": lin(keys[14], keys[15], 1024, 64),
        "l3": lin(keys[16], keys[17], 64, act_dim),
    }


def prepare_params(params):
    """One-time conversion to kernel-friendly layouts (bf16 weights, f32 bias):
    - conv weights (O,I,k,k) -> (k*k*I, O) with rows ordered (ki, kj, c)
    - l1 weight rows permuted from PyTorch's NCHW flatten (c,h,w) to the NHWC
      flatten (h,w,c) produced by the conv stack
    - l2 weight split into its q1 (first 512 rows) / q2 (last 512 rows) halves
    """
    def conv_prep(w, b):
        out_ch, in_ch, k, _ = w.shape
        wm = w.transpose(2, 3, 1, 0).reshape(k * k * in_ch, out_ch)
        return wm.astype(jnp.bfloat16), b.reshape(1, out_ch)

    def lin_prep(w, b):
        return w.astype(jnp.bfloat16), b.reshape(1, -1)

    wl1, bl1 = params["l1"]
    # 1024 = 64 channels * 4 * 4 spatial after the conv stack (fixed by module)
    wl1 = wl1.reshape(64, 4, 4, wl1.shape[1]).transpose(1, 2, 0, 3)
    wl1 = wl1.reshape(1024, -1)
    wl2, bl2 = params["l2"]
    return {
        "c1": conv_prep(*params["c1"]),
        "c2": conv_prep(*params["c2"]),
        "c3": conv_prep(*params["c3"]),
        "a1": lin_prep(*params["a1"]),
        "a2": lin_prep(*params["a2"]),
        "a3": lin_prep(*params["a3"]),
        "l1": lin_prep(wl1, bl1),
        "l2a": wl2[:512].astype(jnp.bfloat16),
        "l2b": wl2[512:].astype(jnp.bfloat16),
        "bl2": bl2.reshape(1, -1),
        "l3": lin_prep(*params["l3"]),
    }


# ---------------------------------------------------------------------------
# Forward pass (matches CNNQFunction.forward); obs is NCHW, act is (N, act_dim)
# ---------------------------------------------------------------------------
def cnn_q_forward(prepared, obs, act):
    p = prepared
    assert obs.shape[-1] == 64 and obs.shape[-2] == 64, (
        "CNNQFunction requires 64x64 spatial inputs: l1 expects "
        "64ch * 4 * 4 = 1024 features after the conv stack")
    # One NCHW->NHWC transpose + f32->bf16 cast; everything downstream is bf16.
    x = obs.transpose(0, 2, 3, 1).astype(jnp.bfloat16)
    x = conv2d_relu_nhwc(x, p["c1"], kernel=8, stride=4)   # (N,15,15,32) bf16
    x = conv2d_relu_nhwc(x, p["c2"], kernel=4, stride=2)   # (N, 6, 6,64) bf16
    x = conv2d_relu_nhwc(x, p["c3"], kernel=3, stride=1)   # (N, 4, 4,64) bf16
    N = obs.shape[0]
    q1f = x.reshape(N, -1)                                 # (N,1024) bf16 (h,w,c)

    q = fused_head(q1f, act.astype(jnp.bfloat16), p)       # (N, act_dim) f32

    # torch.squeeze(q, -1): only squeezes when last dim is 1
    if q.shape[-1] == 1:
        q = jnp.squeeze(q, -1)
    return q


# ---------------------------------------------------------------------------
# Plain-JAX reference (same bf16 operands / f32 accumulation) for validation
# ---------------------------------------------------------------------------
def cnn_q_reference(params, obs, act):
    def lin(x, wb, relu):
        w, b = wb
        y = jnp.dot(x.astype(jnp.bfloat16), w.astype(jnp.bfloat16),
                    preferred_element_type=jnp.float32) + b
        return jnp.maximum(y, 0.0) if relu else y

    def conv(x, wb, stride):
        w, b = wb
        y = jax.lax.conv_general_dilated(
            x.astype(jnp.bfloat16), w.astype(jnp.bfloat16),
            window_strides=(stride, stride), padding="VALID",
            dimension_numbers=("NCHW", "OIHW", "NCHW"),
            preferred_element_type=jnp.float32)
        return jnp.maximum(y + b.reshape(1, -1, 1, 1), 0.0)

    q1 = conv(obs, params["c1"], 4)
    q1 = conv(q1, params["c2"], 2)
    q1 = conv(q1, params["c3"], 1)
    q1 = lin(q1.reshape(q1.shape[0], -1), params["l1"], True)
    q2 = lin(act, params["a1"], True)
    q2 = lin(q2, params["a2"], True)
    q2 = lin(q2, params["a3"], True)
    q = lin(jnp.concatenate([q1, q2], axis=1), params["l2"], True)
    q = lin(q, params["l3"], False)
    return jnp.squeeze(q, -1) if q.shape[-1] == 1 else q


if __name__ == "__main__":
    key = jax.random.PRNGKey(0)
    k_obs, k_act, k_param = jax.random.split(key, 3)

    # spatial must be 64 so the conv stack yields 64*4*4 = 1024 features (l1).
    batch, channels, spatial, act_dim = 2, 4, 64, 4
    obs = jax.random.normal(k_obs, (batch, channels, spatial, spatial),
                            jnp.float32)
    act = jax.random.normal(k_act, (batch, act_dim), jnp.float32)

    params = init_params(k_param, channels, act_dim)
    prepared = prepare_params(params)

    fwd = jax.jit(cnn_q_forward)
    q = fwd(prepared, obs, act)
    jax.block_until_ready(q)
    assert q.shape == (batch, act_dim), q.shape

    q_ref = cnn_q_reference(params, obs, act)
    assert jnp.allclose(q, q_ref, rtol=2e-2, atol=2e-2), (
        float(jnp.max(jnp.abs(q - q_ref))))
    print("KERNEL_OK")
</pallas_src>

<mosaic_0001>
module attributes {stable_mosaic.version = 11 : i64} {
  func.func @_linear_kernel(%arg0: i32, %arg1: memref<240x256xbf16, #tpu.memory_space<vmem>>, %arg2: memref<256x32xbf16, #tpu.memory_space<vmem>>, %arg3: memref<1x32xf32, #tpu.memory_space<vmem>>, %arg4: memref<240x32xbf16, #tpu.memory_space<vmem>>) attributes {dimension_semantics = [#tpu.dimension_semantics<parallel>], iteration_bounds = array<i64: 2>, scalar_prefetch = 0 : i64, scratch_operands = 0 : i64, tpu.core_type = #tpu.core_type<tc>, window_params = [{transform_indices = @transform_0, window_bounds = array<i64: 240, 256>}, {pipeline_mode = #tpu.pipeline_mode<synchronous>, transform_indices = @transform_1, window_bounds = array<i64: 256, 32>}, {pipeline_mode = #tpu.pipeline_mode<synchronous>, transform_indices = @transform_2, window_bounds = array<i64: 1, 32>}, {transform_indices = @transform_3, window_bounds = array<i64: 240, 32>}]} {
    %c0 = arith.constant 0 : index
    %c0_0 = arith.constant 0 : index
    %0 = vector.load %arg1[%c0, %c0_0] : memref<240x256xbf16, #tpu.memory_space<vmem>>, vector<240x256xbf16>
    %c0_1 = arith.constant 0 : index
    %c0_2 = arith.constant 0 : index
    %1 = vector.load %arg2[%c0_1, %c0_2] : memref<256x32xbf16, #tpu.memory_space<vmem>>, vector<256x32xbf16>
    %cst = arith.constant dense<0.000000e+00> : vector<240x32xf32>
    %2 = tpu.matmul %0, %1, %cst {dimension_numbers = #tpu.dot_dimension_numbers<[1], [0], [0], [1], [0, 0, 1, 1], [], []>} : vector<240x256xbf16>, vector<256x32xbf16>, vector<240x32xf32> -> vector<240x32xf32>
    %c0_3 = arith.constant 0 : index
    %c0_4 = arith.constant 0 : index
    %3 = vector.load %arg3[%c0_3, %c0_4] : memref<1x32xf32, #tpu.memory_space<vmem>>, vector<1x32xf32>
    %4 = vector.broadcast %3 : vector<1x32xf32> to vector<240x32xf32>
    %5 = arith.addf %2, %4 : vector<240x32xf32>
    %cst_5 = arith.constant 0.000000e+00 : f32
    %6 = vector.broadcast %cst_5 : f32 to vector<240x32xf32>
    %7 = arith.maximumf %5, %6 : vector<240x32xf32>
    %8 = arith.truncf %7 : vector<240x32xf32> to vector<240x32xbf16>
    %c0_6 = arith.constant 0 : index
    %c0_7 = arith.constant 0 : index
    %9 = vector.load %arg4[%c0_6, %c0_7] : memref<240x32xbf16, #tpu.memory_space<vmem>>, vector<240x32xbf16>
    tpu.vector_store %arg4[%c0_6, %c0_7], %8 {strides = array<i32>} : memref<240x32xbf16, #tpu.memory_space<vmem>>, vector<240x32xbf16>,
    return
  }
  func.func @transform_0(%arg0: i32) -> (i32, i32) {
    %c0_i32 = arith.constant 0 : i32
    %c0_i32_0 = arith.constant 0 : i32
    return %arg0, %c0_i32 : i32, i32
  }
  func.func @transform_1(%arg0: i32) -> (i32, i32) {
    %c0_i32 = arith.constant 0 : i32
    %c0_i32_0 = arith.constant 0 : i32
    %c0_i32_1 = arith.constant 0 : i32
    return %c0_i32, %c0_i32_0 : i32, i32
  }
  func.func @transform_2(%arg0: i32) -> (i32, i32) {
    %c0_i32 = arith.constant 0 : i32
    %c0_i32_0 = arith.constant 0 : i32
    %c0_i32_1 = arith.constant 0 : i32
    return %c0_i32, %c0_i32_0 : i32, i32
  }
  func.func @transform_3(%arg0: i32) -> (i32, i32) {
    %c0_i32 = arith.constant 0 : i32
    %c0_i32_0 = arith.constant 0 : i32
    return %arg0, %c0_i32 : i32, i32
  }
}

module attributes {stable_mosaic.version = 11 : i64} {
  func.func @_linear_kernel(%arg0: i32, %arg1: memref<48x512xbf16, #tpu.memory_space<vmem>>, %arg2: memref<512x64xbf16, #tpu.memory_space<vmem>>, %arg3: memref<1x64xf32, #tpu.memory_space<vmem>>, %arg4: memref<48x64xbf16, #tpu.memory_space<vmem>>) attributes {dimension_semantics = [#tpu.dimension_semantics<parallel>], iteration_bounds = array<i64: 2>, scalar_prefetch = 0 : i64, scratch_operands = 0 : i64, tpu.core_type = #tpu.core_type<tc>, window_params = [{transform_indices = @transform_0, window_bounds = array<i64: 48, 512>}, {pipeline_mode = #tpu.pipeline_mode<synchronous>, transform_indices = @transform_1, window_bounds = array<i64: 512, 64>}, {pipeline_mode = #tpu.pipeline_mode<synchronous>, transform_indices = @transform_2, window_bounds = array<i64: 1, 64>}, {transform_indices = @transform_3, window_bounds = array<i64: 48, 64>}]} {
    %c0 = arith.constant 0 : index
    %c0_0 = arith.constant 0 : index
    %0 = vector.load %arg1[%c0, %c0_0] : memref<48x512xbf16, #tpu.memory_space<vmem>>, vector<48x512xbf16>
    %c0_1 = arith.constant 0 : index
    %c0_2 = arith.constant 0 : index
    %1 = vector.load %arg2[%c0_1, %c0_2] : memref<512x64xbf16, #tpu.memory_space<vmem>>, vector<512x64xbf16>
    %cst = arith.constant dense<0.000000e+00> : vector<48x64xf32>
    %2 = tpu.matmul %0, %1, %cst {dimension_numbers = #tpu.dot_dimension_numbers<[1], [0], [0], [1], [0, 0, 1, 1], [], []>} : vector<48x512xbf16>, vector<512x64xbf16>, vector<48x64xf32> -> vector<48x64xf32>
    %c0_3 = arith.constant 0 : index
    %c0_4 = arith.constant 0 : index
    %3 = vector.load %arg3[%c0_3, %c0_4] : memref<1x64xf32, #tpu.memory_space<vmem>>, vector<1x64xf32>
    %4 = vector.broadcast %3 : vector<1x64xf32> to vector<48x64xf32>
    %5 = arith.addf %2, %4 : vector<48x64xf32>
    %cst_5 = arith.constant 0.000000e+00 : f32
    %6 = vector.broadcast %cst_5 : f32 to vector<48x64xf32>
    %7 = arith.maximumf %5, %6 : vector<48x64xf32>
    %8 = arith.truncf %7 : vector<48x64xf32> to vector<48x64xbf16>
    %c0_6 = arith.constant 0 : index
    %c0_7 = arith.constant 0 : index
    %9 = vector.load %arg4[%c0_6, %c0_7] : memref<48x64xbf16, #tpu.memory_space<vmem>>, vector<48x64xbf16>
    tpu.vector_store %arg4[%c0_6, %c0_7], %8 {strides = array<i32>} : memref<48x64xbf16, #tpu.memory_space<vmem>>, vector<48x64xbf16>,
    return
  }
  func.func @transform_0(%arg0: i32) -> (i32, i32) {
    %c0_i32 = arith.constant 0 : i32
    %c0_i32_0 = arith.constant 0 : i32
    return %arg0, %c0_i32 : i32, i32
  }
  func.func @transform_1(%arg0: i32) -> (i32, i32) {
    %c0_i32 = arith.constant 0 : i32
    %c0_i32_0 = arith.constant 0 : i32
    %c0_i32_1 = arith.constant 0 : i32
    return %c0_i32, %c0_i32_0 : i32, i32
  }
  func.func @transform_2(%arg0: i32) -> (i32, i32) {
    %c0_i32 = arith.constant 0 : i32
    %c0_i32_0 = arith.constant 0 : i32
    %c0_i32_1 = arith.constant 0 : i32
    return %c0_i32, %c0_i32_0 : i32, i32
  }
  func.func @transform_3(%arg0: i32) -> (i32, i32) {
    %c0_i32 = arith.constant 0 : i32
    %c0_i32_0 = arith.constant 0 : i32
    return %arg0, %c0_i32 : i32, i32
  }
}

module attributes {stable_mosaic.version = 11 : i64} {
  func.func @_linear_kernel(%arg0: i32, %arg1: memref<16x576xbf16, #tpu.memory_space<vmem>>, %arg2: memref<576x64xbf16, #tpu.memory_space<vmem>>, %arg3: memref<1x64xf32, #tpu.memory_space<vmem>>, %arg4: memref<16x64xbf16, #tpu.memory_space<vmem>>) attributes {dimension_semantics = [#tpu.dimension_semantics<parallel>], iteration_bounds = array<i64: 2>, scalar_prefetch = 0 : i64, scratch_operands = 0 : i64, tpu.core_type = #tpu.core_type<tc>, window_params = [{transform_indices = @transform_0, window_bounds = array<i64: 16, 576>}, {pipeline_mode = #tpu.pipeline_mode<synchronous>, transform_indices = @transform_1, window_bounds = array<i64: 576, 64>}, {pipeline_mode = #tpu.pipeline_mode<synchronous>, transform_indices = @transform_2, window_bounds = array<i64: 1, 64>}, {transform_indices = @transform_3, window_bounds = array<i64: 16, 64>}]} {
    %c0 = arith.constant 0 : index
    %c0_0 = arith.constant 0 : index
    %0 = vector.load %arg1[%c0, %c0_0] : memref<16x576xbf16, #tpu.memory_space<vmem>>, vector<16x576xbf16>
    %c0_1 = arith.constant 0 : index
    %c0_2 = arith.constant 0 : index
    %1 = vector.load %arg2[%c0_1, %c0_2] : memref<576x64xbf16, #tpu.memory_space<vmem>>, vector<576x64xbf16>
    %cst = arith.constant dense<0.000000e+00> : vector<16x64xf32>
    %2 = tpu.matmul %0, %1, %cst {dimension_numbers = #tpu.dot_dimension_numbers<[1], [0], [0], [1], [0, 0, 1, 1], [], []>} : vector<16x576xbf16>, vector<576x64xbf16>, vector<16x64xf32> -> vector<16x64xf32>
    %c0_3 = arith.constant 0 : index
    %c0_4 = arith.constant 0 : index
    %3 = vector.load %arg3[%c0_3, %c0_4] : memref<1x64xf32, #tpu.memory_space<vmem>>, vector<1x64xf32>
    %4 = vector.broadcast %3 : vector<1x64xf32> to vector<16x64xf32>
    %5 = arith.addf %2, %4 : vector<16x64xf32>
    %cst_5 = arith.constant 0.000000e+00 : f32
    %6 = vector.broadcast %cst_5 : f32 to vector<16x64xf32>
    %7 = arith.maximumf %5, %6 : vector<16x64xf32>
    %8 = arith.truncf %7 : vector<16x64xf32> to vector<16x64xbf16>
    %c0_6 = arith.constant 0 : index
    %c0_7 = arith.constant 0 : index
    %9 = vector.load %arg4[%c0_6, %c0_7] : memref<16x64xbf16, #tpu.memory_space<vmem>>, vector<16x64xbf16>
    tpu.vector_store %arg4[%c0_6, %c0_7], %8 {strides = array<i32>} : memref<16x64xbf16, #tpu.memory_space<vmem>>, vector<16x64xbf16>,
    return
  }
  func.func @transform_0(%arg0: i32) -> (i32, i32) {
    %c0_i32 = arith.constant 0 : i32
    %c0_i32_0 = arith.constant 0 : i32
    return %arg0, %c0_i32 : i32, i32
  }
  func.func @transform_1(%arg0: i32) -> (i32, i32) {
    %c0_i32 = arith.constant 0 : i32
    %c0_i32_0 = arith.constant 0 : i32
    %c0_i32_1 = arith.constant 0 : i32
    return %c0_i32, %c0_i32_0 : i32, i32
  }
  func.func @transform_2(%arg0: i32) -> (i32, i32) {
    %c0_i32 = arith.constant 0 : i32
    %c0_i32_0 = arith.constant 0 : i32
    %c0_i32_1 = arith.constant 0 : i32
    return %c0_i32, %c0_i32_0 : i32, i32
  }
  func.func @transform_3(%arg0: i32) -> (i32, i32) {
    %c0_i32 = arith.constant 0 : i32
    %c0_i32_0 = arith.constant 0 : i32
    return %arg0, %c0_i32 : i32, i32
  }
}

module attributes {stable_mosaic.version = 11 : i64} {
  func.func @_fused_head_kernel(%arg0: i32, %arg1: memref<16x1024xbf16, #tpu.memory_space<vmem>>, %arg2: memref<16x4xbf16, #tpu.memory_space<vmem>>, %arg3: memref<4x64xbf16, #tpu.memory_space<vmem>>, %arg4: memref<1x64xf32, #tpu.memory_space<vmem>>, %arg5: memref<64x64xbf16, #tpu.memory_space<vmem>>, %arg6: memref<1x64xf32, #tpu.memory_space<vmem>>, %arg7: memref<64x512xbf16, #tpu.memory_space<vmem>>, %arg8: memref<1x512xf32, #tpu.memory_space<vmem>>, %arg9: memref<1024x512xbf16, #tpu.memory_space<vmem>>, %arg10: memref<1x512xf32, #tpu.memory_space<vmem>>, %arg11: memref<512x64xbf16, #tpu.memory_space<vmem>>, %arg12: memref<512x64xbf16, #tpu.memory_space<vmem>>, %arg13: memref<1x64xf32, #tpu.memory_space<vmem>>, %arg14: memref<64x4xbf16, #tpu.memory_space<vmem>>, %arg15: memref<1x4xf32, #tpu.memory_space<vmem>>, %arg16: memref<16x4xf32, #tpu.memory_space<vmem>>) attributes {dimension_semantics = [#tpu.dimension_semantics<parallel>], iteration_bounds = array<i64: 1>, scalar_prefetch = 0 : i64, scratch_operands = 0 : i64, tpu.core_type = #tpu.core_type<tc>, window_params = [{transform_indices = @transform_0, window_bounds = array<i64: 16, 1024>}, {transform_indices = @transform_1, window_bounds = array<i64: 16, 4>}, {pipeline_mode = #tpu.pipeline_mode<synchronous>, transform_indices = @transform_2, window_bounds = array<i64: 4, 64>}, {pipeline_mode = #tpu.pipeline_mode<synchronous>, transform_indices = @transform_3, window_bounds = array<i64: 1, 64>}, {pipeline_mode = #tpu.pipeline_mode<synchronous>, transform_indices = @transform_4, window_bounds = array<i64: 64, 64>}, {pipeline_mode = #tpu.pipeline_mode<synchronous>, transform_indices = @transform_5, window_bounds = array<i64: 1, 64>}, {pipeline_mode = #tpu.pipeline_mode<synchronous>, transform_indices = @transform_6, window_bounds = array<i64: 64, 512>}, {pipeline_mode = #tpu.pipeline_mode<synchronous>, transform_indices = @transform_7, window_bounds = array<i64: 1, 512>}, {pipeline_mode = #tpu.pipeline_mode<synchronous>, transform_indices = @transform_8, window_bounds = array<i64: 1024, 512>}, {pipeline_mode = #tpu.pipeline_mode<synchronous>, transform_indices = @transform_9, window_bounds = array<i64: 1, 512>}, {pipeline_mode = #tpu.pipeline_mode<synchronous>, transform_indices = @transform_10, window_bounds = array<i64: 512, 64>}, {pipeline_mode = #tpu.pipeline_mode<synchronous>, transform_indices = @transform_11, window_bounds = array<i64: 512, 64>}, {pipeline_mode = #tpu.pipeline_mode<synchronous>, transform_indices = @transform_12, window_bounds = array<i64: 1, 64>}, {pipeline_mode = #tpu.pipeline_mode<synchronous>, transform_indices = @transform_13, window_bounds = array<i64: 64, 4>}, {pipeline_mode = #tpu.pipeline_mode<synchronous>, transform_indices = @transform_14, window_bounds = array<i64: 1, 4>}, {transform_indices = @transform_15, window_bounds = array<i64: 16, 4>}]} {
    %c0 = arith.constant 0 : index
    %c0_0 = arith.constant 0 : index
    %0 = vector.load %arg2[%c0, %c0_0] : memref<16x4xbf16, #tpu.memory_space<vmem>>, vector<16x4xbf16>
    %c0_1 = arith.constant 0 : index
    %c0_2 = arith.constant 0 : index
    %1 = vector.load %arg3[%c0_1, %c0_2] : memref<4x64xbf16, #tpu.memory_space<vmem>>, vector<4x64xbf16>
    %cst = arith.constant dense<0.000000e+00> : vector<16x64xf32>
    %2 = tpu.matmul %0, %1, %cst {dimension_numbers = #tpu.dot_dimension_numbers<[1], [0], [0], [1], [0, 0, 1, 1], [], []>} : vector<16x4xbf16>, vector<4x64xbf16>, vector<16x64xf32> -> vector<16x64xf32>
    %c0_3 = arith.constant 0 : index
    %c0_4 = arith.constant 0 : index
    %3 = vector.load %arg4[%c0_3, %c0_4] : memref<1x64xf32, #tpu.memory_space<vmem>>, vector<1x64xf32>
    %4 = vector.broadcast %3 : vector<1x64xf32> to vector<16x64xf32>
    %5 = arith.addf %2, %4 : vector<16x64xf32>
    %cst_5 = arith.constant 0.000000e+00 : f32
    %6 = vector.broadcast %cst_5 : f32 to vector<16x64xf32>
    %7 = arith.maximumf %5, %6 : vector<16x64xf32>
    %8 = arith.truncf %7 : vector<16x64xf32> to vector<16x64xbf16>
    %c0_6 = arith.constant 0 : index
    %c0_7 = arith.constant 0 : index
    %9 = vector.load %arg5[%c0_6, %c0_7] : memref<64x64xbf16, #tpu.memory_space<vmem>>, vector<64x64xbf16>
    %cst_8 = arith.constant dense<0.000000e+00> : vector<16x64xf32>
    %10 = tpu.matmul %8, %9, %cst_8 {dimension_numbers = #tpu.dot_dimension_numbers<[1], [0], [0], [1], [0, 0, 1, 1], [], []>} : vector<16x64xbf16>, vector<64x64xbf16>, vector<16x64xf32> -> vector<16x64xf32>
    %c0_9 = arith.constant 0 : index
    %c0_10 = arith.constant 0 : index
    %11 = vector.load %arg6[%c0_9, %c0_10] : memref<1x64xf32, #tpu.memory_space<vmem>>, vector<1x64xf32>
    %12 = vector.broadcast %11 : vector<1x64xf32> to vector<16x64xf32>
    %13 = arith.addf %10, %12 : vector<16x64xf32>
    %cst_11 = arith.constant 0.000000e+00 : f32
    %14 = vector.broadcast %cst_11 : f32 to vector<16x64xf32>
    %15 = arith.maximumf %13, %14 : vector<16x64xf32>
    %16 = arith.truncf %15 : vector<16x64xf32> to vector<16x64xbf16>
    %c0_12 = arith.constant 0 : index
    %c0_13 = arith.constant 0 : index
    %17 = vector.load %arg7[%c0_12, %c0_13] : memref<64x512xbf16, #tpu.memory_space<vmem>>, vector<64x512xbf16>
    %cst_14 = arith.constant dense<0.000000e+00> : vector<16x512xf32>
    %18 = tpu.matmul %16, %17, %cst_14 {dimension_numbers = #tpu.dot_dimension_numbers<[1], [0], [0], [1], [0, 0, 1, 1], [], []>} : vector<16x64xbf16>, vector<64x512xbf16>, vector<16x512xf32> -> vector<16x512xf32>
    %c0_15 = arith.constant 0 : index
    %c0_16 = arith.constant 0 : index
    %19 = vector.load %arg8[%c0_15, %c0_16] : memref<1x512xf32, #tpu.memory_space<vmem>>, vector<1x512xf32>
    %20 = vector.broadcast %19 : vector<1x512xf32> to vector<16x512xf32>
    %21 = arith.addf %18, %20 : vector<16x512xf32>
    %cst_17 = arith.constant 0.000000e+00 : f32
    %22 = vector.broadcast %cst_17 : f32 to vector<16x512xf32>
    %23 = arith.maximumf %21, %22 : vector<16x512xf32>
    %24 = arith.truncf %23 : vector<16x512xf32> to vector<16x512xbf16>
    %c0_18 = arith.constant 0 : index
    %c0_19 = arith.constant 0 : index
    %25 = vector.load %arg1[%c0_18, %c0_19] : memref<16x1024xbf16, #tpu.memory_space<vmem>>, vector<16x1024xbf16>
    %c0_20 = arith.constant 0 : index
    %c0_21 = arith.constant 0 : index
    %26 = vector.load %arg9[%c0_20, %c0_21] : memref<1024x512xbf16, #tpu.memory_space<vmem>>, vector<1024x512xbf16>
    %cst_22 = arith.constant dense<0.000000e+00> : vector<16x512xf32>
    %27 = tpu.matmul %25, %26, %cst_22 {dimension_numbers = #tpu.dot_dimension_numbers<[1], [0], [0], [1], [0, 0, 1, 1], [], []>} : vector<16x1024xbf16>, vector<1024x512xbf16>, vector<16x512xf32> -> vector<16x512xf32>
    %c0_23 = arith.constant 0 : index
    %c0_24 = arith.constant 0 : index
    %28 = vector.load %arg10[%c0_23, %c0_24] : memref<1x512xf32, #tpu.memory_space<vmem>>, vector<1x512xf32>
    %29 = vector.broadcast %28 : vector<1x512xf32> to vector<16x512xf32>
    %30 = arith.addf %27, %29 : vector<16x512xf32>
    %cst_25 = arith.constant 0.000000e+00 : f32
    %31 = vector.broadcast %cst_25 : f32 to vector<16x512xf32>
    %32 = arith.maximumf %30, %31 : vector<16x512xf32>
    %33 = arith.truncf %32 : vector<16x512xf32> to vector<16x512xbf16>
    %c0_26 = arith.constant 0 : index
    %c0_27 = arith.constant 0 : index
    %34 = vector.load %arg11[%c0_26, %c0_27] : memref<512x64xbf16, #tpu.memory_space<vmem>>, vector<512x64xbf16>
    %cst_28 = arith.constant dense<0.000000e+00> : vector<16x64xf32>
    %35 = tpu.matmul %33, %34, %cst_28 {dimension_numbers = #tpu.dot_dimension_numbers<[1], [0], [0], [1], [0, 0, 1, 1], [], []>} : vector<16x512xbf16>, vector<512x64xbf16>, vector<16x64xf32> -> vector<16x64xf32>
    %c0_29 = arith.constant 0 : index
    %c0_30 = arith.constant 0 : index
    %36 = vector.load %arg12[%c0_29, %c0_30] : memref<512x64xbf16, #tpu.memory_space<vmem>>, vector<512x64xbf16>
    %cst_31 = arith.constant dense<0.000000e+00> : vector<16x64xf32>
    %37 = tpu.matmul %24, %36, %cst_31 {dimension_numbers = #tpu.dot_dimension_numbers<[1], [0], [0], [1], [0, 0, 1, 1], [], []>} : vector<16x512xbf16>, vector<512x64xbf16>, vector<16x64xf32> -> vector<16x64xf32>
    %38 = arith.addf %35, %37 : vector<16x64xf32>
    %c0_32 = arith.constant 0 : index
    %c0_33 = arith.constant 0 : index
    %39 = vector.load %arg13[%c0_32, %c0_33] : memref<1x64xf32, #tpu.memory_space<vmem>>, vector<1x64xf32>
    %40 = vector.broadcast %39 : vector<1x64xf32> to vector<16x64xf32>
    %41 = arith.addf %38, %40 : vector<16x64xf32>
    %cst_34 = arith.constant 0.000000e+00 : f32
    %42 = vector.broadcast %cst_34 : f32 to vector<16x64xf32>
    %43 = arith.maximumf %41, %42 : vector<16x64xf32>
    %44 = arith.truncf %43 : vector<16x64xf32> to vector<16x64xbf16>
    %c0_35 = arith.constant 0 : index
    %c0_36 = arith.constant 0 : index
    %45 = vector.load %arg14[%c0_35, %c0_36] : memref<64x4xbf16, #tpu.memory_space<vmem>>, vector<64x4xbf16>
    %cst_37 = arith.constant dense<0.000000e+00> : vector<16x4xf32>
    %46 = tpu.matmul %44, %45, %cst_37 {dimension_numbers = #tpu.dot_dimension_numbers<[1], [0], [0], [1], [0, 0, 1, 1], [], []>} : vector<16x64xbf16>, vector<64x4xbf16>, vector<16x4xf32> -> vector<16x4xf32>
    %c0_38 = arith.constant 0 : index
    %c0_39 = arith.constant 0 : index
    %47 = vector.load %arg15[%c0_38, %c0_39] : memref<1x4xf32, #tpu.memory_space<vmem>>, vector<1x4xf32>
    %48 = vector.broadcast %47 : vector<1x4xf32> to vector<16x4xf32>
    %49 = arith.addf %46, %48 : vector<16x4xf32>
    %c0_40 = arith.constant 0 : index
    %c0_41 = arith.constant 0 : index
    %50 = vector.load %arg16[%c0_40, %c0_41] : memref<16x4xf32, #tpu.memory_space<vmem>>, vector<16x4xf32>
    tpu.vector_store %arg16[%c0_40, %c0_41], %49 {strides = array<i32>} : memref<16x4xf32, #tpu.memory_space<vmem>>, vector<16x4xf32>,
    return
  }
  func.func @transform_0(%arg0: i32) -> (i32, i32) {
    %c0_i32 = arith.constant 0 : i32
    %c0_i32_0 = arith.constant 0 : i32
    return %arg0, %c0_i32 : i32, i32
  }
  func.func @transform_1(%arg0: i32) -> (i32, i32) {
    %c0_i32 = arith.constant 0 : i32
    %c0_i32_0 = arith.constant 0 : i32
    return %arg0, %c0_i32 : i32, i32
  }
  func.func @transform_2(%arg0: i32) -> (i32, i32) {
    %c0_i32 = arith.constant 0 : i32
    %c0_i32_0 = arith.constant 0 : i32
    %c0_i32_1 = arith.constant 0 : i32
    return %c0_i32, %c0_i32_0 : i32, i32
  }
  func.func @transform_3(%arg0: i32) -> (i32, i32) {
    %c0_i32 = arith.constant 0 : i32
    %c0_i32_0 = arith.constant 0 : i32
    %c0_i32_1 = arith.constant 0 : i32
    return %c0_i32, %c0_i32_0 : i32, i32
  }
  func.func @transform_4(%arg0: i32) -> (i32, i32) {
    %c0_i32 = arith.constant 0 : i32
    %c0_i32_0 = arith.constant 0 : i32
    %c0_i32_1 = arith.constant 0 : i32
    return %c0_i32, %c0_i32_0 : i32, i32
  }
  func.func @transform_5(%arg0: i32) -> (i32, i32) {
    %c0_i32 = arith.constant 0 : i32
    %c0_i32_0 = arith.constant 0 : i32
    %c0_i32_1 = arith.constant 0 : i32
    return %c0_i32, %c0_i32_0 : i32, i32
  }
  func.func @transform_6(%arg0: i32) -> (i32, i32) {
    %c0_i32 = arith.constant 0 : i32
    %c0_i32_0 = arith.constant 0 : i32
    %c0_i32_1 = arith.constant 0 : i32
    return %c0_i32, %c0_i32_0 : i32, i32
  }
  func.func @transform_7(%arg0: i32) -> (i32, i32) {
    %c0_i32 = arith.constant 0 : i32
    %c0_i32_0 = arith.constant 0 : i32
    %c0_i32_1 = arith.constant 0 : i32
    return %c0_i32, %c0_i32_0 : i32, i32
  }
  func.func @transform_8(%arg0: i32) -> (i32, i32) {
    %c0_i32 = arith.constant 0 : i32
    %c0_i32_0 = arith.constant 0 : i32
    %c0_i32_1 = arith.constant 0 : i32
    return %c0_i32, %c0_i32_0 : i32, i32
  }
  func.func @transform_9(%arg0: i32) -> (i32, i32) {
    %c0_i32 = arith.constant 0 : i32
    %c0_i32_0 = arith.constant 0 : i32
    %c0_i32_1 = arith.constant 0 : i32
    return %c0_i32, %c0_i32_0 : i32, i32
  }
  func.func @transform_10(%arg0: i32) -> (i32, i32) {
    %c0_i32 = arith.constant 0 : i32
    %c0_i32_0 = arith.constant 0 : i32
    %c0_i32_1 = arith.constant 0 : i32
    return %c0_i32, %c0_i32_0 : i32, i32
  }
  func.func @transform_11(%arg0: i32) -> (i32, i32) {
    %c0_i32 = arith.constant 0 : i32
    %c0_i32_0 = arith.constant 0 : i32
    %c0_i32_1 = arith.constant 0 : i32
    return %c0_i32, %c0_i32_0 : i32, i32
  }
  func.func @transform_12(%arg0: i32) -> (i32, i32) {
    %c0_i32 = arith.constant 0 : i32
    %c0_i32_0 = arith.constant 0 : i32
    %c0_i32_1 = arith.constant 0 : i32
    return %c0_i32, %c0_i32_0 : i32, i32
  }
  func.func @transform_13(%arg0: i32) -> (i32, i32) {
    %c0_i32 = arith.constant 0 : i32
    %c0_i32_0 = arith.constant 0 : i32
    %c0_i32_1 = arith.constant 0 : i32
    return %c0_i32, %c0_i32_0 : i32, i32
  }
  func.func @transform_14(%arg0: i32) -> (i32, i32) {
    %c0_i32 = arith.constant 0 : i32
    %c0_i32_0 = arith.constant 0 : i32
    %c0_i32_1 = arith.constant 0 : i32
    return %c0_i32, %c0_i32_0 : i32, i32
  }
  func.func @transform_15(%arg0: i32) -> (i32, i32) {
    %c0_i32 = arith.constant 0 : i32
    %c0_i32_0 = arith.constant 0 : i32
    return %arg0, %c0_i32 : i32, i32
  }
}

</mosaic_0001>

<llo_original>
// kernel: cnn_q_forward.4
$region0: #{cnn_q_forward.4}
  #allocation0 [shape = 'u32[]', space=smem, size = 0x4, offset = 0x4, fixed_abs, tag = 'smem constant byte address 0x4 - core index']
  #allocation1 [shape = 'u32[144,128]{1,0:T(1,128)}', space=vmem, size = 0x12000, scoped, tag = 'internal scratch']
  %s0 = inlined_call_operand.vmem [shape: bf16[450,256], index: 0, kind: input, shape index: {}]
  %s1 = inlined_call_operand.vmem [shape: bf16[256,32], index: 1, kind: input, shape index: {}]
  %s2 = inlined_call_operand.vmem [shape: f32[1,32], index: 2, kind: input, shape index: {}]
  %s3 = inlined_call_operand.vmem [shape: bf16[450,32], index: 3, kind: output, shape index: {}]
  %s4 = sld [smem:[#allocation0]]
  $region89: #{cnn_q_forward.4} parent=0
    _
  %s6 = ssub.s32 1, %s4
  %s7 = scalar_select 0, %s6, %s4
  $region1: #{cnn_q_forward.4} parent=0
    #allocation2 [shape = 'u8[122880]{0}', space=vmem, size = 0x1e000, scoped, tag = 'output window, operand 0']
    loop: start=0, step=1, limit=4
    $region2: #{cnn_q_forward.4} parent=1 // loop_pre_header
      _
    $region3: #{cnn_q_forward.4} parent=1 // loop_header
      %s9 = sphi 0, %s13
      %p10 = scmp.ge.s32.totalorder %s9, 4
      %s19 = sphi 0, %s21
      %s22 = sphi 0, %s19
      %s23 = sphi 0, %s22
      %s39 = sphi 0, %s23
      %s43 = sphi 0, %s43
      %s45 = sphi 0, %s43
      %s46 = sphi 0, %s45
      %s60 = sphi 0, %s46
      %s64 = sphi 0, %s64
      %s66 = sphi 0, %s64
      %s67 = sphi 0, %s66
      %s81 = sphi 0, %s67
      %s87 = sphi 0, %s89
      %s90 = sphi 0, %s87
      %s91 = sphi 0, %s90
      %s107 = sphi 0, %s91
    $region4: #{cnn_q_forward.4} parent=1 // loop_header_branch
      %12 = sbr.rel (%p10) target = $region8
    $region5: #{cnn_q_forward.4} parent=1 // loop_body
      %s14 = ssub.s32 %s9, 1
      %s15 = ssub.s32 %s9, 2
      %s16 = sadd.s32 %s9, 1
      %s17 = ssub.s32 %s9, %s16
      %p18 = scmp.eq.s32.totalorder %s17, 0
      %s20 = sadd.s32 %s19, 1
      %s21 = scalar_select %p18, %s19, %s20
      %p24 = pneg %p18
      %p25 = scmp.eq.s32.totalorder %s9, 1
      %p26 = por %p24, %p25
      %p27 = scmp.ne.s32.totalorder %s19, %s22
      %p28 = scmp.eq.s32.totalorder %s9, 0
      %p29 = por %p27, %p28
      %p30 = scmp.ne.s32.totalorder %s19, %s22
      %p31 = scmp.eq.s32.totalorder %s14, 1
      %p32 = por %p30, %p31
      %p33 = scmp.ne.s32.totalorder %s22, %s23
      %p34 = scmp.eq.s32.totalorder %s14, 0
      %p35 = por %p33, %p34
      %p36 = scmp.ne.s32.totalorder %s22, %s23
      %p37 = scmp.eq.s32.totalorder %s15, 1
      %p38 = por %p36, %p37
      %p40 = scmp.ne.s32.totalorder %s23, %s39
      %p41 = scmp.eq.s32.totalorder %s15, 0
      %p42 = por %p40, %p41
      %s44 = sadd.s32 %s43, 1
      %p47 = scmp.eq.s32.totalorder %s9, 1
      %p48 = scmp.ne.s32.totalorder %s43, %s45
      %p49 = scmp.eq.s32.totalorder %s9, 0
      %p50 = por %p48, %p49
      %p51 = scmp.ne.s32.totalorder %s43, %s45
      %p52 = scmp.eq.s32.totalorder %s14, 1
      %p53 = por %p51, %p52
      %p54 = scmp.ne.s32.totalorder %s45, %s46
      %p55 = scmp.eq.s32.totalorder %s14, 0
      %p56 = por %p54, %p55
      %p57 = scmp.ne.s32.totalorder %s45, %s46
      %p58 = scmp.eq.s32.totalorder %s15, 1
      %p59 = por %p57, %p58
      %p61 = scmp.ne.s32.totalorder %s46, %s60
      %p62 = scmp.eq.s32.totalorder %s15, 0
      %p63 = por %p61, %p62
      %s65 = sadd.s32 %s64, 1
      %p68 = scmp.eq.s32.totalorder %s9, 1
      %p69 = scmp.ne.s32.totalorder %s64, %s66
      %p70 = scmp.eq.s32.totalorder %s9, 0
      %p71 = por %p69, %p70
      %p72 = scmp.ne.s32.totalorder %s64, %s66
      %p73 = scmp.eq.s32.totalorder %s14, 1
      %p74 = por %p72, %p73
      %p75 = scmp.ne.s32.totalorder %s66, %s67
      %p76 = scmp.eq.s32.totalorder %s14, 0
      %p77 = por %p75, %p76
      %p78 = scmp.ne.s32.totalorder %s66, %s67
      %p79 = scmp.eq.s32.totalorder %s15, 1
      %p80 = por %p78, %p79
      %p82 = scmp.ne.s32.totalorder %s67, %s81
      %p83 = scmp.eq.s32.totalorder %s15, 0
      %p84 = por %p82, %p83
      %s85 = ssub.s32 %s9, %s16
      %p86 = scmp.eq.s32.totalorder %s85, 0
      %s88 = sadd.s32 %s87, 1
      %s89 = scalar_select %p86, %s87, %s88
      %p92 = pneg %p86
      %p93 = scmp.eq.s32.totalorder %s9, 1
      %p94 = por %p92, %p93
      %p95 = scmp.ne.s32.totalorder %s87, %s90
      %p96 = scmp.eq.s32.totalorder %s9, 0
      %p97 = por %p95, %p96
      %p98 = scmp.ne.s32.totalorder %s87, %s90
      %p99 = scmp.eq.s32.totalorder %s14, 1
      %p100 = por %p98, %p99
      %p101 = scmp.ne.s32.totalorder %s90, %s91
      %p102 = scmp.eq.s32.totalorder %s14, 0
      %p103 = por %p101, %p102
      %p104 = scmp.ne.s32.totalorder %s90, %s91
      %p105 = scmp.eq.s32.totalorder %s15, 1
      %p106 = por %p104, %p105
      %p108 = scmp.ne.s32.totalorder %s91, %s107
      %p109 = scmp.eq.s32.totalorder %s15, 0
      %p110 = por %p108, %p109
      %p111 = scmp.le.s32.totalorder 1, %s9
      %p112 = scmp.lt.s32.totalorder %s9, 3
      %p113 = pnand %p111, %p112
      %p114 = pneg %p113
      // Predicated region
      $region9: #{cnn_q_forward.4} parent=5 // pred_check
        _
      $region10: #{cnn_q_forward.4} parent=5 // pred_check_branch
        %116 = sbr.rel (%p113) target = $region12
      $region11: #{cnn_q_forward.4} parent=5 // pred_region
        %s117 = ssub.s32 %s9, 1
        // Predicated region
        $region13: #{cnn_q_forward.4} parent=11 // pred_check
          %p118 = pneg %p56
        $region14: #{cnn_q_forward.4} parent=11 // pred_check_branch
          %120 = sbr.rel (%p118) target = $region16
        $region15: #{cnn_q_forward.4} parent=11 // pred_region
          _
        $region16: #{cnn_q_forward.4} parent=11 // pred_fallthru
          _
        // Predicated region
        $region17: #{cnn_q_forward.4} parent=11 // pred_check
          %p121 = pneg %p77
        $region18: #{cnn_q_forward.4} parent=11 // pred_check_branch
          %123 = sbr.rel (%p121) target = $region20
        $region19: #{cnn_q_forward.4} parent=11 // pred_region
          _
        $region20: #{cnn_q_forward.4} parent=11 // pred_fallthru
          _
      $region12: #{cnn_q_forward.4} parent=5 // pred_fallthru
        _
      %p124 = scmp.lt.s32.totalorder %s9, 2
      // Predicated region
      $region21: #{cnn_q_forward.4} parent=5 // pred_check
        %p125 = pneg %p124
      $region22: #{cnn_q_forward.4} parent=5 // pred_check_branch
        %127 = sbr.rel (%p125) target = $region24
      $region23: #{cnn_q_forward.4} parent=5 // pred_region
        // Predicated region
        $region25: #{cnn_q_forward.4} parent=23 // pred_check
          %p128 = pneg %p29
        $region26: #{cnn_q_forward.4} parent=23 // pred_check_branch
          %130 = sbr.rel (%p128) target = $region28
        $region27: #{cnn_q_forward.4} parent=23 // pred_region
          %s131 = smul.u32 30, %s9
          %s132 = ssub.s32 57, %s131
          %p133 = scmp.lt.s32.totalorder %s132, 30
          %s134 = scalar_select %p133, %s132, 30
          %s135 = smul.u32 64, %s134
          %s136 = smul.u32 %s135, 2
          %p137 = scmp.lt.s32.totalorder %s131, 56
          %s138 = scalar_select %p137, %s131, 56
          %s139 = smul.addr %s138, 2
          %s140 = smul.addr %s139, 4
          %s141 = scalar_lea.vmem %s0, %s140
          %s142 = smul.u32 30, %s9
          %s143 = ssub.s32 57, %s142
          %p144 = scmp.lt.s32.totalorder %s143, 30
          %s145 = scalar_select %p144, %s143, 30
          %s146 = smul.u32 64, %s145
          %s147 = smul.u32 %s146, 2
        $region28: #{cnn_q_forward.4} parent=23 // pred_fallthru
          _
      $region24: #{cnn_q_forward.4} parent=5 // pred_fallthru
        _
      %p148 = scmp.le.s32.totalorder 1, %s9
      %p149 = scmp.lt.s32.totalorder %s9, 3
      %p150 = pnand %p148, %p149
      %p151 = pneg %p150
      // Predicated region
      $region29: #{cnn_q_forward.4} parent=5 // pred_check
        _
      $region30: #{cnn_q_forward.4} parent=5 // pred_check_branch
        %153 = sbr.rel (%p150) target = $region32
      $region31: #{cnn_q_forward.4} parent=5 // pred_region
        %s154 = ssub.s32 %s9, 1
        %s155 = smul.u32 30, %s14
        %s156 = ssub.s32 57, %s155
        %p157 = scmp.lt.s32.totalorder %s156, 30
        %s158 = scalar_select %p157, %s156, 30
        %s159 = smul.u32 64, %s158
        %s160 = smul.u32 %s159, 2
        %p161 = scmp.lt.s32.totalorder %s155, 56
        %s162 = scalar_select %p161, %s155, 56
        %s163 = smul.addr %s162, 2
        %s164 = smul.addr %s163, 4
        %s165 = scalar_lea.vmem %s0, %s164
        %p166 = pneg %p35
        %p167 = pneg %p32
        %p168 = pneg %p56
        %p169 = pneg %p53
        %p170 = pneg %p77
        %p171 = pneg %p74
        %p172 = pneg %p103
        %p173 = pneg %p100
        %s174 = sand.u32 %s90, 1
        %s175 = sand.u32 %s90, 1
        %s176 = smul.addr %s175, 120
        %s177 = scalar_lea.vmem [#allocation2], %s176
        %s178 = smul.u32 30, %s14
        %s179 = ssub.s32 57, %s178
        %p180 = scmp.lt.s32.totalorder %s179, 30
        %s181 = scalar_select %p180, %s179, 30
        %s182 = smul.u32 64, %s181
        %s183 = smul.u32 %s182, 2
        %p184 = scmp.lt.s32.totalorder %s178, 56
        %s185 = scalar_select %p184, %s178, 56
        %s186 = smul.addr %s185, 2
        %s187 = smul.addr %s186, 4
        %s188 = scalar_lea.vmem %s0, %s187
        %s189 = smul.u32 30, %s14
        %s190 = ssub.s32 57, %s189
        %p191 = scmp.lt.s32.totalorder %s190, 30
        %s192 = scalar_select %p191, %s190, 30
        %s193 = smul.u32 64, %s192
        %s194 = smul.u32 %s193, 2
        %s195 = smul.u32 30, %s14
        %s196 = ssub.s32 57, %s195
        %p197 = scmp.lt.s32.totalorder %s196, 30
        %s198 = scalar_select %p197, %s196, 30
        %s199 = smul.u32 64, %s198
        %v201 = vld [vmem:[%s188] sm:$0xff]
        %v202 = vld [vmem:[%s188 + $0x8] sm:$0xff]
        %v203 = vld [vmem:[%s188 + $0x10] sm:$0xff]
        %v204 = vld [vmem:[%s188 + $0x18] sm:$0xff]
        %v205 = vld [vmem:[%s188 + $0x20] sm:$0xff]
        %v206 = vld [vmem:[%s188 + $0x28] sm:$0xff]
        %v207 = vld [vmem:[%s188 + $0x30] sm:$0xff]
        %v208 = vld [vmem:[%s188 + $0x38] sm:$0xff]
        %v209 = vld [vmem:[%s188 + $0x40] sm:$0xff]
        %v210 = vld [vmem:[%s188 + $0x48] sm:$0xff]
        %v211 = vld [vmem:[%s188 + $0x50] sm:$0xff]
        %v212 = vld [vmem:[%s188 + $0x58] sm:$0xff]
        %v213 = vld [vmem:[%s188 + $0x60] sm:$0xff]
        %v214 = vld [vmem:[%s188 + $0x68] sm:$0xff]
        %v215 = vld [vmem:[%s188 + $0x70] sm:$0xff]
        %v216 = vld [vmem:[%s188 + $0x78] sm:$0xff]
        %v217 = vld [vmem:[%s188 + $0x80] sm:$0xff]
        %v218 = vld [vmem:[%s188 + $0x88] sm:$0xff]
        %v219 = vld [vmem:[%s188 + $0x90] sm:$0xff]
        %v220 = vld [vmem:[%s188 + $0x98] sm:$0xff]
        %v221 = vld [vmem:[%s188 + $0xa0] sm:$0xff]
        %v222 = vld [vmem:[%s188 + $0xa8] sm:$0xff]
        %v223 = vld [vmem:[%s188 + $0xb0] sm:$0xff]
        %v224 = vld [vmem:[%s188 + $0xb8] sm:$0xff]
        %v225 = vld [vmem:[%s188 + $0xc0] sm:$0xff]
        %v226 = vld [vmem:[%s188 + $0xc8] sm:$0xff]
        %v227 = vld [vmem:[%s188 + $0xd0] sm:$0xff]
        %v228 = vld [vmem:[%s188 + $0xd8] sm:$0xff]
        %v229 = vld [vmem:[%s188 + $0xe0] sm:$0xff]
        %v230 = vld [vmem:[%s188 + $0xe8] sm:$0xff]
        %v231 = vld [vmem:[%s1] sm:$0xf]
        %v232 = vld [vmem:[%s1 + $0x4] sm:$0xf]
        %v233 = vld [vmem:[%s1 + $0x8] sm:$0xf]
        %v234 = vld [vmem:[%s1 + $0xc] sm:$0xf]
        %v235 = vld [vmem:[%s1 + $0x10] sm:$0xf]
        %v236 = vld [vmem:[%s1 + $0x14] sm:$0xf]
        %v237 = vld [vmem:[%s1 + $0x18] sm:$0xf]
        %v238 = vld [vmem:[%s1 + $0x1c] sm:$0xf]
        %v239 = vld [vmem:[%s1 + $0x20] sm:$0xf]
        %v240 = vld [vmem:[%s1 + $0x24] sm:$0xf]
        %v241 = vld [vmem:[%s1 + $0x28] sm:$0xf]
        %v242 = vld [vmem:[%s1 + $0x2c] sm:$0xf]
        %v243 = vld [vmem:[%s1 + $0x30] sm:$0xf]
        %v244 = vld [vmem:[%s1 + $0x34] sm:$0xf]
        %v245 = vld [vmem:[%s1 + $0x38] sm:$0xf]
        %v246 = vld [vmem:[%s1 + $0x3c] sm:$0xf]
        %v247 = vld [vmem:[%s1 + $0x40] sm:$0xf]
        %v248 = vld [vmem:[%s1 + $0x44] sm:$0xf]
        %v249 = vld [vmem:[%s1 + $0x48] sm:$0xf]
        %v250 = vld [vmem:[%s1 + $0x4c] sm:$0xf]
        %v251 = vld [vmem:[%s1 + $0x50] sm:$0xf]
        %v252 = vld [vmem:[%s1 + $0x54] sm:$0xf]
        %v253 = vld [vmem:[%s1 + $0x58] sm:$0xf]
        %v254 = vld [vmem:[%s1 + $0x5c] sm:$0xf]
        %v255 = vld [vmem:[%s1 + $0x60] sm:$0xf]
        %v256 = vld [vmem:[%s1 + $0x64] sm:$0xf]
        %v257 = vld [vmem:[%s1 + $0x68] sm:$0xf]
        %v258 = vld [vmem:[%s1 + $0x6c] sm:$0xf]
        %v259 = vld [vmem:[%s1 + $0x70] sm:$0xf]
        %v260 = vld [vmem:[%s1 + $0x74] sm:$0xf]
        %v261 = vld [vmem:[%s1 + $0x78] sm:$0xf]
        %v262 = vld [vmem:[%s1 + $0x7c] sm:$0xf]
        %v263 = vld [vmem:[%s2] sm:$0x1]
        %v265 = vlaneseq
        %v266 = vshrl.u32 %v265, 7
        %v267 = vsub.s32 0, %v266
        %v268 = vrot.slane %v263, %v267
        %v300 = vunpack.c.l.b16 %v201
        %v301 = vunpack.c.h.b16 %v201
        %v302 = vunpack.c.l.b16 %v202
        %v303 = vunpack.c.h.b16 %v202
        %v304 = vunpack.c.l.b16 %v203
        %v305 = vunpack.c.h.b16 %v203
        %v306 = vunpack.c.l.b16 %v204
        %v307 = vunpack.c.h.b16 %v204
        %v308 = vunpack.c.l.b16 %v205
        %v309 = vunpack.c.h.b16 %v205
        %v310 = vunpack.c.l.b16 %v206
        %v311 = vunpack.c.h.b16 %v206
        %v312 = vunpack.c.l.b16 %v207
        %v313 = vunpack.c.h.b16 %v207
        %v314 = vunpack.c.l.b16 %v208
        %v315 = vunpack.c.h.b16 %v208
        %v316 = vunpack.c.l.b16 %v209
        %v317 = vunpack.c.h.b16 %v209
        %v318 = vunpack.c.l.b16 %v210
        %v319 = vunpack.c.h.b16 %v210
        %v320 = vunpack.c.l.b16 %v211
        %v321 = vunpack.c.h.b16 %v211
        %v322 = vunpack.c.l.b16 %v212
        %v323 = vunpack.c.h.b16 %v212
        %v324 = vunpack.c.l.b16 %v213
        %v325 = vunpack.c.h.b16 %v213
        %v326 = vunpack.c.l.b16 %v214
        %v327 = vunpack.c.h.b16 %v214
        %v328 = vunpack.c.l.b16 %v215
        %v329 = vunpack.c.h.b16 %v215
        %v330 = vunpack.c.l.b16 %v216
        %v331 = vunpack.c.h.b16 %v216
        %v332 = vunpack.c.l.b16 %v217
        %v333 = vunpack.c.h.b16 %v217
        %v334 = vunpack.c.l.b16 %v218
        %v335 = vunpack.c.h.b16 %v218
        %v336 = vunpack.c.l.b16 %v219
        %v337 = vunpack.c.h.b16 %v219
        %v338 = vunpack.c.l.b16 %v220
        %v339 = vunpack.c.h.b16 %v220
        %v340 = vunpack.c.l.b16 %v221
        %v341 = vunpack.c.h.b16 %v221
        %v342 = vunpack.c.l.b16 %v222
        %v343 = vunpack.c.h.b16 %v222
        %v344 = vunpack.c.l.b16 %v223
        %v345 = vunpack.c.h.b16 %v223
        %v346 = vunpack.c.l.b16 %v224
        %v347 = vunpack.c.h.b16 %v224
        %v348 = vunpack.c.l.b16 %v225
        %v349 = vunpack.c.h.b16 %v225
        %v350 = vunpack.c.l.b16 %v226
        %v351 = vunpack.c.h.b16 %v226
        %v352 = vunpack.c.l.b16 %v227
        %v353 = vunpack.c.h.b16 %v227
        %v354 = vunpack.c.l.b16 %v228
        %v355 = vunpack.c.h.b16 %v228
        %v356 = vunpack.c.l.b16 %v229
        %v357 = vunpack.c.h.b16 %v229
        %v358 = vunpack.c.l.b16 %v230
        %v359 = vunpack.c.h.b16 %v230
        %v360 = vpack.c.b16 %v302, %v300
        %v361 = vpack.c.b16 %v303, %v301
        %v362 = vpack.c.b16 %v306, %v304
        %v363 = vpack.c.b16 %v307, %v305
        %v364 = vpack.c.b16 %v310, %v308
        %v365 = vpack.c.b16 %v311, %v309
        %v366 = vpack.c.b16 %v314, %v312
        %v367 = vpack.c.b16 %v315, %v313
        %v368 = vpack.c.b16 %v318, %v316
        %v369 = vpack.c.b16 %v319, %v317
        %v370 = vpack.c.b16 %v322, %v320
        %v371 = vpack.c.b16 %v323, %v321
        %v372 = vpack.c.b16 %v326, %v324
        %v373 = vpack.c.b16 %v327, %v325
        %v374 = vpack.c.b16 %v330, %v328
        %v375 = vpack.c.b16 %v331, %v329
        %v376 = vpack.c.b16 %v334, %v332
        %v377 = vpack.c.b16 %v335, %v333
        %v378 = vpack.c.b16 %v338, %v336
        %v379 = vpack.c.b16 %v339, %v337
        %v380 = vpack.c.b16 %v342, %v340
        %v381 = vpack.c.b16 %v343, %v341
        %v382 = vpack.c.b16 %v346, %v344
        %v383 = vpack.c.b16 %v347, %v345
        %v384 = vpack.c.b16 %v350, %v348
        %v385 = vpack.c.b16 %v351, %v349
        %v386 = vpack.c.b16 %v354, %v352
        %v387 = vpack.c.b16 %v355, %v353
        %v388 = vpack.c.b16 %v358, %v356
        %v389 = vpack.c.b16 %v359, %v357
        %v452 = vunpack.c.l.b16 %v231
        %v453 = vunpack.c.l.b16 %v232
        %v454 = vunpack.c.l.b16 %v233
        %v455 = vunpack.c.l.b16 %v234
        %v456 = vunpack.c.l.b16 %v235
        %v457 = vunpack.c.l.b16 %v236
        %v458 = vunpack.c.l.b16 %v237
        %v459 = vunpack.c.l.b16 %v238
        %v460 = vunpack.c.l.b16 %v239
        %v461 = vunpack.c.l.b16 %v240
        %v462 = vunpack.c.l.b16 %v241
        %v463 = vunpack.c.l.b16 %v242
        %v464 = vunpack.c.l.b16 %v243
        %v465 = vunpack.c.l.b16 %v244
        %v466 = vunpack.c.l.b16 %v245
        %v467 = vunpack.c.l.b16 %v246
        %v468 = vunpack.c.l.b16 %v247
        %v469 = vunpack.c.l.b16 %v248
        %v470 = vunpack.c.l.b16 %v249
        %v471 = vunpack.c.l.b16 %v250
        %v472 = vunpack.c.l.b16 %v251
        %v473 = vunpack.c.l.b16 %v252
        %v474 = vunpack.c.l.b16 %v253
        %v475 = vunpack.c.l.b16 %v254
        %v476 = vunpack.c.l.b16 %v255
        %v477 = vunpack.c.l.b16 %v256
        %v478 = vunpack.c.l.b16 %v257
        %v479 = vunpack.c.l.b16 %v258
        %v480 = vunpack.c.l.b16 %v259
        %v481 = vunpack.c.l.b16 %v260
        %v482 = vunpack.c.l.b16 %v261
        %v483 = vunpack.c.l.b16 %v262
        %v484 = vpack.c.b16 %v453, %v452
        %v485 = vpack.c.b16 %v455, %v454
        %v486 = vpack.c.b16 %v457, %v456
        %v487 = vpack.c.b16 %v459, %v458
        %v488 = vpack.c.b16 %v461, %v460
        %v489 = vpack.c.b16 %v463, %v462
        %v490 = vpack.c.b16 %v465, %v464
        %v491 = vpack.c.b16 %v467, %v466
        %v492 = vpack.c.b16 %v469, %v468
        %v493 = vpack.c.b16 %v471, %v470
        %v494 = vpack.c.b16 %v473, %v472
        %v495 = vpack.c.b16 %v475, %v474
        %v496 = vpack.c.b16 %v477, %v476
        %v497 = vpack.c.b16 %v479, %v478
        %v498 = vpack.c.b16 %v481, %v480
        %v499 = vpack.c.b16 %v483, %v482
        %516 = vmatprep.subr.bf16.mxu0 0
        %517 = vmatpush1.bf16.msra.mxu0 %v484
        %518 = vmatprep.subr.bf16.mxu0 0
        %519 = vmatpush1.bf16.msra.mxu0 %v485
        %520 = vmatprep.subr.bf16.mxu0 0
        %521 = vmatpush1.bf16.msra.mxu0 %v486
        %522 = vmatprep.subr.bf16.mxu0 0
        %523 = vmatpush1.bf16.msra.mxu0 %v487
        %524 = vmatprep.subr.bf16.mxu0 0
        %525 = vmatpush1.bf16.msra.mxu0 %v488
        %526 = vmatprep.subr.bf16.mxu0 0
        %527 = vmatpush1.bf16.msra.mxu0 %v489
        %528 = vmatprep.subr.bf16.mxu0 0
        %529 = vmatpush1.bf16.msra.mxu0 %v490
        %530 = vmatprep.subr.bf16.mxu0 0
        %531 = vmatpush1.bf16.msra.mxu0 %v491
        %532 = vmatprep.subr.bf16.mxu0 0
        %533 = vmatpush1.bf16.msra.mxu0 %v492
        %534 = vmatprep.subr.bf16.mxu0 0
        %535 = vmatpush1.bf16.msra.mxu0 %v493
        %536 = vmatprep.subr.bf16.mxu0 0
        %537 = vmatpush1.bf16.msra.mxu0 %v494
        %538 = vmatprep.subr.bf16.mxu0 0
        %539 = vmatpush1.bf16.msra.mxu0 %v495
        %540 = vmatprep.subr.bf16.mxu0 0
        %541 = vmatpush1.bf16.msra.mxu0 %v496
        %542 = vmatprep.subr.bf16.mxu0 0
        %543 = vmatpush1.bf16.msra.mxu0 %v497
        %544 = vmatprep.subr.bf16.mxu0 0
        %545 = vmatpush1.bf16.msra.mxu0 %v498
        %546 = vmatprep.subr.bf16.mxu0 0
        %547 = vmatpush1.bf16.msra.mxu0 %v499
        %548 = vmatprep.mubr.bf16.mxu0 %v361
        %549 = vmatmul.mubr.bf16.gmra.mrb[0].mxu0 %v360
        %v550 = vpop.f32.mrb[0].mxu0
        %v551 = vadd.f32 %v268, %v550
        %v552 = vpop.f32.mrb[0].mxu0
        %v553 = vpop.f32.mrb[0].mxu0
        %v554 = vadd.f32 %v268, %v553
        %v555 = vpop.f32.mrb[0].mxu0
        %556 = vmatprep.mubr.bf16.mxu0 %v363
        %557 = vmatmul.mubr.bf16.gmra.mrb[0].mxu0 %v362
        %v558 = vpop.f32.mrb[0].mxu0
        %v559 = vadd.f32 %v268, %v558
        %v560 = vpop.f32.mrb[0].mxu0
        %v561 = vpop.f32.mrb[0].mxu0
        %v562 = vadd.f32 %v268, %v561
        %v563 = vpop.f32.mrb[0].mxu0
        %564 = vmatprep.mubr.bf16.mxu0 %v365
        %565 = vmatmul.mubr.bf16.gmra.mrb[0].mxu0 %v364
        %v566 = vpop.f32.mrb[0].mxu0
        %v567 = vadd.f32 %v268, %v566
        %v568 = vpop.f32.mrb[0].mxu0
        %v569 = vpop.f32.mrb[0].mxu0
        %v570 = vadd.f32 %v268, %v569
        %v571 = vpop.f32.mrb[0].mxu0
        %572 = vmatprep.mubr.bf16.mxu0 %v367
        %573 = vmatmul.mubr.bf16.gmra.mrb[0].mxu0 %v366
        %v574 = vpop.f32.mrb[0].mxu0
        %v575 = vadd.f32 %v268, %v574
        %v576 = vpop.f32.mrb[0].mxu0
        %v577 = vpop.f32.mrb[0].mxu0
        %v578 = vadd.f32 %v268, %v577
        %v579 = vpop.f32.mrb[0].mxu0
        %580 = vmatprep.mubr.bf16.mxu0 %v369
        %581 = vmatmul.mubr.bf16.gmra.mrb[0].mxu0 %v368
        %v582 = vpop.f32.mrb[0].mxu0
        %v583 = vadd.f32 %v268, %v582
        %v584 = vpop.f32.mrb[0].mxu0
        %v585 = vpop.f32.mrb[0].mxu0
        %v586 = vadd.f32 %v268, %v585
        %v587 = vpop.f32.mrb[0].mxu0
        %588 = vmatprep.mubr.bf16.mxu0 %v371
        %589 = vmatmul.mubr.bf16.gmra.mrb[0].mxu0 %v370
        %v590 = vpop.f32.mrb[0].mxu0
        %v591 = vadd.f32 %v268, %v590
        %v592 = vpop.f32.mrb[0].mxu0
        %v593 = vpop.f32.mrb[0].mxu0
        %v594 = vadd.f32 %v268, %v593
        %v595 = vpop.f32.mrb[0].mxu0
        %596 = vmatprep.mubr.bf16.mxu0 %v373
        %597 = vmatmul.mubr.bf16.gmra.mrb[0].mxu0 %v372
        %v598 = vpop.f32.mrb[0].mxu0
        %v599 = vadd.f32 %v268, %v598
        %v600 = vpop.f32.mrb[0].mxu0
        %v601 = vpop.f32.mrb[0].mxu0
        %v602 = vadd.f32 %v268, %v601
        %v603 = vpop.f32.mrb[0].mxu0
        %604 = vmatprep.mubr.bf16.mxu0 %v375
        %605 = vmatmul.mubr.bf16.gmra.mrb[0].mxu0 %v374
        %v606 = vpop.f32.mrb[0].mxu0
        %v607 = vadd.f32 %v268, %v606
        %v608 = vpop.f32.mrb[0].mxu0
        %v609 = vpop.f32.mrb[0].mxu0
        %v610 = vadd.f32 %v268, %v609
        %v611 = vpop.f32.mrb[0].mxu0
        %612 = vmatprep.mubr.bf16.mxu0 %v377
        %613 = vmatmul.mubr.bf16.gmra.mrb[0].mxu0 %v376
        %v614 = vpop.f32.mrb[0].mxu0
        %v615 = vadd.f32 %v268, %v614
        %v616 = vpop.f32.mrb[0].mxu0
        %v617 = vpop.f32.mrb[0].mxu0
        %v618 = vadd.f32 %v268, %v617
        %v619 = vpop.f32.mrb[0].mxu0
        %620 = vmatprep.mubr.bf16.mxu0 %v379
        %621 = vmatmul.mubr.bf16.gmra.mrb[0].mxu0 %v378
        %v622 = vpop.f32.mrb[0].mxu0
        %v623 = vadd.f32 %v268, %v622
        %v624 = vpop.f32.mrb[0].mxu0
        %v625 = vpop.f32.mrb[0].mxu0
        %v626 = vadd.f32 %v268, %v625
        %v627 = vpop.f32.mrb[0].mxu0
        %628 = vmatprep.mubr.bf16.mxu0 %v381
        %629 = vmatmul.mubr.bf16.gmra.mrb[0].mxu0 %v380
        %v630 = vpop.f32.mrb[0].mxu0
        %v631 = vadd.f32 %v268, %v630
        %v632 = vpop.f32.mrb[0].mxu0
        %v633 = vpop.f32.mrb[0].mxu0
        %v634 = vadd.f32 %v268, %v633
        %v635 = vpop.f32.mrb[0].mxu0
        %636 = vmatprep.mubr.bf16.mxu0 %v383
        %637 = vmatmul.mubr.bf16.gmra.mrb[0].mxu0 %v382
        %v638 = vpop.f32.mrb[0].mxu0
        %v639 = vadd.f32 %v268, %v638
        %v640 = vpop.f32.mrb[0].mxu0
        %v641 = vpop.f32.mrb[0].mxu0
        %v642 = vadd.f32 %v268, %v641
        %v643 = vpop.f32.mrb[0].mxu0
        %644 = vmatprep.mubr.bf16.mxu0 %v385
        %645 = vmatmul.mubr.bf16.gmra.mrb[0].mxu0 %v384
        %v646 = vpop.f32.mrb[0].mxu0
        %v647 = vadd.f32 %v268, %v646
        %v648 = vpop.f32.mrb[0].mxu0
        %v649 = vpop.f32.mrb[0].mxu0
        %v650 = vadd.f32 %v268, %v649
        %v651 = vpop.f32.mrb[0].mxu0
        %652 = vmatprep.mubr.bf16.mxu0 %v387
        %653 = vmatmul.mubr.bf16.gmra.mrb[0].mxu0 %v386
        %v654 = vpop.f32.mrb[0].mxu0
        %v655 = vadd.f32 %v268, %v654
        %v656 = vpop.f32.mrb[0].mxu0
        %v657 = vpop.f32.mrb[0].mxu0
        %v658 = vadd.f32 %v268, %v657
        %v659 = vpop.f32.mrb[0].mxu0
        %660 = vmatprep.mubr.bf16.mxu0 %v389
        %661 = vmatmul.mubr.bf16.gmra.mrb[0].mxu0 %v388
        %v662 = vpop.f32.mrb[0].mxu0
        %v663 = vadd.f32 %v268, %v662
        %v664 = vpop.f32.mrb[0].mxu0
        %v665 = vpop.f32.mrb[0].mxu0
        %v666 = vadd.f32 %v268, %v665
        %v667 = vpop.f32.mrb[0].mxu0
        %668 = vdwg.mxu0
        %v669 = vmax.f32 %v551, 0.0
        %v670 = vmax.f32 %v554, 0.0
        %v671 = vmax.f32 %v559, 0.0
        %v672 = vmax.f32 %v562, 0.0
        %v673 = vmax.f32 %v567, 0.0
        %v674 = vmax.f32 %v570, 0.0
        %v675 = vmax.f32 %v575, 0.0
        %v676 = vmax.f32 %v578, 0.0
        %v677 = vmax.f32 %v583, 0.0
        %v678 = vmax.f32 %v586, 0.0
        %v679 = vmax.f32 %v591, 0.0
        %v680 = vmax.f32 %v594, 0.0
        %v681 = vmax.f32 %v599, 0.0
        %v682 = vmax.f32 %v602, 0.0
        %v683 = vmax.f32 %v607, 0.0
        %v684 = vmax.f32 %v610, 0.0
        %v685 = vmax.f32 %v615, 0.0
        %v686 = vmax.f32 %v618, 0.0
        %v687 = vmax.f32 %v623, 0.0
        %v688 = vmax.f32 %v626, 0.0
        %v689 = vmax.f32 %v631, 0.0
        %v690 = vmax.f32 %v634, 0.0
        %v691 = vmax.f32 %v639, 0.0
        %v692 = vmax.f32 %v642, 0.0
        %v693 = vmax.f32 %v647, 0.0
        %v694 = vmax.f32 %v650, 0.0
        %v695 = vmax.f32 %v655, 0.0
        %v696 = vmax.f32 %v658, 0.0
        %v697 = vmax.f32 %v663, 0.0
        %v698 = vmax.f32 %v666, 0.0
        %v699 = vpack.c.bf16 %v670, %v669
        %v700 = vpack.c.bf16 %v672, %v671
        %v701 = vpack.c.bf16 %v674, %v673
        %v702 = vpack.c.bf16 %v676, %v675
        %v703 = vpack.c.bf16 %v678, %v677
        %v704 = vpack.c.bf16 %v680, %v679
        %v705 = vpack.c.bf16 %v682, %v681
        %v706 = vpack.c.bf16 %v684, %v683
        %v707 = vpack.c.bf16 %v686, %v685
        %v708 = vpack.c.bf16 %v688, %v687
        %v709 = vpack.c.bf16 %v690, %v689
        %v710 = vpack.c.bf16 %v692, %v691
        %v711 = vpack.c.bf16 %v694, %v693
        %v712 = vpack.c.bf16 %v696, %v695
        %v713 = vpack.c.bf16 %v698, %v697
        %v729 = vunpack.c.l.b16 %v699
        %v730 = vunpack.c.h.b16 %v699
        %v731 = vunpack.c.l.b16 %v700
        %v732 = vunpack.c.h.b16 %v700
        %v733 = vunpack.c.l.b16 %v701
        %v734 = vunpack.c.h.b16 %v701
        %v735 = vunpack.c.l.b16 %v702
        %v736 = vunpack.c.h.b16 %v702
        %v737 = vunpack.c.l.b16 %v703
        %v738 = vunpack.c.h.b16 %v703
        %v739 = vunpack.c.l.b16 %v704
        %v740 = vunpack.c.h.b16 %v704
        %v741 = vunpack.c.l.b16 %v705
        %v742 = vunpack.c.h.b16 %v705
        %v743 = vunpack.c.l.b16 %v706
        %v744 = vunpack.c.h.b16 %v706
        %v745 = vunpack.c.l.b16 %v707
        %v746 = vunpack.c.h.b16 %v707
        %v747 = vunpack.c.l.b16 %v708
        %v748 = vunpack.c.h.b16 %v708
        %v749 = vunpack.c.l.b16 %v709
        %v750 = vunpack.c.h.b16 %v709
        %v751 = vunpack.c.l.b16 %v710
        %v752 = vunpack.c.h.b16 %v710
        %v753 = vunpack.c.l.b16 %v711
        %v754 = vunpack.c.h.b16 %v711
        %v755 = vunpack.c.l.b16 %v712
        %v756 = vunpack.c.h.b16 %v712
        %v757 = vunpack.c.l.b16 %v713
        %v758 = vunpack.c.h.b16 %v713
        %v759 = vpack.c.b16 %v729, %v729
        %v760 = vpack.c.b16 %v730, %v730
        %v761 = vpack.c.b16 %v731, %v731
        %v762 = vpack.c.b16 %v732, %v732
        %v763 = vpack.c.b16 %v733, %v733
        %v764 = vpack.c.b16 %v734, %v734
        %v765 = vpack.c.b16 %v735, %v735
        %v766 = vpack.c.b16 %v736, %v736
        %v767 = vpack.c.b16 %v737, %v737
        %v768 = vpack.c.b16 %v738, %v738
        %v769 = vpack.c.b16 %v739, %v739
        %v770 = vpack.c.b16 %v740, %v740
        %v771 = vpack.c.b16 %v741, %v741
        %v772 = vpack.c.b16 %v742, %v742
        %v773 = vpack.c.b16 %v743, %v743
        %v774 = vpack.c.b16 %v744, %v744
        %v775 = vpack.c.b16 %v745, %v745
        %v776 = vpack.c.b16 %v746, %v746
        %v777 = vpack.c.b16 %v747, %v747
        %v778 = vpack.c.b16 %v748, %v748
        %v779 = vpack.c.b16 %v749, %v749
        %v780 = vpack.c.b16 %v750, %v750
        %v781 = vpack.c.b16 %v751, %v751
        %v782 = vpack.c.b16 %v752, %v752
        %v783 = vpack.c.b16 %v753, %v753
        %v784 = vpack.c.b16 %v754, %v754
        %v785 = vpack.c.b16 %v755, %v755
        %v786 = vpack.c.b16 %v756, %v756
        %v787 = vpack.c.b16 %v757, %v757
        %v788 = vpack.c.b16 %v758, %v758
        %vm819 = vcmask 257024
        %820 = vst.msk [vmem:[%s177] sm:$0xf] %vm819, %v759
        %821 = vst.msk [vmem:[%s177 + $0x4] sm:$0xf] %vm819, %v760
        %822 = vst.msk [vmem:[%s177 + $0x8] sm:$0xf] %vm819, %v761
        %823 = vst.msk [vmem:[%s177 + $0xc] sm:$0xf] %vm819, %v762
        %824 = vst.msk [vmem:[%s177 + $0x10] sm:$0xf] %vm819, %v763
        %825 = vst.msk [vmem:[%s177 + $0x14] sm:$0xf] %vm819, %v764
        %826 = vst.msk [vmem:[%s177 + $0x18] sm:$0xf] %vm819, %v765
        %827 = vst.msk [vmem:[%s177 + $0x1c] sm:$0xf] %vm819, %v766
        %828 = vst.msk [vmem:[%s177 + $0x20] sm:$0xf] %vm819, %v767
        %829 = vst.msk [vmem:[%s177 + $0x24] sm:$0xf] %vm819, %v768
        %830 = vst.msk [vmem:[%s177 + $0x28] sm:$0xf] %vm819, %v769
        %831 = vst.msk [vmem:[%s177 + $0x2c] sm:$0xf] %vm819, %v770
        %832 = vst.msk [vmem:[%s177 + $0x30] sm:$0xf] %vm819, %v771
        %833 = vst.msk [vmem:[%s177 + $0x34] sm:$0xf] %vm819, %v772
        %834 = vst.msk [vmem:[%s177 + $0x38] sm:$0xf] %vm819, %v773
        %835 = vst.msk [vmem:[%s177 + $0x3c] sm:$0xf] %vm819, %v774
        %836 = vst.msk [vmem:[%s177 + $0x40] sm:$0xf] %vm819, %v775
        %837 = vst.msk [vmem:[%s177 + $0x44] sm:$0xf] %vm819, %v776
        %838 = vst.msk [vmem:[%s177 + $0x48] sm:$0xf] %vm819, %v777
        %839 = vst.msk [vmem:[%s177 + $0x4c] sm:$0xf] %vm819, %v778
        %840 = vst.msk [vmem:[%s177 + $0x50] sm:$0xf] %vm819, %v779
        %841 = vst.msk [vmem:[%s177 + $0x54] sm:$0xf] %vm819, %v780
        %842 = vst.msk [vmem:[%s177 + $0x58] sm:$0xf] %vm819, %v781
        %843 = vst.msk [vmem:[%s177 + $0x5c] sm:$0xf] %vm819, %v782
        %844 = vst.msk [vmem:[%s177 + $0x60] sm:$0xf] %vm819, %v783
        %845 = vst.msk [vmem:[%s177 + $0x64] sm:$0xf] %vm819, %v784
        %846 = vst.msk [vmem:[%s177 + $0x68] sm:$0xf] %vm819, %v785
        %847 = vst.msk [vmem:[%s177 + $0x6c] sm:$0xf] %vm819, %v786
        %848 = vst.msk [vmem:[%s177 + $0x70] sm:$0xf] %vm819, %v787
        %849 = vst.msk [vmem:[%s177 + $0x74] sm:$0xf] %vm819, %v788
        %s850 = sand.u32 %s90, 1
        %s851 = sand.u32 %s90, 1
        %s852 = smul.addr %s851, 120
        %s853 = scalar_lea.vmem [#allocation2], %s852
        // Predicated region
        $region33: #{cnn_q_forward.4} parent=31 // pred_check
          %p854 = pneg %p100
        $region34: #{cnn_q_forward.4} parent=31 // pred_check_branch
          %856 = sbr.rel (%p854) target = $region36
        $region35: #{cnn_q_forward.4} parent=31 // pred_region
          %s857 = smul.u32 30, %s14
          %s858 = ssub.s32 57, %s857
          %p859 = scmp.lt.s32.totalorder %s858, 30
          %s860 = scalar_select %p859, %s858, 30
          %s861 = smul.u32 64, %s860
          %p862 = scmp.ne.s32.totalorder 0, %s861
          %s863 = smul.addr %s857, 4
          %s864 = scalar_lea.vmem %s3, %s863
          // Predicated region
          $region37: #{cnn_q_forward.4} parent=35 // pred_check
            %p865 = pneg %p862
          $region38: #{cnn_q_forward.4} parent=35 // pred_check_branch
            %867 = sbr.rel (%p865) target = $region40
          $region39: #{cnn_q_forward.4} parent=35 // pred_region
            // Predicated region
            $region41: #{cnn_q_forward.4} parent=39 // pred_check
              _
            $region42: #{cnn_q_forward.4} parent=39 // pred_check_branch
              %869 = sbr.rel target = $region44
            $region43: #{cnn_q_forward.4} parent=39 // pred_region
              // Predicated region
              $region63: #{cnn_q_forward.4} parent=43 // pred_check
                _
              $region64: #{cnn_q_forward.4} parent=43 // pred_check_branch
                %977 = sbr.rel (0) target = $region66
              $region65: #{cnn_q_forward.4} parent=43 // pred_region
                %s979 = sdiv.u32.pop %s860, 30
                %s980 = srem.u32.pop %s860, 30
                // While loop
                $region67: #{cnn_q_forward.4} parent=65 // loop_pre_header
                  _
                $region68: #{cnn_q_forward.4} parent=65 // loop_header
                  %s982 = sphi 0, %s984
                  %p983 = scmp.ge.s32.totalorder %s982, %s979
                  %s987 = sphi 0, %s1052
                  %s988 = sphi %s853, %s1055
                  %s989 = sphi %s864, %s1056
                $region69: #{cnn_q_forward.4} parent=65 // loop_header_branch
                  %986 = sbr.rel (%p983) target = $region73
                $region70: #{cnn_q_forward.4} parent=65 // loop_body
                  %v990 = vld [vmem:[%s988] sm:$0xf]
                  %991 = vst [vmem:[%s989] sm:$0xf] %v990
                  %v992 = vld [vmem:[%s988 + $0x4] sm:$0xf]
                  %993 = vst [vmem:[%s989 + $0x4] sm:$0xf] %v992
                  %v994 = vld [vmem:[%s988 + $0x8] sm:$0xf]
                  %995 = vst [vmem:[%s989 + $0x8] sm:$0xf] %v994
                  %v996 = vld [vmem:[%s988 + $0xc] sm:$0xf]
                  %997 = vst [vmem:[%s989 + $0xc] sm:$0xf] %v996
                  %v998 = vld [vmem:[%s988 + $0x10] sm:$0xf]
                  %999 = vst [vmem:[%s989 + $0x10] sm:$0xf] %v998
                  %v1000 = vld [vmem:[%s988 + $0x14] sm:$0xf]
                  %1001 = vst [vmem:[%s989 + $0x14] sm:$0xf] %v1000
                  %v1002 = vld [vmem:[%s988 + $0x18] sm:$0xf]
                  %1003 = vst [vmem:[%s989 + $0x18] sm:$0xf] %v1002
                  %v1004 = vld [vmem:[%s988 + $0x1c] sm:$0xf]
                  %1005 = vst [vmem:[%s989 + $0x1c] sm:$0xf] %v1004
                  %v1006 = vld [vmem:[%s988 + $0x20] sm:$0xf]
                  %1007 = vst [vmem:[%s989 + $0x20] sm:$0xf] %v1006
                  %v1008 = vld [vmem:[%s988 + $0x24] sm:$0xf]
                  %1009 = vst [vmem:[%s989 + $0x24] sm:$0xf] %v1008
                  %v1010 = vld [vmem:[%s988 + $0x28] sm:$0xf]
                  %1011 = vst [vmem:[%s989 + $0x28] sm:$0xf] %v1010
                  %v1012 = vld [vmem:[%s988 + $0x2c] sm:$0xf]
                  %1013 = vst [vmem:[%s989 + $0x2c] sm:$0xf] %v1012
                  %v1014 = vld [vmem:[%s988 + $0x30] sm:$0xf]
                  %1015 = vst [vmem:[%s989 + $0x30] sm:$0xf] %v1014
                  %v1016 = vld [vmem:[%s988 + $0x34] sm:$0xf]
                  %1017 = vst [vmem:[%s989 + $0x34] sm:$0xf] %v1016
                  %v1018 = vld [vmem:[%s988 + $0x38] sm:$0xf]
                  %1019 = vst [vmem:[%s989 + $0x38] sm:$0xf] %v1018
                  %v1020 = vld [vmem:[%s988 + $0x3c] sm:$0xf]
                  %1021 = vst [vmem:[%s989 + $0x3c] sm:$0xf] %v1020
                  %v1022 = vld [vmem:[%s988 + $0x40] sm:$0xf]
                  %1023 = vst [vmem:[%s989 + $0x40] sm:$0xf] %v1022
                  %v1024 = vld [vmem:[%s988 + $0x44] sm:$0xf]
                  %1025 = vst [vmem:[%s989 + $0x44] sm:$0xf] %v1024
                  %v1026 = vld [vmem:[%s988 + $0x48] sm:$0xf]
                  %1027 = vst [vmem:[%s989 + $0x48] sm:$0xf] %v1026
                  %v1028 = vld [vmem:[%s988 + $0x4c] sm:$0xf]
                  %1029 = vst [vmem:[%s989 + $0x4c] sm:$0xf] %v1028
                  %v1030 = vld [vmem:[%s988 + $0x50] sm:$0xf]
                  %1031 = vst [vmem:[%s989 + $0x50] sm:$0xf] %v1030
                  %v1032 = vld [vmem:[%s988 + $0x54] sm:$0xf]
                  %1033 = vst [vmem:[%s989 + $0x54] sm:$0xf] %v1032
                  %v1034 = vld [vmem:[%s988 + $0x58] sm:$0xf]
                  %1035 = vst [vmem:[%s989 + $0x58] sm:$0xf] %v1034
                  %v1036 = vld [vmem:[%s988 + $0x5c] sm:$0xf]
                  %1037 = vst [vmem:[%s989 + $0x5c] sm:$0xf] %v1036
                  %v1038 = vld [vmem:[%s988 + $0x60] sm:$0xf]
                  %1039 = vst [vmem:[%s989 + $0x60] sm:$0xf] %v1038
                  %v1040 = vld [vmem:[%s988 + $0x64] sm:$0xf]
                  %1041 = vst [vmem:[%s989 + $0x64] sm:$0xf] %v1040
                  %v1042 = vld [vmem:[%s988 + $0x68] sm:$0xf]
                  %1043 = vst [vmem:[%s989 + $0x68] sm:$0xf] %v1042
                  %v1044 = vld [vmem:[%s988 + $0x6c] sm:$0xf]
                  %1045 = vst [vmem:[%s989 + $0x6c] sm:$0xf] %v1044
                  %v1046 = vld [vmem:[%s988 + $0x70] sm:$0xf]
                  %1047 = vst [vmem:[%s989 + $0x70] sm:$0xf] %v1046
                  %v1048 = vld [vmem:[%s988 + $0x74] sm:$0xf]
                  %1049 = vst [vmem:[%s989 + $0x74] sm:$0xf] %v1048
                  %s1050 = sadd.s32 1, %s987
                  %p1051 = scmp.ge.s32.totalorder %s1050, %s979
                  %s1052 = scalar_select %p1051, 0, %s1050
                  %s1053 = smul.u32 %s1052, 120
                  %s1054 = smul.u32 %s1052, 120
                  %s1055 = scalar_lea.vmem %s853, %s1053 [#allocation2]
                  %s1056 = scalar_lea.vmem %s864, %s1054
                $region71: #{cnn_q_forward.4} parent=65 // loop_footer
                  %s984 = sadd.s32 %s982, 1
                $region72: #{cnn_q_forward.4} parent=65 // loop_footer_branch
                  %981 = sbr.rel target = $region68
                $region73: #{cnn_q_forward.4} parent=65 // loop_exit
                  _
                %s1057 = sdiv.u32.pop %s860, 30
                %s1058 = srem.u32.pop %s860, 30
                %s1059 = smul.u32 %s1057, 30
                %s1060 = smul.u32 4, %s1059
                %s1061 = scalar_lea.vmem %s853, %s1060 [#allocation2]
                %s1062 = smul.u32 4, %s1059
                %s1063 = scalar_lea.vmem %s864, %s1062
                // While loop
                $region74: #{cnn_q_forward.4} parent=65 // loop_pre_header
                  _
                $region75: #{cnn_q_forward.4} parent=65 // loop_header
                  %s1065 = sphi 0, %s1067
                  %p1066 = scmp.ge.s32.totalorder %s1065, %s1058
                  %s1070 = sphi 0, %s1077
                  %s1071 = sphi %s1061, %s1080
                  %s1072 = sphi %s1063, %s1081
                $region76: #{cnn_q_forward.4} parent=65 // loop_header_branch
                  %1069 = sbr.rel (%p1066) target = $region80
                $region77: #{cnn_q_forward.4} parent=65 // loop_body
                  %v1073 = vld [vmem:[%s1071] sm:$0xf]
                  %1074 = vst [vmem:[%s1072] sm:$0xf] %v1073
                  %s1075 = sadd.s32 1, %s1070
                  %p1076 = scmp.ge.s32.totalorder %s1075, %s1058
                  %s1077 = scalar_select %p1076, 0, %s1075
                  %s1078 = smul.u32 %s1077, 4
                  %s1079 = smul.u32 %s1077, 4
                  %s1080 = scalar_lea.vmem %s1061, %s1078 [#allocation2]
                  %s1081 = scalar_lea.vmem %s1063, %s1079
                $region78: #{cnn_q_forward.4} parent=65 // loop_footer
                  %s1067 = sadd.s32 %s1065, 1
                $region79: #{cnn_q_forward.4} parent=65 // loop_footer_branch
                  %1064 = sbr.rel target = $region75
                $region80: #{cnn_q_forward.4} parent=65 // loop_exit
                  _
              $region66: #{cnn_q_forward.4} parent=43 // pred_fallthru
                _
            $region44: #{cnn_q_forward.4} parent=39 // pred_fallthru
              _
            // Predicated region
            $region45: #{cnn_q_forward.4} parent=39 // pred_check
              _
            $region46: #{cnn_q_forward.4} parent=39 // pred_check_branch
              %871 = sbr.rel (0) target = $region48
            $region47: #{cnn_q_forward.4} parent=39 // pred_region
              %s873 = sdiv.u32.pop %s860, 30
              %s874 = srem.u32.pop %s860, 30
              // While loop
              $region49: #{cnn_q_forward.4} parent=47 // loop_pre_header
                _
              $region50: #{cnn_q_forward.4} parent=47 // loop_header
                %s876 = sphi 0, %s878
                %p877 = scmp.ge.s32.totalorder %s876, %s873
                %s881 = sphi 0, %s946
                %s882 = sphi %s853, %s949
                %s883 = sphi %s864, %s950
              $region51: #{cnn_q_forward.4} parent=47 // loop_header_branch
                %880 = sbr.rel (%p877) target = $region55
              $region52: #{cnn_q_forward.4} parent=47 // loop_body
                %v884 = vld [vmem:[%s882] sm:$0xf]
                %885 = vst [vmem:[%s883] sm:$0xf] %v884
                %v886 = vld [vmem:[%s882 + $0x4] sm:$0xf]
                %887 = vst [vmem:[%s883 + $0x4] sm:$0xf] %v886
                %v888 = vld [vmem:[%s882 + $0x8] sm:$0xf]
                %889 = vst [vmem:[%s883 + $0x8] sm:$0xf] %v888
                %v890 = vld [vmem:[%s882 + $0xc] sm:$0xf]
                %891 = vst [vmem:[%s883 + $0xc] sm:$0xf] %v890
                %v892 = vld [vmem:[%s882 + $0x10] sm:$0xf]
                %893 = vst [vmem:[%s883 + $0x10] sm:$0xf] %v892
                %v894 = vld [vmem:[%s882 + $0x14] sm:$0xf]
                %895 = vst [vmem:[%s883 + $0x14] sm:$0xf] %v894
                %v896 = vld [vmem:[%s882 + $0x18] sm:$0xf]
                %897 = vst [vmem:[%s883 + $0x18] sm:$0xf] %v896
                %v898 = vld [vmem:[%s882 + $0x1c] sm:$0xf]
                %899 = vst [vmem:[%s883 + $0x1c] sm:$0xf] %v898
                %v900 = vld [vmem:[%s882 + $0x20] sm:$0xf]
                %901 = vst [vmem:[%s883 + $0x20] sm:$0xf] %v900
                %v902 = vld [vmem:[%s882 + $0x24] sm:$0xf]
                %903 = vst [vmem:[%s883 + $0x24] sm:$0xf] %v902
                %v904 = vld [vmem:[%s882 + $0x28] sm:$0xf]
                %905 = vst [vmem:[%s883 + $0x28] sm:$0xf] %v904
                %v906 = vld [vmem:[%s882 + $0x2c] sm:$0xf]
                %907 = vst [vmem:[%s883 + $0x2c] sm:$0xf] %v906
                %v908 = vld [vmem:[%s882 + $0x30] sm:$0xf]
                %909 = vst [vmem:[%s883 + $0x30] sm:$0xf] %v908
                %v910 = vld [vmem:[%s882 + $0x34] sm:$0xf]
                %911 = vst [vmem:[%s883 + $0x34] sm:$0xf] %v910
                %v912 = vld [vmem:[%s882 + $0x38] sm:$0xf]
                %913 = vst [vmem:[%s883 + $0x38] sm:$0xf] %v912
                %v914 = vld [vmem:[%s882 + $0x3c] sm:$0xf]
                %915 = vst [vmem:[%s883 + $0x3c] sm:$0xf] %v914
                %v916 = vld [vmem:[%s882 + $0x40] sm:$0xf]
                %917 = vst [vmem:[%s883 + $0x40] sm:$0xf] %v916
                %v918 = vld [vmem:[%s882 + $0x44] sm:$0xf]
                %919 = vst [vmem:[%s883 + $0x44] sm:$0xf] %v918
                %v920 = vld [vmem:[%s882 + $0x48] sm:$0xf]
                %921 = vst [vmem:[%s883 + $0x48] sm:$0xf] %v920
                %v922 = vld [vmem:[%s882 + $0x4c] sm:$0xf]
                %923 = vst [vmem:[%s883 + $0x4c] sm:$0xf] %v922
                %v924 = vld [vmem:[%s882 + $0x50] sm:$0xf]
                %925 = vst [vmem:[%s883 + $0x50] sm:$0xf] %v924
                %v926 = vld [vmem:[%s882 + $0x54] sm:$0xf]
                %927 = vst [vmem:[%s883 + $0x54] sm:$0xf] %v926
                %v928 = vld [vmem:[%s882 + $0x58] sm:$0xf]
                %929 = vst [vmem:[%s883 + $0x58] sm:$0xf] %v928
                %v930 = vld [vmem:[%s882 + $0x5c] sm:$0xf]
                %931 = vst [vmem:[%s883 + $0x5c] sm:$0xf] %v930
                %v932 = vld [vmem:[%s882 + $0x60] sm:$0xf]
                %933 = vst [vmem:[%s883 + $0x60] sm:$0xf] %v932
                %v934 = vld [vmem:[%s882 + $0x64] sm:$0xf]
                %935 = vst [vmem:[%s883 + $0x64] sm:$0xf] %v934
                %v936 = vld [vmem:[%s882 + $0x68] sm:$0xf]
                %937 = vst [vmem:[%s883 + $0x68] sm:$0xf] %v936
                %v938 = vld [vmem:[%s882 + $0x6c] sm:$0xf]
                %939 = vst [vmem:[%s883 + $0x6c] sm:$0xf] %v938
                %v940 = vld [vmem:[%s882 + $0x70] sm:$0xf]
                %941 = vst [vmem:[%s883 + $0x70] sm:$0xf] %v940
                %v942 = vld [vmem:[%s882 + $0x74] sm:$0xf]
                %943 = vst [vmem:[%s883 + $0x74] sm:$0xf] %v942
                %s944 = sadd.s32 1, %s881
                %p945 = scmp.ge.s32.totalorder %s944, %s873
                %s946 = scalar_select %p945, 0, %s944
                %s947 = smul.u32 %s946, 120
                %s948 = smul.u32 %s946, 120
                %s949 = scalar_lea.vmem %s853, %s947 [#allocation2]
                %s950 = scalar_lea.vmem %s864, %s948
              $region53: #{cnn_q_forward.4} parent=47 // loop_footer
                %s878 = sadd.s32 %s876, 1
              $region54: #{cnn_q_forward.4} parent=47 // loop_footer_branch
                %875 = sbr.rel target = $region50
              $region55: #{cnn_q_forward.4} parent=47 // loop_exit
                _
              %s951 = sdiv.u32.pop %s860, 30
              %s952 = srem.u32.pop %s860, 30
              %s953 = smul.u32 %s951, 30
              %s954 = smul.u32 4, %s953
              %s955 = scalar_lea.vmem %s853, %s954 [#allocation2]
              %s956 = smul.u32 4, %s953
              %s957 = scalar_lea.vmem %s864, %s956
              // While loop
              $region56: #{cnn_q_forward.4} parent=47 // loop_pre_header
                _
              $region57: #{cnn_q_forward.4} parent=47 // loop_header
                %s959 = sphi 0, %s961
                %p960 = scmp.ge.s32.totalorder %s959, %s952
                %s964 = sphi 0, %s971
                %s965 = sphi %s955, %s974
                %s966 = sphi %s957, %s975
              $region58: #{cnn_q_forward.4} parent=47 // loop_header_branch
                %963 = sbr.rel (%p960) target = $region62
              $region59: #{cnn_q_forward.4} parent=47 // loop_body
                %v967 = vld [vmem:[%s965] sm:$0xf]
                %968 = vst [vmem:[%s966] sm:$0xf] %v967
                %s969 = sadd.s32 1, %s964
                %p970 = scmp.ge.s32.totalorder %s969, %s952
                %s971 = scalar_select %p970, 0, %s969
                %s972 = smul.u32 %s971, 4
                %s973 = smul.u32 %s971, 4
                %s974 = scalar_lea.vmem %s955, %s972 [#allocation2]
                %s975 = scalar_lea.vmem %s957, %s973
              $region60: #{cnn_q_forward.4} parent=47 // loop_footer
                %s961 = sadd.s32 %s959, 1
              $region61: #{cnn_q_forward.4} parent=47 // loop_footer_branch
                %958 = sbr.rel target = $region57
              $region62: #{cnn_q_forward.4} parent=47 // loop_exit
                _
            $region48: #{cnn_q_forward.4} parent=39 // pred_fallthru
              _
          $region40: #{cnn_q_forward.4} parent=35 // pred_fallthru
            _
          %1082 = vnop
        $region36: #{cnn_q_forward.4} parent=31 // pred_fallthru
          _
      $region32: #{cnn_q_forward.4} parent=5 // pred_fallthru
        _
      %p1083 = scmp.le.s32.totalorder 2, %s9
      // Predicated region
      $region81: #{cnn_q_forward.4} parent=5 // pred_check
        %p1084 = pneg %p1083
      $region82: #{cnn_q_forward.4} parent=5 // pred_check_branch
        %1086 = sbr.rel (%p1084) target = $region84
      $region83: #{cnn_q_forward.4} parent=5 // pred_region
        %s1087 = ssub.s32 %s9, 2
        // Predicated region
        $region85: #{cnn_q_forward.4} parent=83 // pred_check
          %p1088 = pneg %p106
        $region86: #{cnn_q_forward.4} parent=83 // pred_check_branch
          %1090 = sbr.rel (%p1088) target = $region88
        $region87: #{cnn_q_forward.4} parent=83 // pred_region
          %s1091 = sand.u32 %s91, 1
          %s1092 = sand.u32 %s91, 1
          %s1093 = smul.addr %s1092, 120
          %s1094 = scalar_lea.vmem [#allocation2], %s1093
        $region88: #{cnn_q_forward.4} parent=83 // pred_fallthru
          _
      $region84: #{cnn_q_forward.4} parent=5 // pred_fallthru
        _
    $region6: #{cnn_q_forward.4} parent=1 // loop_footer
      %s13 = sadd.s32 1, %s9
    $region7: #{cnn_q_forward.4} parent=1 // loop_footer_branch
      %8 = sbr.rel target = $region3
    $region8: #{cnn_q_forward.4} parent=1 // loop_exit
      _

// kernel: cnn_q_forward.5
$region0: #{cnn_q_forward.5}
  #allocation0 [shape = 'u32[]', space=smem, size = 0x4, offset = 0x4, fixed_abs, tag = 'smem constant byte address 0x4 - core index']
  #allocation1 [shape = 'u32[144,128]{1,0:T(1,128)}', space=vmem, size = 0x12000, scoped, tag = 'internal scratch']
  %s0 = inlined_call_operand.vmem [shape: bf16[72,512], index: 0, kind: input, shape index: {}]
  %s1 = inlined_call_operand.vmem [shape: bf16[512,64], index: 1, kind: input, shape index: {}]
  %s2 = inlined_call_operand.vmem [shape: f32[1,64], index: 2, kind: input, shape index: {}]
  %s3 = inlined_call_operand.vmem [shape: bf16[72,64], index: 3, kind: output, shape index: {}]
  %s4 = sld [smem:[#allocation0]]
  $region89: #{cnn_q_forward.5} parent=0
    _
  %s6 = ssub.s32 1, %s4
  %s7 = scalar_select 0, %s6, %s4
  $region1: #{cnn_q_forward.5} parent=0
    #allocation2 [shape = 'u8[24576]{0}', space=vmem, size = 0x6000, scoped, tag = 'output window, operand 0']
    loop: start=0, step=1, limit=4
    $region2: #{cnn_q_forward.5} parent=1 // loop_pre_header
      _
    $region3: #{cnn_q_forward.5} parent=1 // loop_header
      %s9 = sphi 0, %s13
      %p10 = scmp.ge.s32.totalorder %s9, 4
      %s19 = sphi 0, %s21
      %s22 = sphi 0, %s19
      %s23 = sphi 0, %s22
      %s39 = sphi 0, %s23
      %s43 = sphi 0, %s43
      %s45 = sphi 0, %s43
      %s46 = sphi 0, %s45
      %s60 = sphi 0, %s46
      %s64 = sphi 0, %s64
      %s66 = sphi 0, %s64
      %s67 = sphi 0, %s66
      %s81 = sphi 0, %s67
      %s87 = sphi 0, %s89
      %s90 = sphi 0, %s87
      %s91 = sphi 0, %s90
      %s107 = sphi 0, %s91
    $region4: #{cnn_q_forward.5} parent=1 // loop_header_branch
      %12 = sbr.rel (%p10) target = $region8
    $region5: #{cnn_q_forward.5} parent=1 // loop_body
      %s14 = ssub.s32 %s9, 1
      %s15 = ssub.s32 %s9, 2
      %s16 = sadd.s32 %s9, 1
      %s17 = ssub.s32 %s9, %s16
      %p18 = scmp.eq.s32.totalorder %s17, 0
      %s20 = sadd.s32 %s19, 1
      %s21 = scalar_select %p18, %s19, %s20
      %p24 = pneg %p18
      %p25 = scmp.eq.s32.totalorder %s9, 1
      %p26 = por %p24, %p25
      %p27 = scmp.ne.s32.totalorder %s19, %s22
      %p28 = scmp.eq.s32.totalorder %s9, 0
      %p29 = por %p27, %p28
      %p30 = scmp.ne.s32.totalorder %s19, %s22
      %p31 = scmp.eq.s32.totalorder %s14, 1
      %p32 = por %p30, %p31
      %p33 = scmp.ne.s32.totalorder %s22, %s23
      %p34 = scmp.eq.s32.totalorder %s14, 0
      %p35 = por %p33, %p34
      %p36 = scmp.ne.s32.totalorder %s22, %s23
      %p37 = scmp.eq.s32.totalorder %s15, 1
      %p38 = por %p36, %p37
      %p40 = scmp.ne.s32.totalorder %s23, %s39
      %p41 = scmp.eq.s32.totalorder %s15, 0
      %p42 = por %p40, %p41
      %s44 = sadd.s32 %s43, 1
      %p47 = scmp.eq.s32.totalorder %s9, 1
      %p48 = scmp.ne.s32.totalorder %s43, %s45
      %p49 = scmp.eq.s32.totalorder %s9, 0
      %p50 = por %p48, %p49
      %p51 = scmp.ne.s32.totalorder %s43, %s45
      %p52 = scmp.eq.s32.totalorder %s14, 1
      %p53 = por %p51, %p52
      %p54 = scmp.ne.s32.totalorder %s45, %s46
      %p55 = scmp.eq.s32.totalorder %s14, 0
      %p56 = por %p54, %p55
      %p57 = scmp.ne.s32.totalorder %s45, %s46
      %p58 = scmp.eq.s32.totalorder %s15, 1
      %p59 = por %p57, %p58
      %p61 = scmp.ne.s32.totalorder %s46, %s60
      %p62 = scmp.eq.s32.totalorder %s15, 0
      %p63 = por %p61, %p62
      %s65 = sadd.s32 %s64, 1
      %p68 = scmp.eq.s32.totalorder %s9, 1
      %p69 = scmp.ne.s32.totalorder %s64, %s66
      %p70 = scmp.eq.s32.totalorder %s9, 0
      %p71 = por %p69, %p70
      %p72 = scmp.ne.s32.totalorder %s64, %s66
      %p73 = scmp.eq.s32.totalorder %s14, 1
      %p74 = por %p72, %p73
      %p75 = scmp.ne.s32.totalorder %s66, %s67
      %p76 = scmp.eq.s32.totalorder %s14, 0
      %p77 = por %p75, %p76
      %p78 = scmp.ne.s32.totalorder %s66, %s67
      %p79 = scmp.eq.s32.totalorder %s15, 1
      %p80 = por %p78, %p79
      %p82 = scmp.ne.s32.totalorder %s67, %s81
      %p83 = scmp.eq.s32.totalorder %s15, 0
      %p84 = por %p82, %p83
      %s85 = ssub.s32 %s9, %s16
      %p86 = scmp.eq.s32.totalorder %s85, 0
      %s88 = sadd.s32 %s87, 1
      %s89 = scalar_select %p86, %s87, %s88
      %p92 = pneg %p86
      %p93 = scmp.eq.s32.totalorder %s9, 1
      %p94 = por %p92, %p93
      %p95 = scmp.ne.s32.totalorder %s87, %s90
      %p96 = scmp.eq.s32.totalorder %s9, 0
      %p97 = por %p95, %p96
      %p98 = scmp.ne.s32.totalorder %s87, %s90
      %p99 = scmp.eq.s32.totalorder %s14, 1
      %p100 = por %p98, %p99
      %p101 = scmp.ne.s32.totalorder %s90, %s91
      %p102 = scmp.eq.s32.totalorder %s14, 0
      %p103 = por %p101, %p102
      %p104 = scmp.ne.s32.totalorder %s90, %s91
      %p105 = scmp.eq.s32.totalorder %s15, 1
      %p106 = por %p104, %p105
      %p108 = scmp.ne.s32.totalorder %s91, %s107
      %p109 = scmp.eq.s32.totalorder %s15, 0
      %p110 = por %p108, %p109
      %p111 = scmp.le.s32.totalorder 1, %s9
      %p112 = scmp.lt.s32.totalorder %s9, 3
      %p113 = pnand %p111, %p112
      %p114 = pneg %p113
      // Predicated region
      $region9: #{cnn_q_forward.5} parent=5 // pred_check
        _
      $region10: #{cnn_q_forward.5} parent=5 // pred_check_branch
        %116 = sbr.rel (%p113) target = $region12
      $region11: #{cnn_q_forward.5} parent=5 // pred_region
        %s117 = ssub.s32 %s9, 1
        // Predicated region
        $region13: #{cnn_q_forward.5} parent=11 // pred_check
          %p118 = pneg %p56
        $region14: #{cnn_q_forward.5} parent=11 // pred_check_branch
          %120 = sbr.rel (%p118) target = $region16
        $region15: #{cnn_q_forward.5} parent=11 // pred_region
          _
        $region16: #{cnn_q_forward.5} parent=11 // pred_fallthru
          _
        // Predicated region
        $region17: #{cnn_q_forward.5} parent=11 // pred_check
          %p121 = pneg %p77
        $region18: #{cnn_q_forward.5} parent=11 // pred_check_branch
          %123 = sbr.rel (%p121) target = $region20
        $region19: #{cnn_q_forward.5} parent=11 // pred_region
          _
        $region20: #{cnn_q_forward.5} parent=11 // pred_fallthru
          _
      $region12: #{cnn_q_forward.5} parent=5 // pred_fallthru
        _
      %p124 = scmp.lt.s32.totalorder %s9, 2
      // Predicated region
      $region21: #{cnn_q_forward.5} parent=5 // pred_check
        %p125 = pneg %p124
      $region22: #{cnn_q_forward.5} parent=5 // pred_check_branch
        %127 = sbr.rel (%p125) target = $region24
      $region23: #{cnn_q_forward.5} parent=5 // pred_region
        // Predicated region
        $region25: #{cnn_q_forward.5} parent=23 // pred_check
          %p128 = pneg %p29
        $region26: #{cnn_q_forward.5} parent=23 // pred_check_branch
          %130 = sbr.rel (%p128) target = $region28
        $region27: #{cnn_q_forward.5} parent=23 // pred_region
          %s131 = smul.u32 6, %s9
          %s132 = ssub.s32 9, %s131
          %p133 = scmp.lt.s32.totalorder %s132, 6
          %s134 = scalar_select %p133, %s132, 6
          %s135 = smul.u32 64, %s134
          %s136 = smul.u32 %s135, 4
          %p137 = scmp.lt.s32.totalorder %s131, 8
          %s138 = scalar_select %p137, %s131, 8
          %s139 = smul.addr %s138, 4
          %s140 = smul.addr %s139, 4
          %s141 = scalar_lea.vmem %s0, %s140
          %s142 = smul.u32 6, %s9
          %s143 = ssub.s32 9, %s142
          %p144 = scmp.lt.s32.totalorder %s143, 6
          %s145 = scalar_select %p144, %s143, 6
          %s146 = smul.u32 64, %s145
          %s147 = smul.u32 %s146, 4
        $region28: #{cnn_q_forward.5} parent=23 // pred_fallthru
          _
      $region24: #{cnn_q_forward.5} parent=5 // pred_fallthru
        _
      %p148 = scmp.le.s32.totalorder 1, %s9
      %p149 = scmp.lt.s32.totalorder %s9, 3
      %p150 = pnand %p148, %p149
      %p151 = pneg %p150
      // Predicated region
      $region29: #{cnn_q_forward.5} parent=5 // pred_check
        _
      $region30: #{cnn_q_forward.5} parent=5 // pred_check_branch
        %153 = sbr.rel (%p150) target = $region32
      $region31: #{cnn_q_forward.5} parent=5 // pred_region
        %s154 = ssub.s32 %s9, 1
        %s155 = smul.u32 6, %s14
        %s156 = ssub.s32 9, %s155
        %p157 = scmp.lt.s32.totalorder %s156, 6
        %s158 = scalar_select %p157, %s156, 6
        %s159 = smul.u32 64, %s158
        %s160 = smul.u32 %s159, 4
        %p161 = scmp.lt.s32.totalorder %s155, 8
        %s162 = scalar_select %p161, %s155, 8
        %s163 = smul.addr %s162, 4
        %s164 = smul.addr %s163, 4
        %s165 = scalar_lea.vmem %s0, %s164
        %p166 = pneg %p35
        %p167 = pneg %p32
        %p168 = pneg %p56
        %p169 = pneg %p53
        %p170 = pneg %p77
        %p171 = pneg %p74
        %p172 = pneg %p103
        %p173 = pneg %p100
        %s174 = sand.u32 %s90, 1
        %s175 = sand.u32 %s90, 1
        %s176 = smul.addr %s175, 24
        %s177 = scalar_lea.vmem [#allocation2], %s176
        %s178 = smul.u32 6, %s14
        %s179 = ssub.s32 9, %s178
        %p180 = scmp.lt.s32.totalorder %s179, 6
        %s181 = scalar_select %p180, %s179, 6
        %s182 = smul.u32 64, %s181
        %s183 = smul.u32 %s182, 4
        %p184 = scmp.lt.s32.totalorder %s178, 8
        %s185 = scalar_select %p184, %s178, 8
        %s186 = smul.addr %s185, 4
        %s187 = smul.addr %s186, 4
        %s188 = scalar_lea.vmem %s0, %s187
        %s189 = smul.u32 6, %s14
        %s190 = ssub.s32 9, %s189
        %p191 = scmp.lt.s32.totalorder %s190, 6
        %s192 = scalar_select %p191, %s190, 6
        %s193 = smul.u32 64, %s192
        %s194 = smul.u32 %s193, 4
        %s195 = smul.u32 6, %s14
        %s196 = ssub.s32 9, %s195
        %p197 = scmp.lt.s32.totalorder %s196, 6
        %s198 = scalar_select %p197, %s196, 6
        %s199 = smul.u32 64, %s198
        %v201 = vld [vmem:[%s188] sm:$0xff]
        %v202 = vld [vmem:[%s188 + $0x8] sm:$0xff]
        %v203 = vld [vmem:[%s188 + $0x10] sm:$0xff]
        %v204 = vld [vmem:[%s188 + $0x18] sm:$0xff]
        %v205 = vld [vmem:[%s188 + $0x20] sm:$0xff]
        %v206 = vld [vmem:[%s188 + $0x28] sm:$0xff]
        %v207 = vld [vmem:[%s188 + $0x30] sm:$0xff]
        %v208 = vld [vmem:[%s188 + $0x38] sm:$0xff]
        %v209 = vld [vmem:[%s188 + $0x40] sm:$0xff]
        %v210 = vld [vmem:[%s188 + $0x48] sm:$0xff]
        %v211 = vld [vmem:[%s188 + $0x50] sm:$0xff]
        %v212 = vld [vmem:[%s188 + $0x58] sm:$0xff]
        %v213 = vld [vmem:[%s1] sm:$0xf]
        %v214 = vld [vmem:[%s1 + $0x4] sm:$0xf]
        %v215 = vld [vmem:[%s1 + $0x8] sm:$0xf]
        %v216 = vld [vmem:[%s1 + $0xc] sm:$0xf]
        %v217 = vld [vmem:[%s1 + $0x10] sm:$0xf]
        %v218 = vld [vmem:[%s1 + $0x14] sm:$0xf]
        %v219 = vld [vmem:[%s1 + $0x18] sm:$0xf]
        %v220 = vld [vmem:[%s1 + $0x1c] sm:$0xf]
        %v221 = vld [vmem:[%s1 + $0x20] sm:$0xf]
        %v222 = vld [vmem:[%s1 + $0x24] sm:$0xf]
        %v223 = vld [vmem:[%s1 + $0x28] sm:$0xf]
        %v224 = vld [vmem:[%s1 + $0x2c] sm:$0xf]
        %v225 = vld [vmem:[%s1 + $0x30] sm:$0xf]
        %v226 = vld [vmem:[%s1 + $0x34] sm:$0xf]
        %v227 = vld [vmem:[%s1 + $0x38] sm:$0xf]
        %v228 = vld [vmem:[%s1 + $0x3c] sm:$0xf]
        %v229 = vld [vmem:[%s1 + $0x40] sm:$0xf]
        %v230 = vld [vmem:[%s1 + $0x44] sm:$0xf]
        %v231 = vld [vmem:[%s1 + $0x48] sm:$0xf]
        %v232 = vld [vmem:[%s1 + $0x4c] sm:$0xf]
        %v233 = vld [vmem:[%s1 + $0x50] sm:$0xf]
        %v234 = vld [vmem:[%s1 + $0x54] sm:$0xf]
        %v235 = vld [vmem:[%s1 + $0x58] sm:$0xf]
        %v236 = vld [vmem:[%s1 + $0x5c] sm:$0xf]
        %v237 = vld [vmem:[%s1 + $0x60] sm:$0xf]
        %v238 = vld [vmem:[%s1 + $0x64] sm:$0xf]
        %v239 = vld [vmem:[%s1 + $0x68] sm:$0xf]
        %v240 = vld [vmem:[%s1 + $0x6c] sm:$0xf]
        %v241 = vld [vmem:[%s1 + $0x70] sm:$0xf]
        %v242 = vld [vmem:[%s1 + $0x74] sm:$0xf]
        %v243 = vld [vmem:[%s1 + $0x78] sm:$0xf]
        %v244 = vld [vmem:[%s1 + $0x7c] sm:$0xf]
        %v245 = vld [vmem:[%s1 + $0x80] sm:$0xf]
        %v246 = vld [vmem:[%s1 + $0x84] sm:$0xf]
        %v247 = vld [vmem:[%s1 + $0x88] sm:$0xf]
        %v248 = vld [vmem:[%s1 + $0x8c] sm:$0xf]
        %v249 = vld [vmem:[%s1 + $0x90] sm:$0xf]
        %v250 = vld [vmem:[%s1 + $0x94] sm:$0xf]
        %v251 = vld [vmem:[%s1 + $0x98] sm:$0xf]
        %v252 = vld [vmem:[%s1 + $0x9c] sm:$0xf]
        %v253 = vld [vmem:[%s1 + $0xa0] sm:$0xf]
        %v254 = vld [vmem:[%s1 + $0xa4] sm:$0xf]
        %v255 = vld [vmem:[%s1 + $0xa8] sm:$0xf]
        %v256 = vld [vmem:[%s1 + $0xac] sm:$0xf]
        %v257 = vld [vmem:[%s1 + $0xb0] sm:$0xf]
        %v258 = vld [vmem:[%s1 + $0xb4] sm:$0xf]
        %v259 = vld [vmem:[%s1 + $0xb8] sm:$0xf]
        %v260 = vld [vmem:[%s1 + $0xbc] sm:$0xf]
        %v261 = vld [vmem:[%s1 + $0xc0] sm:$0xf]
        %v262 = vld [vmem:[%s1 + $0xc4] sm:$0xf]
        %v263 = vld [vmem:[%s1 + $0xc8] sm:$0xf]
        %v264 = vld [vmem:[%s1 + $0xcc] sm:$0xf]
        %v265 = vld [vmem:[%s1 + $0xd0] sm:$0xf]
        %v266 = vld [vmem:[%s1 + $0xd4] sm:$0xf]
        %v267 = vld [vmem:[%s1 + $0xd8] sm:$0xf]
        %v268 = vld [vmem:[%s1 + $0xdc] sm:$0xf]
        %v269 = vld [vmem:[%s1 + $0xe0] sm:$0xf]
        %v270 = vld [vmem:[%s1 + $0xe4] sm:$0xf]
        %v271 = vld [vmem:[%s1 + $0xe8] sm:$0xf]
        %v272 = vld [vmem:[%s1 + $0xec] sm:$0xf]
        %v273 = vld [vmem:[%s1 + $0xf0] sm:$0xf]
        %v274 = vld [vmem:[%s1 + $0xf4] sm:$0xf]
        %v275 = vld [vmem:[%s1 + $0xf8] sm:$0xf]
        %v276 = vld [vmem:[%s1 + $0xfc] sm:$0xf]
        %v277 = vld [vmem:[%s2] sm:$0x1]
        %v279 = vlaneseq
        %v280 = vshrl.u32 %v279, 7
        %v281 = vsub.s32 0, %v280
        %v282 = vrot.slane %v277, %v281
        %v296 = vunpack.c.l.b16 %v201
        %v297 = vunpack.c.h.b16 %v201
        %v298 = vunpack.c.l.b16 %v202
        %v299 = vunpack.c.h.b16 %v202
        %v300 = vunpack.c.l.b16 %v203
        %v301 = vunpack.c.h.b16 %v203
        %v302 = vunpack.c.l.b16 %v204
        %v303 = vunpack.c.h.b16 %v204
        %v304 = vunpack.c.l.b16 %v205
        %v305 = vunpack.c.h.b16 %v205
        %v306 = vunpack.c.l.b16 %v206
        %v307 = vunpack.c.h.b16 %v206
        %v308 = vunpack.c.l.b16 %v207
        %v309 = vunpack.c.h.b16 %v207
        %v310 = vunpack.c.l.b16 %v208
        %v311 = vunpack.c.h.b16 %v208
        %v312 = vunpack.c.l.b16 %v209
        %v313 = vunpack.c.h.b16 %v209
        %v314 = vunpack.c.l.b16 %v210
        %v315 = vunpack.c.h.b16 %v210
        %v316 = vunpack.c.l.b16 %v211
        %v317 = vunpack.c.h.b16 %v211
        %v318 = vunpack.c.l.b16 %v212
        %v319 = vunpack.c.h.b16 %v212
        %v320 = vpack.c.b16 %v300, %v296
        %v321 = vpack.c.b16 %v301, %v297
        %v322 = vpack.c.b16 %v302, %v298
        %v323 = vpack.c.b16 %v303, %v299
        %v324 = vpack.c.b16 %v308, %v304
        %v325 = vpack.c.b16 %v309, %v305
        %v326 = vpack.c.b16 %v310, %v306
        %v327 = vpack.c.b16 %v311, %v307
        %v328 = vpack.c.b16 %v316, %v312
        %v329 = vpack.c.b16 %v317, %v313
        %v330 = vpack.c.b16 %v318, %v314
        %v331 = vpack.c.b16 %v319, %v315
        %v408 = vunpack.c.l.b16 %v213
        %v409 = vunpack.c.l.b16 %v214
        %v410 = vunpack.c.l.b16 %v215
        %v411 = vunpack.c.l.b16 %v216
        %v412 = vunpack.c.l.b16 %v217
        %v413 = vunpack.c.l.b16 %v218
        %v414 = vunpack.c.l.b16 %v219
        %v415 = vunpack.c.l.b16 %v220
        %v416 = vunpack.c.l.b16 %v221
        %v417 = vunpack.c.l.b16 %v222
        %v418 = vunpack.c.l.b16 %v223
        %v419 = vunpack.c.l.b16 %v224
        %v420 = vunpack.c.l.b16 %v225
        %v421 = vunpack.c.l.b16 %v226
        %v422 = vunpack.c.l.b16 %v227
        %v423 = vunpack.c.l.b16 %v228
        %v424 = vunpack.c.l.b16 %v229
        %v425 = vunpack.c.l.b16 %v230
        %v426 = vunpack.c.l.b16 %v231
        %v427 = vunpack.c.l.b16 %v232
        %v428 = vunpack.c.l.b16 %v233
        %v429 = vunpack.c.l.b16 %v234
        %v430 = vunpack.c.l.b16 %v235
        %v431 = vunpack.c.l.b16 %v236
        %v432 = vunpack.c.l.b16 %v237
        %v433 = vunpack.c.l.b16 %v238
        %v434 = vunpack.c.l.b16 %v239
        %v435 = vunpack.c.l.b16 %v240
        %v436 = vunpack.c.l.b16 %v241
        %v437 = vunpack.c.l.b16 %v242
        %v438 = vunpack.c.l.b16 %v243
        %v439 = vunpack.c.l.b16 %v244
        %v440 = vunpack.c.l.b16 %v245
        %v441 = vunpack.c.l.b16 %v246
        %v442 = vunpack.c.l.b16 %v247
        %v443 = vunpack.c.l.b16 %v248
        %v444 = vunpack.c.l.b16 %v249
        %v445 = vunpack.c.l.b16 %v250
        %v446 = vunpack.c.l.b16 %v251
        %v447 = vunpack.c.l.b16 %v252
        %v448 = vunpack.c.l.b16 %v253
        %v449 = vunpack.c.l.b16 %v254
        %v450 = vunpack.c.l.b16 %v255
        %v451 = vunpack.c.l.b16 %v256
        %v452 = vunpack.c.l.b16 %v257
        %v453 = vunpack.c.l.b16 %v258
        %v454 = vunpack.c.l.b16 %v259
        %v455 = vunpack.c.l.b16 %v260
        %v456 = vunpack.c.l.b16 %v261
        %v457 = vunpack.c.l.b16 %v262
        %v458 = vunpack.c.l.b16 %v263
        %v459 = vunpack.c.l.b16 %v264
        %v460 = vunpack.c.l.b16 %v265
        %v461 = vunpack.c.l.b16 %v266
        %v462 = vunpack.c.l.b16 %v267
        %v463 = vunpack.c.l.b16 %v268
        %v464 = vunpack.c.l.b16 %v269
        %v465 = vunpack.c.l.b16 %v270
        %v466 = vunpack.c.l.b16 %v271
        %v467 = vunpack.c.l.b16 %v272
        %v468 = vunpack.c.l.b16 %v273
        %v469 = vunpack.c.l.b16 %v274
        %v470 = vunpack.c.l.b16 %v275
        %v471 = vunpack.c.l.b16 %v276
        %v472 = vpack.c.b16 %v409, %v408
        %v473 = vpack.c.b16 %v411, %v410
        %v474 = vpack.c.b16 %v413, %v412
        %v475 = vpack.c.b16 %v415, %v414
        %v476 = vpack.c.b16 %v417, %v416
        %v477 = vpack.c.b16 %v419, %v418
        %v478 = vpack.c.b16 %v421, %v420
        %v479 = vpack.c.b16 %v423, %v422
        %v480 = vpack.c.b16 %v425, %v424
        %v481 = vpack.c.b16 %v427, %v426
        %v482 = vpack.c.b16 %v429, %v428
        %v483 = vpack.c.b16 %v431, %v430
        %v484 = vpack.c.b16 %v433, %v432
        %v485 = vpack.c.b16 %v435, %v434
        %v486 = vpack.c.b16 %v437, %v436
        %v487 = vpack.c.b16 %v439, %v438
        %v488 = vpack.c.b16 %v441, %v440
        %v489 = vpack.c.b16 %v443, %v442
        %v490 = vpack.c.b16 %v445, %v444
        %v491 = vpack.c.b16 %v447, %v446
        %v492 = vpack.c.b16 %v449, %v448
        %v493 = vpack.c.b16 %v451, %v450
        %v494 = vpack.c.b16 %v453, %v452
        %v495 = vpack.c.b16 %v455, %v454
        %v496 = vpack.c.b16 %v457, %v456
        %v497 = vpack.c.b16 %v459, %v458
        %v498 = vpack.c.b16 %v461, %v460
        %v499 = vpack.c.b16 %v463, %v462
        %v500 = vpack.c.b16 %v465, %v464
        %v501 = vpack.c.b16 %v467, %v466
        %v502 = vpack.c.b16 %v469, %v468
        %v503 = vpack.c.b16 %v471, %v470
        %536 = vmatprep.subr.bf16.mxu0 0
        %537 = vmatpush1.bf16.msra.mxu0 %v472
        %538 = vmatprep.subr.bf16.mxu0 0
        %539 = vmatpush1.bf16.msra.mxu0 %v473
        %540 = vmatprep.subr.bf16.mxu0 0
        %541 = vmatpush1.bf16.msra.mxu0 %v474
        %542 = vmatprep.subr.bf16.mxu0 0
        %543 = vmatpush1.bf16.msra.mxu0 %v475
        %544 = vmatprep.subr.bf16.mxu0 0
        %545 = vmatpush1.bf16.msra.mxu0 %v476
        %546 = vmatprep.subr.bf16.mxu0 0
        %547 = vmatpush1.bf16.msra.mxu0 %v477
        %548 = vmatprep.subr.bf16.mxu0 0
        %549 = vmatpush1.bf16.msra.mxu0 %v478
        %550 = vmatprep.subr.bf16.mxu0 0
        %551 = vmatpush1.bf16.msra.mxu0 %v479
        %552 = vmatprep.subr.bf16.mxu0 0
        %553 = vmatpush1.bf16.msra.mxu0 %v480
        %554 = vmatprep.subr.bf16.mxu0 0
        %555 = vmatpush1.bf16.msra.mxu0 %v481
        %556 = vmatprep.subr.bf16.mxu0 0
        %557 = vmatpush1.bf16.msra.mxu0 %v482
        %558 = vmatprep.subr.bf16.mxu0 0
        %559 = vmatpush1.bf16.msra.mxu0 %v483
        %560 = vmatprep.subr.bf16.mxu0 0
        %561 = vmatpush1.bf16.msra.mxu0 %v484
        %562 = vmatprep.subr.bf16.mxu0 0
        %563 = vmatpush1.bf16.msra.mxu0 %v485
        %564 = vmatprep.subr.bf16.mxu0 0
        %565 = vmatpush1.bf16.msra.mxu0 %v486
        %566 = vmatprep.subr.bf16.mxu0 0
        %567 = vmatpush1.bf16.msra.mxu0 %v487
        %568 = vmatprep.mubr.bf16.mxu0 %v321
        %569 = vmatmul.mubr.bf16.gmra.mrb[0].mxu0 %v320
        %v570 = vpop.f32.mrb[0].mxu0
        %v571 = vadd.f32 %v282, %v570
        %v572 = vpop.f32.mrb[0].mxu0
        %v573 = vpop.f32.mrb[0].mxu0
        %v574 = vadd.f32 %v282, %v573
        %v575 = vpop.f32.mrb[0].mxu0
        %576 = vmatprep.mubr.bf16.mxu0 %v325
        %577 = vmatmul.mubr.bf16.gmra.mrb[0].mxu0 %v324
        %v578 = vpop.f32.mrb[0].mxu0
        %v579 = vadd.f32 %v282, %v578
        %v580 = vpop.f32.mrb[0].mxu0
        %v581 = vpop.f32.mrb[0].mxu0
        %v582 = vadd.f32 %v282, %v581
        %v583 = vpop.f32.mrb[0].mxu0
        %584 = vmatprep.mubr.bf16.mxu0 %v329
        %585 = vmatmul.mubr.bf16.gmra.mrb[0].mxu0 %v328
        %v586 = vpop.f32.mrb[0].mxu0
        %v587 = vadd.f32 %v282, %v586
        %v588 = vpop.f32.mrb[0].mxu0
        %v589 = vpop.f32.mrb[0].mxu0
        %v590 = vadd.f32 %v282, %v589
        %v591 = vpop.f32.mrb[0].mxu0
        %592 = vdwg.mxu0
        %593 = vmatprep.subr.bf16.mxu0 0
        %594 = vmatpush1.bf16.msra.mxu0 %v488
        %595 = vmatprep.subr.bf16.mxu0 0
        %596 = vmatpush1.bf16.msra.mxu0 %v489
        %597 = vmatprep.subr.bf16.mxu0 0
        %598 = vmatpush1.bf16.msra.mxu0 %v490
        %599 = vmatprep.subr.bf16.mxu0 0
        %600 = vmatpush1.bf16.msra.mxu0 %v491
        %601 = vmatprep.subr.bf16.mxu0 0
        %602 = vmatpush1.bf16.msra.mxu0 %v492
        %603 = vmatprep.subr.bf16.mxu0 0
        %604 = vmatpush1.bf16.msra.mxu0 %v493
        %605 = vmatprep.subr.bf16.mxu0 0
        %606 = vmatpush1.bf16.msra.mxu0 %v494
        %607 = vmatprep.subr.bf16.mxu0 0
        %608 = vmatpush1.bf16.msra.mxu0 %v495
        %609 = vmatprep.subr.bf16.mxu0 0
        %610 = vmatpush1.bf16.msra.mxu0 %v496
        %611 = vmatprep.subr.bf16.mxu0 0
        %612 = vmatpush1.bf16.msra.mxu0 %v497
        %613 = vmatprep.subr.bf16.mxu0 0
        %614 = vmatpush1.bf16.msra.mxu0 %v498
        %615 = vmatprep.subr.bf16.mxu0 0
        %616 = vmatpush1.bf16.msra.mxu0 %v499
        %617 = vmatprep.subr.bf16.mxu0 0
        %618 = vmatpush1.bf16.msra.mxu0 %v500
        %619 = vmatprep.subr.bf16.mxu0 0
        %620 = vmatpush1.bf16.msra.mxu0 %v501
        %621 = vmatprep.subr.bf16.mxu0 0
        %622 = vmatpush1.bf16.msra.mxu0 %v502
        %623 = vmatprep.subr.bf16.mxu0 0
        %624 = vmatpush1.bf16.msra.mxu0 %v503
        %625 = vmatprep.mubr.bf16.mxu0 %v323
        %626 = vmatmul.mubr.bf16.gmra.mrb[0].mxu0 %v322
        %v627 = vpop.f32.mrb[0].mxu0
        %v628 = vadd.f32 %v571, %v627
        %v629 = vpop.f32.mrb[0].mxu0
        %v630 = vpop.f32.mrb[0].mxu0
        %v631 = vadd.f32 %v574, %v630
        %v632 = vpop.f32.mrb[0].mxu0
        %633 = vmatprep.mubr.bf16.mxu0 %v327
        %634 = vmatmul.mubr.bf16.gmra.mrb[0].mxu0 %v326
        %v635 = vpop.f32.mrb[0].mxu0
        %v636 = vadd.f32 %v579, %v635
        %v637 = vpop.f32.mrb[0].mxu0
        %v638 = vpop.f32.mrb[0].mxu0
        %v639 = vadd.f32 %v582, %v638
        %v640 = vpop.f32.mrb[0].mxu0
        %641 = vmatprep.mubr.bf16.mxu0 %v331
        %642 = vmatmul.mubr.bf16.gmra.mrb[0].mxu0 %v330
        %v643 = vpop.f32.mrb[0].mxu0
        %v644 = vadd.f32 %v587, %v643
        %v645 = vpop.f32.mrb[0].mxu0
        %v646 = vpop.f32.mrb[0].mxu0
        %v647 = vadd.f32 %v590, %v646
        %v648 = vpop.f32.mrb[0].mxu0
        %649 = vdwg.mxu0
        %v650 = vmax.f32 %v628, 0.0
        %v651 = vmax.f32 %v631, 0.0
        %v652 = vmax.f32 %v636, 0.0
        %v653 = vmax.f32 %v639, 0.0
        %v654 = vmax.f32 %v644, 0.0
        %v655 = vmax.f32 %v647, 0.0
        %v656 = vpack.c.bf16 %v651, %v650
        %v657 = vpack.c.bf16 %v653, %v652
        %v658 = vpack.c.bf16 %v655, %v654
        %v662 = vunpack.c.l.b16 %v656
        %v663 = vunpack.c.h.b16 %v656
        %v664 = vunpack.c.l.b16 %v657
        %v665 = vunpack.c.h.b16 %v657
        %v666 = vunpack.c.l.b16 %v658
        %v667 = vunpack.c.h.b16 %v658
        %v668 = vpack.c.b16 %v662, %v662
        %v669 = vpack.c.b16 %v663, %v663
        %v670 = vpack.c.b16 %v664, %v664
        %v671 = vpack.c.b16 %v665, %v665
        %v672 = vpack.c.b16 %v666, %v666
        %v673 = vpack.c.b16 %v667, %v667
        %vm680 = vcmask 519168
        %681 = vst.msk [vmem:[%s177] sm:$0xf] %vm680, %v668
        %682 = vst.msk [vmem:[%s177 + $0x4] sm:$0xf] %vm680, %v669
        %683 = vst.msk [vmem:[%s177 + $0x8] sm:$0xf] %vm680, %v670
        %684 = vst.msk [vmem:[%s177 + $0xc] sm:$0xf] %vm680, %v671
        %685 = vst.msk [vmem:[%s177 + $0x10] sm:$0xf] %vm680, %v672
        %686 = vst.msk [vmem:[%s177 + $0x14] sm:$0xf] %vm680, %v673
        %s687 = sand.u32 %s90, 1
        %s688 = sand.u32 %s90, 1
        %s689 = smul.addr %s688, 24
        %s690 = scalar_lea.vmem [#allocation2], %s689
        // Predicated region
        $region33: #{cnn_q_forward.5} parent=31 // pred_check
          %p691 = pneg %p100
        $region34: #{cnn_q_forward.5} parent=31 // pred_check_branch
          %693 = sbr.rel (%p691) target = $region36
        $region35: #{cnn_q_forward.5} parent=31 // pred_region
          %s694 = smul.u32 6, %s14
          %s695 = ssub.s32 9, %s694
          %p696 = scmp.lt.s32.totalorder %s695, 6
          %s697 = scalar_select %p696, %s695, 6
          %s698 = smul.u32 64, %s697
          %p699 = scmp.ne.s32.totalorder 0, %s698
          %s700 = smul.addr %s694, 4
          %s701 = scalar_lea.vmem %s3, %s700
          // Predicated region
          $region37: #{cnn_q_forward.5} parent=35 // pred_check
            %p702 = pneg %p699
          $region38: #{cnn_q_forward.5} parent=35 // pred_check_branch
            %704 = sbr.rel (%p702) target = $region40
          $region39: #{cnn_q_forward.5} parent=35 // pred_region
            // Predicated region
            $region41: #{cnn_q_forward.5} parent=39 // pred_check
              _
            $region42: #{cnn_q_forward.5} parent=39 // pred_check_branch
              %706 = sbr.rel target = $region44
            $region43: #{cnn_q_forward.5} parent=39 // pred_region
              // Predicated region
              $region63: #{cnn_q_forward.5} parent=43 // pred_check
                _
              $region64: #{cnn_q_forward.5} parent=43 // pred_check_branch
                %766 = sbr.rel (0) target = $region66
              $region65: #{cnn_q_forward.5} parent=43 // pred_region
                %s768 = sdiv.u32.pop %s697, 6
                %s769 = srem.u32.pop %s697, 6
                // While loop
                $region67: #{cnn_q_forward.5} parent=65 // loop_pre_header
                  _
                $region68: #{cnn_q_forward.5} parent=65 // loop_header
                  %s771 = sphi 0, %s773
                  %p772 = scmp.ge.s32.totalorder %s771, %s768
                  %s776 = sphi 0, %s793
                  %s777 = sphi %s690, %s796
                  %s778 = sphi %s701, %s797
                $region69: #{cnn_q_forward.5} parent=65 // loop_header_branch
                  %775 = sbr.rel (%p772) target = $region73
                $region70: #{cnn_q_forward.5} parent=65 // loop_body
                  %v779 = vld [vmem:[%s777] sm:$0xf]
                  %780 = vst [vmem:[%s778] sm:$0xf] %v779
                  %v781 = vld [vmem:[%s777 + $0x4] sm:$0xf]
                  %782 = vst [vmem:[%s778 + $0x4] sm:$0xf] %v781
                  %v783 = vld [vmem:[%s777 + $0x8] sm:$0xf]
                  %784 = vst [vmem:[%s778 + $0x8] sm:$0xf] %v783
                  %v785 = vld [vmem:[%s777 + $0xc] sm:$0xf]
                  %786 = vst [vmem:[%s778 + $0xc] sm:$0xf] %v785
                  %v787 = vld [vmem:[%s777 + $0x10] sm:$0xf]
                  %788 = vst [vmem:[%s778 + $0x10] sm:$0xf] %v787
                  %v789 = vld [vmem:[%s777 + $0x14] sm:$0xf]
                  %790 = vst [vmem:[%s778 + $0x14] sm:$0xf] %v789
                  %s791 = sadd.s32 1, %s776
                  %p792 = scmp.ge.s32.totalorder %s791, %s768
                  %s793 = scalar_select %p792, 0, %s791
                  %s794 = smul.u32 %s793, 24
                  %s795 = smul.u32 %s793, 24
                  %s796 = scalar_lea.vmem %s690, %s794 [#allocation2]
                  %s797 = scalar_lea.vmem %s701, %s795
                $region71: #{cnn_q_forward.5} parent=65 // loop_footer
                  %s773 = sadd.s32 %s771, 1
                $region72: #{cnn_q_forward.5} parent=65 // loop_footer_branch
                  %770 = sbr.rel target = $region68
                $region73: #{cnn_q_forward.5} parent=65 // loop_exit
                  _
                %s798 = sdiv.u32.pop %s697, 6
                %s799 = srem.u32.pop %s697, 6
                %s800 = smul.u32 %s798, 6
                %s801 = smul.u32 4, %s800
                %s802 = scalar_lea.vmem %s690, %s801 [#allocation2]
                %s803 = smul.u32 4, %s800
                %s804 = scalar_lea.vmem %s701, %s803
                // While loop
                $region74: #{cnn_q_forward.5} parent=65 // loop_pre_header
                  _
                $region75: #{cnn_q_forward.5} parent=65 // loop_header
                  %s806 = sphi 0, %s808
                  %p807 = scmp.ge.s32.totalorder %s806, %s799
                  %s811 = sphi 0, %s818
                  %s812 = sphi %s802, %s821
                  %s813 = sphi %s804, %s822
                $region76: #{cnn_q_forward.5} parent=65 // loop_header_branch
                  %810 = sbr.rel (%p807) target = $region80
                $region77: #{cnn_q_forward.5} parent=65 // loop_body
                  %v814 = vld [vmem:[%s812] sm:$0xf]
                  %815 = vst [vmem:[%s813] sm:$0xf] %v814
                  %s816 = sadd.s32 1, %s811
                  %p817 = scmp.ge.s32.totalorder %s816, %s799
                  %s818 = scalar_select %p817, 0, %s816
                  %s819 = smul.u32 %s818, 4
                  %s820 = smul.u32 %s818, 4
                  %s821 = scalar_lea.vmem %s802, %s819 [#allocation2]
                  %s822 = scalar_lea.vmem %s804, %s820
                $region78: #{cnn_q_forward.5} parent=65 // loop_footer
                  %s808 = sadd.s32 %s806, 1
                $region79: #{cnn_q_forward.5} parent=65 // loop_footer_branch
                  %805 = sbr.rel target = $region75
                $region80: #{cnn_q_forward.5} parent=65 // loop_exit
                  _
              $region66: #{cnn_q_forward.5} parent=43 // pred_fallthru
                _
            $region44: #{cnn_q_forward.5} parent=39 // pred_fallthru
              _
            // Predicated region
            $region45: #{cnn_q_forward.5} parent=39 // pred_check
              _
            $region46: #{cnn_q_forward.5} parent=39 // pred_check_branch
              %708 = sbr.rel (0) target = $region48
            $region47: #{cnn_q_forward.5} parent=39 // pred_region
              %s710 = sdiv.u32.pop %s697, 6
              %s711 = srem.u32.pop %s697, 6
              // While loop
              $region49: #{cnn_q_forward.5} parent=47 // loop_pre_header
                _
              $region50: #{cnn_q_forward.5} parent=47 // loop_header
                %s713 = sphi 0, %s715
                %p714 = scmp.ge.s32.totalorder %s713, %s710
                %s718 = sphi 0, %s735
                %s719 = sphi %s690, %s738
                %s720 = sphi %s701, %s739
              $region51: #{cnn_q_forward.5} parent=47 // loop_header_branch
                %717 = sbr.rel (%p714) target = $region55
              $region52: #{cnn_q_forward.5} parent=47 // loop_body
                %v721 = vld [vmem:[%s719] sm:$0xf]
                %722 = vst [vmem:[%s720] sm:$0xf] %v721
                %v723 = vld [vmem:[%s719 + $0x4] sm:$0xf]
                %724 = vst [vmem:[%s720 + $0x4] sm:$0xf] %v723
                %v725 = vld [vmem:[%s719 + $0x8] sm:$0xf]
                %726 = vst [vmem:[%s720 + $0x8] sm:$0xf] %v725
                %v727 = vld [vmem:[%s719 + $0xc] sm:$0xf]
                %728 = vst [vmem:[%s720 + $0xc] sm:$0xf] %v727
                %v729 = vld [vmem:[%s719 + $0x10] sm:$0xf]
                %730 = vst [vmem:[%s720 + $0x10] sm:$0xf] %v729
                %v731 = vld [vmem:[%s719 + $0x14] sm:$0xf]
                %732 = vst [vmem:[%s720 + $0x14] sm:$0xf] %v731
                %s733 = sadd.s32 1, %s718
                %p734 = scmp.ge.s32.totalorder %s733, %s710
                %s735 = scalar_select %p734, 0, %s733
                %s736 = smul.u32 %s735, 24
                %s737 = smul.u32 %s735, 24
                %s738 = scalar_lea.vmem %s690, %s736 [#allocation2]
                %s739 = scalar_lea.vmem %s701, %s737
              $region53: #{cnn_q_forward.5} parent=47 // loop_footer
                %s715 = sadd.s32 %s713, 1
              $region54: #{cnn_q_forward.5} parent=47 // loop_footer_branch
                %712 = sbr.rel target = $region50
              $region55: #{cnn_q_forward.5} parent=47 // loop_exit
                _
              %s740 = sdiv.u32.pop %s697, 6
              %s741 = srem.u32.pop %s697, 6
              %s742 = smul.u32 %s740, 6
              %s743 = smul.u32 4, %s742
              %s744 = scalar_lea.vmem %s690, %s743 [#allocation2]
              %s745 = smul.u32 4, %s742
              %s746 = scalar_lea.vmem %s701, %s745
              // While loop
              $region56: #{cnn_q_forward.5} parent=47 // loop_pre_header
                _
              $region57: #{cnn_q_forward.5} parent=47 // loop_header
                %s748 = sphi 0, %s750
                %p749 = scmp.ge.s32.totalorder %s748, %s741
                %s753 = sphi 0, %s760
                %s754 = sphi %s744, %s763
                %s755 = sphi %s746, %s764
              $region58: #{cnn_q_forward.5} parent=47 // loop_header_branch
                %752 = sbr.rel (%p749) target = $region62
              $region59: #{cnn_q_forward.5} parent=47 // loop_body
                %v756 = vld [vmem:[%s754] sm:$0xf]
                %757 = vst [vmem:[%s755] sm:$0xf] %v756
                %s758 = sadd.s32 1, %s753
                %p759 = scmp.ge.s32.totalorder %s758, %s741
                %s760 = scalar_select %p759, 0, %s758
                %s761 = smul.u32 %s760, 4
                %s762 = smul.u32 %s760, 4
                %s763 = scalar_lea.vmem %s744, %s761 [#allocation2]
                %s764 = scalar_lea.vmem %s746, %s762
              $region60: #{cnn_q_forward.5} parent=47 // loop_footer
                %s750 = sadd.s32 %s748, 1
              $region61: #{cnn_q_forward.5} parent=47 // loop_footer_branch
                %747 = sbr.rel target = $region57
              $region62: #{cnn_q_forward.5} parent=47 // loop_exit
                _
            $region48: #{cnn_q_forward.5} parent=39 // pred_fallthru
              _
          $region40: #{cnn_q_forward.5} parent=35 // pred_fallthru
            _
          %823 = vnop
        $region36: #{cnn_q_forward.5} parent=31 // pred_fallthru
          _
      $region32: #{cnn_q_forward.5} parent=5 // pred_fallthru
        _
      %p824 = scmp.le.s32.totalorder 2, %s9
      // Predicated region
      $region81: #{cnn_q_forward.5} parent=5 // pred_check
        %p825 = pneg %p824
      $region82: #{cnn_q_forward.5} parent=5 // pred_check_branch
        %827 = sbr.rel (%p825) target = $region84
      $region83: #{cnn_q_forward.5} parent=5 // pred_region
        %s828 = ssub.s32 %s9, 2
        // Predicated region
        $region85: #{cnn_q_forward.5} parent=83 // pred_check
          %p829 = pneg %p106
        $region86: #{cnn_q_forward.5} parent=83 // pred_check_branch
          %831 = sbr.rel (%p829) target = $region88
        $region87: #{cnn_q_forward.5} parent=83 // pred_region
          %s832 = sand.u32 %s91, 1
          %s833 = sand.u32 %s91, 1
          %s834 = smul.addr %s833, 24
          %s835 = scalar_lea.vmem [#allocation2], %s834
        $region88: #{cnn_q_forward.5} parent=83 // pred_fallthru
          _
      $region84: #{cnn_q_forward.5} parent=5 // pred_fallthru
        _
    $region6: #{cnn_q_forward.5} parent=1 // loop_footer
      %s13 = sadd.s32 1, %s9
    $region7: #{cnn_q_forward.5} parent=1 // loop_footer_branch
      %8 = sbr.rel target = $region3
    $region8: #{cnn_q_forward.5} parent=1 // loop_exit
      _

// kernel: cnn_q_forward.6
$region0: #{cnn_q_forward.6}
  #allocation0 [shape = 'u32[]', space=smem, size = 0x4, offset = 0x4, fixed_abs, tag = 'smem constant byte address 0x4 - core index']
  #allocation1 [shape = 'u32[144,128]{1,0:T(1,128)}', space=vmem, size = 0x12000, scoped, tag = 'internal scratch']
  %s0 = inlined_call_operand.vmem [shape: bf16[32,576], index: 0, kind: input, shape index: {}]
  %s1 = inlined_call_operand.vmem [shape: bf16[576,64], index: 1, kind: input, shape index: {}]
  %s2 = inlined_call_operand.vmem [shape: f32[1,64], index: 2, kind: input, shape index: {}]
  %s3 = inlined_call_operand.vmem [shape: bf16[32,64], index: 3, kind: output, shape index: {}]
  %s4 = sld [smem:[#allocation0]]
  $region45: #{cnn_q_forward.6} parent=0
    _
  %s6 = ssub.s32 1, %s4
  %s7 = scalar_select 0, %s6, %s4
  loop: start=0, step=1, limit=4
  $region2: #{cnn_q_forward.6} parent=0 // loop_pre_header
    _
  $region3: #{cnn_q_forward.6} parent=0 // loop_header
    %s9 = sphi 0, %s13
    %p10 = scmp.ge.s32.totalorder %s9, 4
    %s19 = sphi 0, %s21
    %s22 = sphi 0, %s19
    %s23 = sphi 0, %s22
    %s39 = sphi 0, %s23
    %s43 = sphi 0, %s43
    %s45 = sphi 0, %s43
    %s46 = sphi 0, %s45
    %s60 = sphi 0, %s46
    %s64 = sphi 0, %s64
    %s66 = sphi 0, %s64
    %s67 = sphi 0, %s66
    %s81 = sphi 0, %s67
    %s87 = sphi 0, %s89
    %s90 = sphi 0, %s87
    %s91 = sphi 0, %s90
    %s107 = sphi 0, %s91
  $region4: #{cnn_q_forward.6} parent=0 // loop_header_branch
    %12 = sbr.rel (%p10) target = $region8
  $region5: #{cnn_q_forward.6} parent=0 // loop_body
    %s14 = ssub.s32 %s9, 1
    %s15 = ssub.s32 %s9, 2
    %s16 = sadd.s32 %s9, 1
    %s17 = ssub.s32 %s9, %s16
    %p18 = scmp.eq.s32.totalorder %s17, 0
    %s20 = sadd.s32 %s19, 1
    %s21 = scalar_select %p18, %s19, %s20
    %p24 = pneg %p18
    %p25 = scmp.eq.s32.totalorder %s9, 1
    %p26 = por %p24, %p25
    %p27 = scmp.ne.s32.totalorder %s19, %s22
    %p28 = scmp.eq.s32.totalorder %s9, 0
    %p29 = por %p27, %p28
    %p30 = scmp.ne.s32.totalorder %s19, %s22
    %p31 = scmp.eq.s32.totalorder %s14, 1
    %p32 = por %p30, %p31
    %p33 = scmp.ne.s32.totalorder %s22, %s23
    %p34 = scmp.eq.s32.totalorder %s14, 0
    %p35 = por %p33, %p34
    %p36 = scmp.ne.s32.totalorder %s22, %s23
    %p37 = scmp.eq.s32.totalorder %s15, 1
    %p38 = por %p36, %p37
    %p40 = scmp.ne.s32.totalorder %s23, %s39
    %p41 = scmp.eq.s32.totalorder %s15, 0
    %p42 = por %p40, %p41
    %s44 = sadd.s32 %s43, 1
    %p47 = scmp.eq.s32.totalorder %s9, 1
    %p48 = scmp.ne.s32.totalorder %s43, %s45
    %p49 = scmp.eq.s32.totalorder %s9, 0
    %p50 = por %p48, %p49
    %p51 = scmp.ne.s32.totalorder %s43, %s45
    %p52 = scmp.eq.s32.totalorder %s14, 1
    %p53 = por %p51, %p52
    %p54 = scmp.ne.s32.totalorder %s45, %s46
    %p55 = scmp.eq.s32.totalorder %s14, 0
    %p56 = por %p54, %p55
    %p57 = scmp.ne.s32.totalorder %s45, %s46
    %p58 = scmp.eq.s32.totalorder %s15, 1
    %p59 = por %p57, %p58
    %p61 = scmp.ne.s32.totalorder %s46, %s60
    %p62 = scmp.eq.s32.totalorder %s15, 0
    %p63 = por %p61, %p62
    %s65 = sadd.s32 %s64, 1
    %p68 = scmp.eq.s32.totalorder %s9, 1
    %p69 = scmp.ne.s32.totalorder %s64, %s66
    %p70 = scmp.eq.s32.totalorder %s9, 0
    %p71 = por %p69, %p70
    %p72 = scmp.ne.s32.totalorder %s64, %s66
    %p73 = scmp.eq.s32.totalorder %s14, 1
    %p74 = por %p72, %p73
    %p75 = scmp.ne.s32.totalorder %s66, %s67
    %p76 = scmp.eq.s32.totalorder %s14, 0
    %p77 = por %p75, %p76
    %p78 = scmp.ne.s32.totalorder %s66, %s67
    %p79 = scmp.eq.s32.totalorder %s15, 1
    %p80 = por %p78, %p79
    %p82 = scmp.ne.s32.totalorder %s67, %s81
    %p83 = scmp.eq.s32.totalorder %s15, 0
    %p84 = por %p82, %p83
    %s85 = ssub.s32 %s9, %s16
    %p86 = scmp.eq.s32.totalorder %s85, 0
    %s88 = sadd.s32 %s87, 1
    %s89 = scalar_select %p86, %s87, %s88
    %p92 = pneg %p86
    %p93 = scmp.eq.s32.totalorder %s9, 1
    %p94 = por %p92, %p93
    %p95 = scmp.ne.s32.totalorder %s87, %s90
    %p96 = scmp.eq.s32.totalorder %s9, 0
    %p97 = por %p95, %p96
    %p98 = scmp.ne.s32.totalorder %s87, %s90
    %p99 = scmp.eq.s32.totalorder %s14, 1
    %p100 = por %p98, %p99
    %p101 = scmp.ne.s32.totalorder %s90, %s91
    %p102 = scmp.eq.s32.totalorder %s14, 0
    %p103 = por %p101, %p102
    %p104 = scmp.ne.s32.totalorder %s90, %s91
    %p105 = scmp.eq.s32.totalorder %s15, 1
    %p106 = por %p104, %p105
    %p108 = scmp.ne.s32.totalorder %s91, %s107
    %p109 = scmp.eq.s32.totalorder %s15, 0
    %p110 = por %p108, %p109
    %p111 = scmp.le.s32.totalorder 1, %s9
    %p112 = scmp.lt.s32.totalorder %s9, 3
    %p113 = pnand %p111, %p112
    %p114 = pneg %p113
    // Predicated region
    $region9: #{cnn_q_forward.6} parent=5 // pred_check
      _
    $region10: #{cnn_q_forward.6} parent=5 // pred_check_branch
      %116 = sbr.rel (%p113) target = $region12
    $region11: #{cnn_q_forward.6} parent=5 // pred_region
      %s117 = ssub.s32 %s9, 1
      // Predicated region
      $region13: #{cnn_q_forward.6} parent=11 // pred_check
        %p118 = pneg %p56
      $region14: #{cnn_q_forward.6} parent=11 // pred_check_branch
        %120 = sbr.rel (%p118) target = $region16
      $region15: #{cnn_q_forward.6} parent=11 // pred_region
        _
      $region16: #{cnn_q_forward.6} parent=11 // pred_fallthru
        _
      // Predicated region
      $region17: #{cnn_q_forward.6} parent=11 // pred_check
        %p121 = pneg %p77
      $region18: #{cnn_q_forward.6} parent=11 // pred_check_branch
        %123 = sbr.rel (%p121) target = $region20
      $region19: #{cnn_q_forward.6} parent=11 // pred_region
        _
      $region20: #{cnn_q_forward.6} parent=11 // pred_fallthru
        _
    $region12: #{cnn_q_forward.6} parent=5 // pred_fallthru
      _
    %p124 = scmp.lt.s32.totalorder %s9, 2
    // Predicated region
    $region21: #{cnn_q_forward.6} parent=5 // pred_check
      %p125 = pneg %p124
    $region22: #{cnn_q_forward.6} parent=5 // pred_check_branch
      %127 = sbr.rel (%p125) target = $region24
    $region23: #{cnn_q_forward.6} parent=5 // pred_region
      // Predicated region
      $region25: #{cnn_q_forward.6} parent=23 // pred_check
        %p128 = pneg %p29
      $region26: #{cnn_q_forward.6} parent=23 // pred_check_branch
        %130 = sbr.rel (%p128) target = $region28
      $region27: #{cnn_q_forward.6} parent=23 // pred_region
        %s131 = smul.u32 2, %s9
        %p132 = scmp.lt.s32.totalorder %s131, 3
        %s133 = scalar_select %p132, %s131, 3
        %s134 = smul.addr %s133, 5
        %s135 = smul.addr %s134, 4
        %s136 = scalar_lea.vmem %s0, %s135
        %s137 = smul.u32 2, %s9
      $region28: #{cnn_q_forward.6} parent=23 // pred_fallthru
        _
    $region24: #{cnn_q_forward.6} parent=5 // pred_fallthru
      _
    %p138 = scmp.le.s32.totalorder 1, %s9
    %p139 = scmp.lt.s32.totalorder %s9, 3
    %p140 = pnand %p138, %p139
    %p141 = pneg %p140
    // Predicated region
    $region29: #{cnn_q_forward.6} parent=5 // pred_check
      _
    $region30: #{cnn_q_forward.6} parent=5 // pred_check_branch
      %143 = sbr.rel (%p140) target = $region32
    $region31: #{cnn_q_forward.6} parent=5 // pred_region
      %s144 = ssub.s32 %s9, 1
      %s145 = smul.u32 2, %s14
      %p146 = scmp.lt.s32.totalorder %s145, 3
      %s147 = scalar_select %p146, %s145, 3
      %s148 = smul.addr %s147, 5
      %s149 = smul.addr %s148, 4
      %s150 = scalar_lea.vmem %s0, %s149
      %p151 = pneg %p35
      %p152 = pneg %p32
      %p153 = pneg %p56
      %p154 = pneg %p53
      %p155 = pneg %p77
      %p156 = pneg %p74
      %p157 = pneg %p103
      %p158 = pneg %p100
      %s159 = smul.u32 2, %s14
      %p160 = scmp.lt.s32.totalorder %s159, 3
      %s161 = scalar_select %p160, %s159, 3
      %s162 = smul.addr %s161, 4
      %s163 = scalar_lea.vmem %s3, %s162
      %s164 = smul.u32 2, %s14
      %p165 = scmp.lt.s32.totalorder %s164, 3
      %s166 = scalar_select %p165, %s164, 3
      %s167 = smul.addr %s166, 5
      %s168 = smul.addr %s167, 4
      %s169 = scalar_lea.vmem %s0, %s168
      %s170 = smul.u32 2, %s14
      %s171 = smul.u32 2, %s14
      %p172 = scmp.lt.s32.totalorder %s171, 3
      %s173 = scalar_select %p172, %s171, 3
      %s174 = smul.addr %s173, 4
      %s175 = scalar_lea.vmem %s3, %s174
      %s176 = smul.u32 2, %s14
      %v178 = vld [vmem:[%s169] sm:$0xff]
      %v179 = vld [vmem:[%s169 + $0x8] sm:$0xff]
      %v180 = vld [vmem:[%s169 + $0x10] sm:$0xf]
      %v181 = vld [vmem:[%s169 + $0x14] sm:$0xff]
      %v182 = vld [vmem:[%s169 + $0x1c] sm:$0xff]
      %v183 = vld [vmem:[%s169 + $0x24] sm:$0xf]
      %v184 = vld [vmem:[%s1] sm:$0xf]
      %v185 = vld [vmem:[%s1 + $0x4] sm:$0xf]
      %v186 = vld [vmem:[%s1 + $0x8] sm:$0xf]
      %v187 = vld [vmem:[%s1 + $0xc] sm:$0xf]
      %v188 = vld [vmem:[%s1 + $0x10] sm:$0xf]
      %v189 = vld [vmem:[%s1 + $0x14] sm:$0xf]
      %v190 = vld [vmem:[%s1 + $0x18] sm:$0xf]
      %v191 = vld [vmem:[%s1 + $0x1c] sm:$0xf]
      %v192 = vld [vmem:[%s1 + $0x20] sm:$0xf]
      %v193 = vld [vmem:[%s1 + $0x24] sm:$0xf]
      %v194 = vld [vmem:[%s1 + $0x28] sm:$0xf]
      %v195 = vld [vmem:[%s1 + $0x2c] sm:$0xf]
      %v196 = vld [vmem:[%s1 + $0x30] sm:$0xf]
      %v197 = vld [vmem:[%s1 + $0x34] sm:$0xf]
      %v198 = vld [vmem:[%s1 + $0x38] sm:$0xf]
      %v199 = vld [vmem:[%s1 + $0x3c] sm:$0xf]
      %v200 = vld [vmem:[%s1 + $0x40] sm:$0xf]
      %v201 = vld [vmem:[%s1 + $0x44] sm:$0xf]
      %v202 = vld [vmem:[%s1 + $0x48] sm:$0xf]
      %v203 = vld [vmem:[%s1 + $0x4c] sm:$0xf]
      %v204 = vld [vmem:[%s1 + $0x50] sm:$0xf]
      %v205 = vld [vmem:[%s1 + $0x54] sm:$0xf]
      %v206 = vld [vmem:[%s1 + $0x58] sm:$0xf]
      %v207 = vld [vmem:[%s1 + $0x5c] sm:$0xf]
      %v208 = vld [vmem:[%s1 + $0x60] sm:$0xf]
      %v209 = vld [vmem:[%s1 + $0x64] sm:$0xf]
      %v210 = vld [vmem:[%s1 + $0x68] sm:$0xf]
      %v211 = vld [vmem:[%s1 + $0x6c] sm:$0xf]
      %v212 = vld [vmem:[%s1 + $0x70] sm:$0xf]
      %v213 = vld [vmem:[%s1 + $0x74] sm:$0xf]
      %v214 = vld [vmem:[%s1 + $0x78] sm:$0xf]
      %v215 = vld [vmem:[%s1 + $0x7c] sm:$0xf]
      %v216 = vld [vmem:[%s1 + $0x80] sm:$0xf]
      %v217 = vld [vmem:[%s1 + $0x84] sm:$0xf]
      %v218 = vld [vmem:[%s1 + $0x88] sm:$0xf]
      %v219 = vld [vmem:[%s1 + $0x8c] sm:$0xf]
      %v220 = vld [vmem:[%s1 + $0x90] sm:$0xf]
      %v221 = vld [vmem:[%s1 + $0x94] sm:$0xf]
      %v222 = vld [vmem:[%s1 + $0x98] sm:$0xf]
      %v223 = vld [vmem:[%s1 + $0x9c] sm:$0xf]
      %v224 = vld [vmem:[%s1 + $0xa0] sm:$0xf]
      %v225 = vld [vmem:[%s1 + $0xa4] sm:$0xf]
      %v226 = vld [vmem:[%s1 + $0xa8] sm:$0xf]
      %v227 = vld [vmem:[%s1 + $0xac] sm:$0xf]
      %v228 = vld [vmem:[%s1 + $0xb0] sm:$0xf]
      %v229 = vld [vmem:[%s1 + $0xb4] sm:$0xf]
      %v230 = vld [vmem:[%s1 + $0xb8] sm:$0xf]
      %v231 = vld [vmem:[%s1 + $0xbc] sm:$0xf]
      %v232 = vld [vmem:[%s1 + $0xc0] sm:$0xf]
      %v233 = vld [vmem:[%s1 + $0xc4] sm:$0xf]
      %v234 = vld [vmem:[%s1 + $0xc8] sm:$0xf]
      %v235 = vld [vmem:[%s1 + $0xcc] sm:$0xf]
      %v236 = vld [vmem:[%s1 + $0xd0] sm:$0xf]
      %v237 = vld [vmem:[%s1 + $0xd4] sm:$0xf]
      %v238 = vld [vmem:[%s1 + $0xd8] sm:$0xf]
      %v239 = vld [vmem:[%s1 + $0xdc] sm:$0xf]
      %v240 = vld [vmem:[%s1 + $0xe0] sm:$0xf]
      %v241 = vld [vmem:[%s1 + $0xe4] sm:$0xf]
      %v242 = vld [vmem:[%s1 + $0xe8] sm:$0xf]
      %v243 = vld [vmem:[%s1 + $0xec] sm:$0xf]
      %v244 = vld [vmem:[%s1 + $0xf0] sm:$0xf]
      %v245 = vld [vmem:[%s1 + $0xf4] sm:$0xf]
      %v246 = vld [vmem:[%s1 + $0xf8] sm:$0xf]
      %v247 = vld [vmem:[%s1 + $0xfc] sm:$0xf]
      %v248 = vld [vmem:[%s1 + $0x100] sm:$0xf]
      %v249 = vld [vmem:[%s1 + $0x104] sm:$0xf]
      %v250 = vld [vmem:[%s1 + $0x108] sm:$0xf]
      %v251 = vld [vmem:[%s1 + $0x10c] sm:$0xf]
      %v252 = vld [vmem:[%s1 + $0x110] sm:$0xf]
      %v253 = vld [vmem:[%s1 + $0x114] sm:$0xf]
      %v254 = vld [vmem:[%s1 + $0x118] sm:$0xf]
      %v255 = vld [vmem:[%s1 + $0x11c] sm:$0xf]
      %v256 = vld [vmem:[%s2] sm:$0x1]
      %v258 = vlaneseq
      %v259 = vshrl.u32 %v258, 7
      %v260 = vsub.s32 0, %v259
      %v261 = vrot.slane %v256, %v260
      %v269 = vunpack.c.l.b16 %v178
      %v270 = vunpack.c.h.b16 %v178
      %v271 = vunpack.c.l.b16 %v179
      %v272 = vunpack.c.h.b16 %v179
      %v273 = vunpack.c.l.b16 %v180
      %v274 = vunpack.c.l.b16 %v181
      %v275 = vunpack.c.h.b16 %v181
      %v276 = vunpack.c.l.b16 %v182
      %v277 = vunpack.c.h.b16 %v182
      %v278 = vunpack.c.l.b16 %v183
      %v279 = vpack.c.b16 %v274, %v269
      %v280 = vpack.c.b16 %v275, %v270
      %v281 = vpack.c.b16 %v276, %v271
      %v282 = vpack.c.b16 %v277, %v272
      %v283 = vpack.c.b16 %v278, %v273
      %v360 = vunpack.c.l.b16 %v184
      %v361 = vunpack.c.l.b16 %v185
      %v362 = vunpack.c.l.b16 %v186
      %v363 = vunpack.c.l.b16 %v187
      %v364 = vunpack.c.l.b16 %v188
      %v365 = vunpack.c.l.b16 %v189
      %v366 = vunpack.c.l.b16 %v190
      %v367 = vunpack.c.l.b16 %v191
      %v368 = vunpack.c.l.b16 %v192
      %v369 = vunpack.c.l.b16 %v193
      %v370 = vunpack.c.l.b16 %v194
      %v371 = vunpack.c.l.b16 %v195
      %v372 = vunpack.c.l.b16 %v196
      %v373 = vunpack.c.l.b16 %v197
      %v374 = vunpack.c.l.b16 %v198
      %v375 = vunpack.c.l.b16 %v199
      %v376 = vunpack.c.l.b16 %v200
      %v377 = vunpack.c.l.b16 %v201
      %v378 = vunpack.c.l.b16 %v202
      %v379 = vunpack.c.l.b16 %v203
      %v380 = vunpack.c.l.b16 %v204
      %v381 = vunpack.c.l.b16 %v205
      %v382 = vunpack.c.l.b16 %v206
      %v383 = vunpack.c.l.b16 %v207
      %v384 = vunpack.c.l.b16 %v208
      %v385 = vunpack.c.l.b16 %v209
      %v386 = vunpack.c.l.b16 %v210
      %v387 = vunpack.c.l.b16 %v211
      %v388 = vunpack.c.l.b16 %v212
      %v389 = vunpack.c.l.b16 %v213
      %v390 = vunpack.c.l.b16 %v214
      %v391 = vunpack.c.l.b16 %v215
      %v392 = vunpack.c.l.b16 %v216
      %v393 = vunpack.c.l.b16 %v217
      %v394 = vunpack.c.l.b16 %v218
      %v395 = vunpack.c.l.b16 %v219
      %v396 = vunpack.c.l.b16 %v220
      %v397 = vunpack.c.l.b16 %v221
      %v398 = vunpack.c.l.b16 %v222
      %v399 = vunpack.c.l.b16 %v223
      %v400 = vunpack.c.l.b16 %v224
      %v401 = vunpack.c.l.b16 %v225
      %v402 = vunpack.c.l.b16 %v226
      %v403 = vunpack.c.l.b16 %v227
      %v404 = vunpack.c.l.b16 %v228
      %v405 = vunpack.c.l.b16 %v229
      %v406 = vunpack.c.l.b16 %v230
      %v407 = vunpack.c.l.b16 %v231
      %v408 = vunpack.c.l.b16 %v232
      %v409 = vunpack.c.l.b16 %v233
      %v410 = vunpack.c.l.b16 %v234
      %v411 = vunpack.c.l.b16 %v235
      %v412 = vunpack.c.l.b16 %v236
      %v413 = vunpack.c.l.b16 %v237
      %v414 = vunpack.c.l.b16 %v238
      %v415 = vunpack.c.l.b16 %v239
      %v416 = vunpack.c.l.b16 %v240
      %v417 = vunpack.c.l.b16 %v241
      %v418 = vunpack.c.l.b16 %v242
      %v419 = vunpack.c.l.b16 %v243
      %v420 = vunpack.c.l.b16 %v244
      %v421 = vunpack.c.l.b16 %v245
      %v422 = vunpack.c.l.b16 %v246
      %v423 = vunpack.c.l.b16 %v247
      %v424 = vunpack.c.l.b16 %v248
      %v425 = vunpack.c.l.b16 %v249
      %v426 = vunpack.c.l.b16 %v250
      %v427 = vunpack.c.l.b16 %v251
      %v428 = vunpack.c.l.b16 %v252
      %v429 = vunpack.c.l.b16 %v253
      %v430 = vunpack.c.l.b16 %v254
      %v431 = vunpack.c.l.b16 %v255
      %v432 = vpack.c.b16 %v361, %v360
      %v433 = vpack.c.b16 %v363, %v362
      %v434 = vpack.c.b16 %v365, %v364
      %v435 = vpack.c.b16 %v367, %v366
      %v436 = vpack.c.b16 %v369, %v368
      %v437 = vpack.c.b16 %v371, %v370
      %v438 = vpack.c.b16 %v373, %v372
      %v439 = vpack.c.b16 %v375, %v374
      %v440 = vpack.c.b16 %v377, %v376
      %v441 = vpack.c.b16 %v379, %v378
      %v442 = vpack.c.b16 %v381, %v380
      %v443 = vpack.c.b16 %v383, %v382
      %v444 = vpack.c.b16 %v385, %v384
      %v445 = vpack.c.b16 %v387, %v386
      %v446 = vpack.c.b16 %v389, %v388
      %v447 = vpack.c.b16 %v391, %v390
      %v448 = vpack.c.b16 %v393, %v392
      %v449 = vpack.c.b16 %v395, %v394
      %v450 = vpack.c.b16 %v397, %v396
      %v451 = vpack.c.b16 %v399, %v398
      %v452 = vpack.c.b16 %v401, %v400
      %v453 = vpack.c.b16 %v403, %v402
      %v454 = vpack.c.b16 %v405, %v404
      %v455 = vpack.c.b16 %v407, %v406
      %v456 = vpack.c.b16 %v409, %v408
      %v457 = vpack.c.b16 %v411, %v410
      %v458 = vpack.c.b16 %v413, %v412
      %v459 = vpack.c.b16 %v415, %v414
      %v460 = vpack.c.b16 %v417, %v416
      %v461 = vpack.c.b16 %v419, %v418
      %v462 = vpack.c.b16 %v421, %v420
      %v463 = vpack.c.b16 %v423, %v422
      %v464 = vpack.c.b16 %v425, %v424
      %v465 = vpack.c.b16 %v427, %v426
      %v466 = vpack.c.b16 %v429, %v428
      %v467 = vpack.c.b16 %v431, %v430
      %vm504 = vcmask 523264
      %v506 = vsel %vm504, %v283, 0
      %508 = vmatprep.subr.bf16.mxu0 0
      %509 = vmatpush1.bf16.msra.mxu0 %v432
      %510 = vmatprep.subr.bf16.mxu0 0
      %511 = vmatpush1.bf16.msra.mxu0 %v433
      %512 = vmatprep.subr.bf16.mxu0 0
      %513 = vmatpush1.bf16.msra.mxu0 %v434
      %514 = vmatprep.subr.bf16.mxu0 0
      %515 = vmatpush1.bf16.msra.mxu0 %v435
      %516 = vmatprep.subr.bf16.mxu0 0
      %517 = vmatpush1.bf16.msra.mxu0 %v436
      %518 = vmatprep.subr.bf16.mxu0 0
      %519 = vmatpush1.bf16.msra.mxu0 %v437
      %520 = vmatprep.subr.bf16.mxu0 0
      %521 = vmatpush1.bf16.msra.mxu0 %v438
      %522 = vmatprep.subr.bf16.mxu0 0
      %523 = vmatpush1.bf16.msra.mxu0 %v439
      %524 = vmatprep.subr.bf16.mxu0 0
      %525 = vmatpush1.bf16.msra.mxu0 %v440
      %526 = vmatprep.subr.bf16.mxu0 0
      %527 = vmatpush1.bf16.msra.mxu0 %v441
      %528 = vmatprep.subr.bf16.mxu0 0
      %529 = vmatpush1.bf16.msra.mxu0 %v442
      %530 = vmatprep.subr.bf16.mxu0 0
      %531 = vmatpush1.bf16.msra.mxu0 %v443
      %532 = vmatprep.subr.bf16.mxu0 0
      %533 = vmatpush1.bf16.msra.mxu0 %v444
      %534 = vmatprep.subr.bf16.mxu0 0
      %535 = vmatpush1.bf16.msra.mxu0 %v445
      %536 = vmatprep.subr.bf16.mxu0 0
      %537 = vmatpush1.bf16.msra.mxu0 %v446
      %538 = vmatprep.subr.bf16.mxu0 0
      %539 = vmatpush1.bf16.msra.mxu0 %v447
      %540 = vmatprep.mubr.bf16.mxu0 %v280
      %541 = vmatmul.mubr.bf16.gmra.mrb[0].mxu0 %v279
      %v542 = vpop.f32.mrb[0].mxu0
      %v543 = vadd.f32 %v261, %v542
      %v544 = vpop.f32.mrb[0].mxu0
      %v545 = vpop.f32.mrb[0].mxu0
      %v546 = vadd.f32 %v261, %v545
      %v547 = vpop.f32.mrb[0].mxu0
      %548 = vdwg.mxu0
      %549 = vmatprep.subr.bf16.mxu0 0
      %550 = vmatpush1.bf16.msra.mxu0 %v448
      %551 = vmatprep.subr.bf16.mxu0 0
      %552 = vmatpush1.bf16.msra.mxu0 %v449
      %553 = vmatprep.subr.bf16.mxu0 0
      %554 = vmatpush1.bf16.msra.mxu0 %v450
      %555 = vmatprep.subr.bf16.mxu0 0
      %556 = vmatpush1.bf16.msra.mxu0 %v451
      %557 = vmatprep.subr.bf16.mxu0 0
      %558 = vmatpush1.bf16.msra.mxu0 %v452
      %559 = vmatprep.subr.bf16.mxu0 0
      %560 = vmatpush1.bf16.msra.mxu0 %v453
      %561 = vmatprep.subr.bf16.mxu0 0
      %562 = vmatpush1.bf16.msra.mxu0 %v454
      %563 = vmatprep.subr.bf16.mxu0 0
      %564 = vmatpush1.bf16.msra.mxu0 %v455
      %565 = vmatprep.subr.bf16.mxu0 0
      %566 = vmatpush1.bf16.msra.mxu0 %v456
      %567 = vmatprep.subr.bf16.mxu0 0
      %568 = vmatpush1.bf16.msra.mxu0 %v457
      %569 = vmatprep.subr.bf16.mxu0 0
      %570 = vmatpush1.bf16.msra.mxu0 %v458
      %571 = vmatprep.subr.bf16.mxu0 0
      %572 = vmatpush1.bf16.msra.mxu0 %v459
      %573 = vmatprep.subr.bf16.mxu0 0
      %574 = vmatpush1.bf16.msra.mxu0 %v460
      %575 = vmatprep.subr.bf16.mxu0 0
      %576 = vmatpush1.bf16.msra.mxu0 %v461
      %577 = vmatprep.subr.bf16.mxu0 0
      %578 = vmatpush1.bf16.msra.mxu0 %v462
      %579 = vmatprep.subr.bf16.mxu0 0
      %580 = vmatpush1.bf16.msra.mxu0 %v463
      %581 = vmatprep.mubr.bf16.mxu0 %v282
      %582 = vmatmul.mubr.bf16.gmra.mrb[0].mxu0 %v281
      %v583 = vpop.f32.mrb[0].mxu0
      %v584 = vadd.f32 %v543, %v583
      %v585 = vpop.f32.mrb[0].mxu0
      %v586 = vpop.f32.mrb[0].mxu0
      %v587 = vadd.f32 %v546, %v586
      %v588 = vpop.f32.mrb[0].mxu0
      %589 = vdwg.mxu0
      %590 = vmatprep.subr.bf16.mxu0 0
      %591 = vmatpush1.bf16.msra.mxu0 %v464
      %592 = vmatprep.subr.bf16.mxu0 0
      %593 = vmatpush1.bf16.msra.mxu0 %v465
      %594 = vmatprep.subr.bf16.mxu0 0
      %595 = vmatpush1.bf16.msra.mxu0 %v466
      %596 = vmatprep.subr.bf16.mxu0 0
      %597 = vmatpush1.bf16.msra.mxu0 %v467
      %598 = vmatprep.subr.bf16.mxu0 0
      %599 = vmatpush1.bf16.msra.mxu0 0
      %600 = vmatprep.subr.bf16.mxu0 0
      %601 = vmatpush1.bf16.msra.mxu0 0
      %602 = vmatprep.subr.bf16.mxu0 0
      %603 = vmatpush1.bf16.msra.mxu0 0
      %604 = vmatprep.subr.bf16.mxu0 0
      %605 = vmatpush1.bf16.msra.mxu0 0
      %606 = vmatprep.subr.bf16.mxu0 0
      %607 = vmatpush1.bf16.msra.mxu0 0
      %608 = vmatprep.subr.bf16.mxu0 0
      %609 = vmatpush1.bf16.msra.mxu0 0
      %610 = vmatprep.subr.bf16.mxu0 0
      %611 = vmatpush1.bf16.msra.mxu0 0
      %612 = vmatprep.subr.bf16.mxu0 0
      %613 = vmatpush1.bf16.msra.mxu0 0
      %614 = vmatprep.subr.bf16.mxu0 0
      %615 = vmatpush1.bf16.msra.mxu0 0
      %616 = vmatprep.subr.bf16.mxu0 0
      %617 = vmatpush1.bf16.msra.mxu0 0
      %618 = vmatprep.subr.bf16.mxu0 0
      %619 = vmatpush1.bf16.msra.mxu0 0
      %620 = vmatprep.subr.bf16.mxu0 0
      %621 = vmatpush1.bf16.msra.mxu0 0
      %622 = vmatprep.mubr.bf16.mxu0 0
      %623 = vmatmul.mubr.bf16.gmra.mrb[0].mxu0 %v506
      %v624 = vpop.f32.mrb[0].mxu0
      %v625 = vadd.f32 %v584, %v624
      %v626 = vpop.f32.mrb[0].mxu0
      %v627 = vpop.f32.mrb[0].mxu0
      %v628 = vadd.f32 %v587, %v627
      %v629 = vpop.f32.mrb[0].mxu0
      %630 = vdwg.mxu0
      %v631 = vmax.f32 %v625, 0.0
      %v632 = vmax.f32 %v628, 0.0
      %v633 = vpack.c.bf16 %v632, %v631
      %v635 = vunpack.c.l.b16 %v633
      %v636 = vunpack.c.h.b16 %v633
      %v637 = vpack.c.b16 %v635, %v635
      %v638 = vpack.c.b16 %v636, %v636
      %vm641 = vcmask 519168
      %642 = vst.msk [vmem:[%s175] sm:$0xf] %vm641, %v637
      %643 = vst.msk [vmem:[%s175 + $0x4] sm:$0xf] %vm641, %v638
      %s644 = smul.u32 2, %s14
      %p645 = scmp.lt.s32.totalorder %s644, 3
      %s646 = scalar_select %p645, %s644, 3
      %s647 = smul.addr %s646, 4
      %s648 = scalar_lea.vmem %s3, %s647
      // Predicated region
      $region33: #{cnn_q_forward.6} parent=31 // pred_check
        %p649 = pneg %p100
      $region34: #{cnn_q_forward.6} parent=31 // pred_check_branch
        %651 = sbr.rel (%p649) target = $region36
      $region35: #{cnn_q_forward.6} parent=31 // pred_region
        %s652 = smul.u32 2, %s14
      $region36: #{cnn_q_forward.6} parent=31 // pred_fallthru
        _
    $region32: #{cnn_q_forward.6} parent=5 // pred_fallthru
      _
    %p653 = scmp.le.s32.totalorder 2, %s9
    // Predicated region
    $region37: #{cnn_q_forward.6} parent=5 // pred_check
      %p654 = pneg %p653
    $region38: #{cnn_q_forward.6} parent=5 // pred_check_branch
      %656 = sbr.rel (%p654) target = $region40
    $region39: #{cnn_q_forward.6} parent=5 // pred_region
      %s657 = ssub.s32 %s9, 2
      // Predicated region
      $region41: #{cnn_q_forward.6} parent=39 // pred_check
        %p658 = pneg %p106
      $region42: #{cnn_q_forward.6} parent=39 // pred_check_branch
        %660 = sbr.rel (%p658) target = $region44
      $region43: #{cnn_q_forward.6} parent=39 // pred_region
        %s661 = smul.u32 2, %s15
        %p662 = scmp.lt.s32.totalorder %s661, 3
        %s663 = scalar_select %p662, %s661, 3
        %s664 = smul.addr %s663, 4
        %s665 = scalar_lea.vmem %s3, %s664
      $region44: #{cnn_q_forward.6} parent=39 // pred_fallthru
        _
    $region40: #{cnn_q_forward.6} parent=5 // pred_fallthru
      _
  $region6: #{cnn_q_forward.6} parent=0 // loop_footer
    %s13 = sadd.s32 1, %s9
  $region7: #{cnn_q_forward.6} parent=0 // loop_footer_branch
    %8 = sbr.rel target = $region3
  $region8: #{cnn_q_forward.6} parent=0 // loop_exit
    _

// kernel: cnn_q_forward.7
$region0: #{cnn_q_forward.7}
  #allocation0 [shape = 'u32[]', space=smem, size = 0x4, offset = 0x4, fixed_abs, tag = 'smem constant byte address 0x4 - core index']
  #allocation1 [shape = 'u32[144,128]{1,0:T(1,128)}', space=vmem, size = 0x12000, scoped, tag = 'internal scratch']
  %s0 = inlined_call_operand.vmem [shape: bf16[2,1024], index: 0, kind: input, shape index: {}]
  %s1 = inlined_call_operand.vmem [shape: bf16[2,4], index: 1, kind: input, shape index: {}]
  %s2 = inlined_call_operand.vmem [shape: bf16[4,64], index: 2, kind: input, shape index: {}]
  %s3 = inlined_call_operand.vmem [shape: f32[1,64], index: 3, kind: input, shape index: {}]
  %s4 = inlined_call_operand.vmem [shape: bf16[64,64], index: 4, kind: input, shape index: {}]
  %s5 = inlined_call_operand.vmem [shape: f32[1,64], index: 5, kind: input, shape index: {}]
  %s6 = inlined_call_operand.vmem [shape: bf16[64,512], index: 6, kind: input, shape index: {}]
  %s7 = inlined_call_operand.vmem [shape: f32[1,512], index: 7, kind: input, shape index: {}]
  %s8 = inlined_call_operand.vmem [shape: bf16[1024,512], index: 8, kind: input, shape index: {}]
  %s9 = inlined_call_operand.vmem [shape: f32[1,512], index: 9, kind: input, shape index: {}]
  %s10 = inlined_call_operand.vmem [shape: bf16[512,64], index: 10, kind: input, shape index: {}]
  %s11 = inlined_call_operand.vmem [shape: bf16[512,64], index: 11, kind: input, shape index: {}]
  %s12 = inlined_call_operand.vmem [shape: f32[1,64], index: 12, kind: input, shape index: {}]
  %s13 = inlined_call_operand.vmem [shape: bf16[64,4], index: 13, kind: input, shape index: {}]
  %s14 = inlined_call_operand.vmem [shape: f32[1,4], index: 14, kind: input, shape index: {}]
  %s15 = inlined_call_operand.hbm [shape: f32[2,4], index: 15, kind: output, shape index: {}]
  %s16 = sld [smem:[#allocation0]]
  $region70: #{cnn_q_forward.7} parent=0
    _
  %s18 = ssub.s32 1, %s16
  %s19 = scalar_select 0, %s18, %s16
  $region1: #{cnn_q_forward.7} parent=0
    #allocation2 [shape = 'u8[8192]{0}', space=vmem, size = 0x2000, scoped, tag = 'output window, operand 0, single buffered']
    #allocation3 [shape = 's32[1]{0}', space=sflag, size = 0x4, scoped, tag = 'scoped memory for cnn_q_forward.7']
    %20 = vsyncpa [#allocation3], 0
    // Predicated region
    $region2: #{cnn_q_forward.7} parent=1 // pred_check
      _
    $region3: #{cnn_q_forward.7} parent=1 // pred_check_branch
      %22 = sbr.rel (0) target = $region5
    $region4: #{cnn_q_forward.7} parent=1 // pred_region
      _
    $region5: #{cnn_q_forward.7} parent=1 // pred_fallthru
      _
    // Predicated region
    $region6: #{cnn_q_forward.7} parent=1 // pred_check
      _
    $region7: #{cnn_q_forward.7} parent=1 // pred_check_branch
      %24 = sbr.rel (0) target = $region9
    $region8: #{cnn_q_forward.7} parent=1 // pred_region
      _
    $region9: #{cnn_q_forward.7} parent=1 // pred_fallthru
      _
    // Predicated region
    $region10: #{cnn_q_forward.7} parent=1 // pred_check
      _
    $region11: #{cnn_q_forward.7} parent=1 // pred_check_branch
      %26 = sbr.rel (0) target = $region13
    $region12: #{cnn_q_forward.7} parent=1 // pred_region
      _
    $region13: #{cnn_q_forward.7} parent=1 // pred_fallthru
      _
    // Predicated region
    $region14: #{cnn_q_forward.7} parent=1 // pred_check
      _
    $region15: #{cnn_q_forward.7} parent=1 // pred_check_branch
      %28 = sbr.rel (0) target = $region17
    $region16: #{cnn_q_forward.7} parent=1 // pred_region
      _
    $region17: #{cnn_q_forward.7} parent=1 // pred_fallthru
      _
    // Predicated region
    $region18: #{cnn_q_forward.7} parent=1 // pred_check
      _
    $region19: #{cnn_q_forward.7} parent=1 // pred_check_branch
      %30 = sbr.rel (0) target = $region21
    $region20: #{cnn_q_forward.7} parent=1 // pred_region
      _
    $region21: #{cnn_q_forward.7} parent=1 // pred_fallthru
      _
    // Predicated region
    $region22: #{cnn_q_forward.7} parent=1 // pred_check
      _
    $region23: #{cnn_q_forward.7} parent=1 // pred_check_branch
      %32 = sbr.rel (0) target = $region25
    $region24: #{cnn_q_forward.7} parent=1 // pred_region
      _
    $region25: #{cnn_q_forward.7} parent=1 // pred_fallthru
      _
    // Predicated region
    $region26: #{cnn_q_forward.7} parent=1 // pred_check
      _
    $region27: #{cnn_q_forward.7} parent=1 // pred_check_branch
      %34 = sbr.rel (0) target = $region29
    $region28: #{cnn_q_forward.7} parent=1 // pred_region
      _
    $region29: #{cnn_q_forward.7} parent=1 // pred_fallthru
      _
    // Predicated region
    $region30: #{cnn_q_forward.7} parent=1 // pred_check
      _
    $region31: #{cnn_q_forward.7} parent=1 // pred_check_branch
      %36 = sbr.rel (0) target = $region33
    $region32: #{cnn_q_forward.7} parent=1 // pred_region
      _
    $region33: #{cnn_q_forward.7} parent=1 // pred_fallthru
      _
    // Predicated region
    $region34: #{cnn_q_forward.7} parent=1 // pred_check
      _
    $region35: #{cnn_q_forward.7} parent=1 // pred_check_branch
      %38 = sbr.rel (0) target = $region37
    $region36: #{cnn_q_forward.7} parent=1 // pred_region
      _
    $region37: #{cnn_q_forward.7} parent=1 // pred_fallthru
      _
    // Predicated region
    $region38: #{cnn_q_forward.7} parent=1 // pred_check
      _
    $region39: #{cnn_q_forward.7} parent=1 // pred_check_branch
      %40 = sbr.rel (0) target = $region41
    $region40: #{cnn_q_forward.7} parent=1 // pred_region
      _
    $region41: #{cnn_q_forward.7} parent=1 // pred_fallthru
      _
    // Predicated region
    $region42: #{cnn_q_forward.7} parent=1 // pred_check
      _
    $region43: #{cnn_q_forward.7} parent=1 // pred_check_branch
      %42 = sbr.rel (0) target = $region45
    $region44: #{cnn_q_forward.7} parent=1 // pred_region
      _
    $region45: #{cnn_q_forward.7} parent=1 // pred_fallthru
      _
    // Predicated region
    $region46: #{cnn_q_forward.7} parent=1 // pred_check
      _
    $region47: #{cnn_q_forward.7} parent=1 // pred_check_branch
      %44 = sbr.rel (0) target = $region49
    $region48: #{cnn_q_forward.7} parent=1 // pred_region
      _
    $region49: #{cnn_q_forward.7} parent=1 // pred_fallthru
      _
    // Predicated region
    $region50: #{cnn_q_forward.7} parent=1 // pred_check
      _
    $region51: #{cnn_q_forward.7} parent=1 // pred_check_branch
      %46 = sbr.rel (0) target = $region53
    $region52: #{cnn_q_forward.7} parent=1 // pred_region
      _
    $region53: #{cnn_q_forward.7} parent=1 // pred_fallthru
      _
    // Predicated region
    $region54: #{cnn_q_forward.7} parent=1 // pred_check
      _
    $region55: #{cnn_q_forward.7} parent=1 // pred_check_branch
      %48 = sbr.rel (0) target = $region57
    $region56: #{cnn_q_forward.7} parent=1 // pred_region
      _
    $region57: #{cnn_q_forward.7} parent=1 // pred_fallthru
      _
    // Predicated region
    $region58: #{cnn_q_forward.7} parent=1 // pred_check
      _
    $region59: #{cnn_q_forward.7} parent=1 // pred_check_branch
      %50 = sbr.rel (0) target = $region61
    $region60: #{cnn_q_forward.7} parent=1 // pred_region
      _
    $region61: #{cnn_q_forward.7} parent=1 // pred_fallthru
      _
    %v52 = vld [vmem:[%s1] sm:$0x1]
    %v53 = vld [vmem:[%s1 + $0x1] sm:$0x1]
    %v54 = vld [vmem:[%s1 + $0x2] sm:$0x1]
    %v55 = vld [vmem:[%s1 + $0x3] sm:$0x1]
    %v56 = vld [vmem:[%s1 + $0x4] sm:$0x1]
    %v57 = vld [vmem:[%s1 + $0x5] sm:$0x1]
    %v58 = vld [vmem:[%s1 + $0x6] sm:$0x1]
    %v59 = vld [vmem:[%s1 + $0x7] sm:$0x1]
    %v60 = vld [vmem:[%s2] sm:$0x3]
    %v61 = vld [vmem:[%s3] sm:$0x1]
    %v63 = vlaneseq
    %v64 = vshrl.u32 %v63, 7
    %v65 = vsub.s32 0, %v64
    %v66 = vrot.slane %v61, %v65
    %v76 = vcombine.low %v52, %v53
    %v77 = vcombine.low %v54, %v55
    %v78 = vcombine.low %v56, %v57
    %v79 = vcombine.low %v58, %v59
    %v81 = vunpack.c.l.s4 1966171168
    %v82 = vunpack.c.0.s8 %v81
    %v83 = vlaneseq
    %v84 = vshrl.u32 %v83, 7
    %v85 = vsub.s32 %v82, %v84
    %v86 = vrot.slane %v76, %v85
    %v88 = vunpack.c.l.s4 1966171168
    %v89 = vunpack.c.0.s8 %v88
    %v90 = vlaneseq
    %v91 = vshrl.u32 %v90, 7
    %v92 = vsub.s32 %v89, %v91
    %v93 = vrot.slane %v77, %v92
    %v95 = vunpack.c.l.s4 1966171168
    %v96 = vunpack.c.0.s8 %v95
    %v97 = vlaneseq
    %v98 = vshrl.u32 %v97, 7
    %v99 = vsub.s32 %v96, %v98
    %v100 = vrot.slane %v78, %v99
    %v102 = vunpack.c.l.s4 1966171168
    %v103 = vunpack.c.0.s8 %v102
    %v104 = vlaneseq
    %v105 = vshrl.u32 %v104, 7
    %v106 = vsub.s32 %v103, %v105
    %v107 = vrot.slane %v79, %v106
    %v108 = vcombine.low %v86, %v93
    %v109 = vcombine.low %v100, %v107
    %v111 = vunpack.c.l.s4 1966171168
    %v112 = vunpack.c.0.s8 %v111
    %v113 = vlaneseq
    %v114 = vshrl.u32 %v113, 7
    %v115 = vsub.s32 %v112, %v114
    %v116 = vrot.slane %v108, %v115
    %v118 = vunpack.c.l.s4 1966171168
    %v119 = vunpack.c.0.s8 %v118
    %v120 = vlaneseq
    %v121 = vshrl.u32 %v120, 7
    %v122 = vsub.s32 %v119, %v121
    %v123 = vrot.slane %v109, %v122
    %v124 = vcombine.low %v116, %v123
    %vm125 = vcmask 31744
    %v127 = vsel %vm125, %v124, 0
    %vm129 = vcmask 1041408
    %v131 = vsel %vm129, %v60, 0
    %133 = vmatprep.subr.bf16.mxu0 0
    %134 = vmatpush1.bf16.msra.mxu0 %v131
    %135 = vmatprep.subr.bf16.mxu0 0
    %136 = vmatpush1.bf16.msra.mxu0 0
    %137 = vmatprep.subr.bf16.mxu0 0
    %138 = vmatpush1.bf16.msra.mxu0 0
    %139 = vmatprep.subr.bf16.mxu0 0
    %140 = vmatpush1.bf16.msra.mxu0 0
    %141 = vmatprep.subr.bf16.mxu0 0
    %142 = vmatpush1.bf16.msra.mxu0 0
    %143 = vmatprep.subr.bf16.mxu0 0
    %144 = vmatpush1.bf16.msra.mxu0 0
    %145 = vmatprep.subr.bf16.mxu0 0
    %146 = vmatpush1.bf16.msra.mxu0 0
    %147 = vmatprep.subr.bf16.mxu0 0
    %148 = vmatpush1.bf16.msra.mxu0 0
    %149 = vmatprep.subr.bf16.mxu0 0
    %150 = vmatpush1.bf16.msra.mxu0 0
    %151 = vmatprep.subr.bf16.mxu0 0
    %152 = vmatpush1.bf16.msra.mxu0 0
    %153 = vmatprep.subr.bf16.mxu0 0
    %154 = vmatpush1.bf16.msra.mxu0 0
    %155 = vmatprep.subr.bf16.mxu0 0
    %156 = vmatpush1.bf16.msra.mxu0 0
    %157 = vmatprep.subr.bf16.mxu0 0
    %158 = vmatpush1.bf16.msra.mxu0 0
    %159 = vmatprep.subr.bf16.mxu0 0
    %160 = vmatpush1.bf16.msra.mxu0 0
    %161 = vmatprep.subr.bf16.mxu0 0
    %162 = vmatpush1.bf16.msra.mxu0 0
    %163 = vmatprep.subr.bf16.mxu0 0
    %164 = vmatpush1.bf16.msra.mxu0 0
    %165 = vmatprep.mubr.bf16.mxu0 0
    %166 = vmatmul.mubr.bf16.gmra.mrb[0].mxu0 %v127
    %v167 = vpop.f32.mrb[0].mxu0
    %v168 = vadd.f32 %v66, %v167
    %v169 = vpop.f32.mrb[0].mxu0
    %v170 = vpop.f32.mrb[0].mxu0
    %v171 = vadd.f32 %v66, %v170
    %v172 = vpop.f32.mrb[0].mxu0
    %173 = vdwg.mxu0
    %v174 = vmax.f32 %v168, 0.0
    %v175 = vmax.f32 %v171, 0.0
    %v176 = vpack.c.bf16 %v175, %v174
    %v177 = vld [vmem:[%s4] sm:$0xf]
    %v178 = vld [vmem:[%s4 + $0x4] sm:$0xf]
    %v179 = vld [vmem:[%s4 + $0x8] sm:$0xf]
    %v180 = vld [vmem:[%s4 + $0xc] sm:$0xf]
    %v181 = vld [vmem:[%s4 + $0x10] sm:$0xf]
    %v182 = vld [vmem:[%s4 + $0x14] sm:$0xf]
    %v183 = vld [vmem:[%s4 + $0x18] sm:$0xf]
    %v184 = vld [vmem:[%s4 + $0x1c] sm:$0xf]
    %v185 = vld [vmem:[%s5] sm:$0x1]
    %v187 = vlaneseq
    %v188 = vshrl.u32 %v187, 7
    %v189 = vsub.s32 0, %v188
    %v190 = vrot.slane %v185, %v189
    %v200 = vunpack.c.l.b16 %v177
    %v201 = vunpack.c.l.b16 %v178
    %v202 = vunpack.c.l.b16 %v179
    %v203 = vunpack.c.l.b16 %v180
    %v204 = vunpack.c.l.b16 %v181
    %v205 = vunpack.c.l.b16 %v182
    %v206 = vunpack.c.l.b16 %v183
    %v207 = vunpack.c.l.b16 %v184
    %v208 = vpack.c.b16 %v201, %v200
    %v209 = vpack.c.b16 %v203, %v202
    %v210 = vpack.c.b16 %v205, %v204
    %v211 = vpack.c.b16 %v207, %v206
    %vm216 = vcmask 523264
    %v218 = vsel %vm216, %v176, 0
    %220 = vmatprep.subr.bf16.mxu0 0
    %221 = vmatpush1.bf16.msra.mxu0 %v208
    %222 = vmatprep.subr.bf16.mxu0 0
    %223 = vmatpush1.bf16.msra.mxu0 %v209
    %224 = vmatprep.subr.bf16.mxu0 0
    %225 = vmatpush1.bf16.msra.mxu0 %v210
    %226 = vmatprep.subr.bf16.mxu0 0
    %227 = vmatpush1.bf16.msra.mxu0 %v211
    %228 = vmatprep.subr.bf16.mxu0 0
    %229 = vmatpush1.bf16.msra.mxu0 0
    %230 = vmatprep.subr.bf16.mxu0 0
    %231 = vmatpush1.bf16.msra.mxu0 0
    %232 = vmatprep.subr.bf16.mxu0 0
    %233 = vmatpush1.bf16.msra.mxu0 0
    %234 = vmatprep.subr.bf16.mxu0 0
    %235 = vmatpush1.bf16.msra.mxu0 0
    %236 = vmatprep.subr.bf16.mxu0 0
    %237 = vmatpush1.bf16.msra.mxu0 0
    %238 = vmatprep.subr.bf16.mxu0 0
    %239 = vmatpush1.bf16.msra.mxu0 0
    %240 = vmatprep.subr.bf16.mxu0 0
    %241 = vmatpush1.bf16.msra.mxu0 0
    %242 = vmatprep.subr.bf16.mxu0 0
    %243 = vmatpush1.bf16.msra.mxu0 0
    %244 = vmatprep.subr.bf16.mxu0 0
    %245 = vmatpush1.bf16.msra.mxu0 0
    %246 = vmatprep.subr.bf16.mxu0 0
    %247 = vmatpush1.bf16.msra.mxu0 0
    %248 = vmatprep.subr.bf16.mxu0 0
    %249 = vmatpush1.bf16.msra.mxu0 0
    %250 = vmatprep.subr.bf16.mxu0 0
    %251 = vmatpush1.bf16.msra.mxu0 0
    %252 = vmatprep.mubr.bf16.mxu0 0
    %253 = vmatmul.mubr.bf16.gmra.mrb[0].mxu0 %v218
    %v254 = vpop.f32.mrb[0].mxu0
    %v255 = vadd.f32 %v190, %v254
    %v256 = vpop.f32.mrb[0].mxu0
    %v257 = vpop.f32.mrb[0].mxu0
    %v258 = vadd.f32 %v190, %v257
    %v259 = vpop.f32.mrb[0].mxu0
    %260 = vdwg.mxu0
    %v261 = vmax.f32 %v255, 0.0
    %v262 = vmax.f32 %v258, 0.0
    %v263 = vpack.c.bf16 %v262, %v261
    %v264 = vld [vmem:[%s6] sm:$0xff]
    %v265 = vld [vmem:[%s6 + $0x8] sm:$0xff]
    %v266 = vld [vmem:[%s6 + $0x10] sm:$0xff]
    %v267 = vld [vmem:[%s6 + $0x18] sm:$0xff]
    %v268 = vld [vmem:[%s6 + $0x20] sm:$0xff]
    %v269 = vld [vmem:[%s6 + $0x28] sm:$0xff]
    %v270 = vld [vmem:[%s6 + $0x30] sm:$0xff]
    %v271 = vld [vmem:[%s6 + $0x38] sm:$0xff]
    %v272 = vld [vmem:[%s6 + $0x40] sm:$0xff]
    %v273 = vld [vmem:[%s6 + $0x48] sm:$0xff]
    %v274 = vld [vmem:[%s6 + $0x50] sm:$0xff]
    %v275 = vld [vmem:[%s6 + $0x58] sm:$0xff]
    %v276 = vld [vmem:[%s6 + $0x60] sm:$0xff]
    %v277 = vld [vmem:[%s6 + $0x68] sm:$0xff]
    %v278 = vld [vmem:[%s6 + $0x70] sm:$0xff]
    %v279 = vld [vmem:[%s6 + $0x78] sm:$0xff]
    %v280 = vld [vmem:[%s7] sm:$0xf]
    %v282 = vlaneseq
    %v283 = vshrl.u32 %v282, 7
    %v284 = vsub.s32 0, %v283
    %v285 = vrot.slane %v280, %v284
    %v286 = vlaneseq
    %v287 = vshrl.u32 %v286, 7
    %v288 = vsub.s32 1, %v287
    %v289 = vrot.slane %v280, %v288
    %v290 = vlaneseq
    %v291 = vshrl.u32 %v290, 7
    %v292 = vsub.s32 2, %v291
    %v293 = vrot.slane %v280, %v292
    %v294 = vlaneseq
    %v295 = vshrl.u32 %v294, 7
    %v296 = vsub.s32 3, %v295
    %v297 = vrot.slane %v280, %v296
    %v318 = vunpack.c.l.b16 %v264
    %v319 = vunpack.c.h.b16 %v264
    %v320 = vunpack.c.l.b16 %v265
    %v321 = vunpack.c.h.b16 %v265
    %v322 = vunpack.c.l.b16 %v266
    %v323 = vunpack.c.h.b16 %v266
    %v324 = vunpack.c.l.b16 %v267
    %v325 = vunpack.c.h.b16 %v267
    %v326 = vunpack.c.l.b16 %v268
    %v327 = vunpack.c.h.b16 %v268
    %v328 = vunpack.c.l.b16 %v269
    %v329 = vunpack.c.h.b16 %v269
    %v330 = vunpack.c.l.b16 %v270
    %v331 = vunpack.c.h.b16 %v270
    %v332 = vunpack.c.l.b16 %v271
    %v333 = vunpack.c.h.b16 %v271
    %v334 = vunpack.c.l.b16 %v272
    %v335 = vunpack.c.h.b16 %v272
    %v336 = vunpack.c.l.b16 %v273
    %v337 = vunpack.c.h.b16 %v273
    %v338 = vunpack.c.l.b16 %v274
    %v339 = vunpack.c.h.b16 %v274
    %v340 = vunpack.c.l.b16 %v275
    %v341 = vunpack.c.h.b16 %v275
    %v342 = vunpack.c.l.b16 %v276
    %v343 = vunpack.c.h.b16 %v276
    %v344 = vunpack.c.l.b16 %v277
    %v345 = vunpack.c.h.b16 %v277
    %v346 = vunpack.c.l.b16 %v278
    %v347 = vunpack.c.h.b16 %v278
    %v348 = vunpack.c.l.b16 %v279
    %v349 = vunpack.c.h.b16 %v279
    %v350 = vpack.c.b16 %v322, %v318
    %v351 = vpack.c.b16 %v323, %v319
    %v352 = vpack.c.b16 %v324, %v320
    %v353 = vpack.c.b16 %v325, %v321
    %v354 = vpack.c.b16 %v330, %v326
    %v355 = vpack.c.b16 %v331, %v327
    %v356 = vpack.c.b16 %v332, %v328
    %v357 = vpack.c.b16 %v333, %v329
    %v358 = vpack.c.b16 %v338, %v334
    %v359 = vpack.c.b16 %v339, %v335
    %v360 = vpack.c.b16 %v340, %v336
    %v361 = vpack.c.b16 %v341, %v337
    %v362 = vpack.c.b16 %v346, %v342
    %v363 = vpack.c.b16 %v347, %v343
    %v364 = vpack.c.b16 %v348, %v344
    %v365 = vpack.c.b16 %v349, %v345
    %v383 = vsel %vm216, %v263, 0
    %385 = vmatprep.subr.bf16.mxu0 %v351
    %386 = vmatpush1.bf16.msra.mxu0 %v350
    %387 = vmatprep.subr.bf16.mxu0 %v355
    %388 = vmatpush1.bf16.msra.mxu0 %v354
    %389 = vmatprep.subr.bf16.mxu0 %v359
    %390 = vmatpush1.bf16.msra.mxu0 %v358
    %391 = vmatprep.subr.bf16.mxu0 %v363
    %392 = vmatpush1.bf16.msra.mxu0 %v362
    %393 = vmatprep.subr.bf16.mxu0 0
    %394 = vmatpush1.bf16.msra.mxu0 0
    %395 = vmatprep.subr.bf16.mxu0 0
    %396 = vmatpush1.bf16.msra.mxu0 0
    %397 = vmatprep.subr.bf16.mxu0 0
    %398 = vmatpush1.bf16.msra.mxu0 0
    %399 = vmatprep.subr.bf16.mxu0 0
    %400 = vmatpush1.bf16.msra.mxu0 0
    %401 = vmatprep.subr.bf16.mxu0 0
    %402 = vmatpush1.bf16.msra.mxu0 0
    %403 = vmatprep.subr.bf16.mxu0 0
    %404 = vmatpush1.bf16.msra.mxu0 0
    %405 = vmatprep.subr.bf16.mxu0 0
    %406 = vmatpush1.bf16.msra.mxu0 0
    %407 = vmatprep.subr.bf16.mxu0 0
    %408 = vmatpush1.bf16.msra.mxu0 0
    %409 = vmatprep.subr.bf16.mxu0 0
    %410 = vmatpush1.bf16.msra.mxu0 0
    %411 = vmatprep.subr.bf16.mxu0 0
    %412 = vmatpush1.bf16.msra.mxu0 0
    %413 = vmatprep.subr.bf16.mxu0 0
    %414 = vmatpush1.bf16.msra.mxu0 0
    %415 = vmatprep.subr.bf16.mxu0 0
    %416 = vmatpush1.bf16.msra.mxu0 0
    %417 = vmatprep.mubr.bf16.mxu0 0
    %418 = vmatmul.mubr.bf16.gmra.mrb[0].mxu0 %v383
    %v419 = vpop.f32.mrb[0].mxu0
    %v420 = vadd.f32 %v285, %v419
    %v421 = vpop.f32.mrb[0].mxu0
    %v422 = vadd.f32 %v289, %v421
    %v423 = vpop.f32.mrb[0].mxu0
    %v424 = vadd.f32 %v285, %v423
    %v425 = vpop.f32.mrb[0].mxu0
    %v426 = vadd.f32 %v289, %v425
    %427 = vdwg.mxu0
    %428 = vmatprep.subr.bf16.mxu0 %v353
    %429 = vmatpush1.bf16.msra.mxu0 %v352
    %430 = vmatprep.subr.bf16.mxu0 %v357
    %431 = vmatpush1.bf16.msra.mxu0 %v356
    %432 = vmatprep.subr.bf16.mxu0 %v361
    %433 = vmatpush1.bf16.msra.mxu0 %v360
    %434 = vmatprep.subr.bf16.mxu0 %v365
    %435 = vmatpush1.bf16.msra.mxu0 %v364
    %436 = vmatprep.subr.bf16.mxu0 0
    %437 = vmatpush1.bf16.msra.mxu0 0
    %438 = vmatprep.subr.bf16.mxu0 0
    %439 = vmatpush1.bf16.msra.mxu0 0
    %440 = vmatprep.subr.bf16.mxu0 0
    %441 = vmatpush1.bf16.msra.mxu0 0
    %442 = vmatprep.subr.bf16.mxu0 0
    %443 = vmatpush1.bf16.msra.mxu0 0
    %444 = vmatprep.subr.bf16.mxu0 0
    %445 = vmatpush1.bf16.msra.mxu0 0
    %446 = vmatprep.subr.bf16.mxu0 0
    %447 = vmatpush1.bf16.msra.mxu0 0
    %448 = vmatprep.subr.bf16.mxu0 0
    %449 = vmatpush1.bf16.msra.mxu0 0
    %450 = vmatprep.subr.bf16.mxu0 0
    %451 = vmatpush1.bf16.msra.mxu0 0
    %452 = vmatprep.subr.bf16.mxu0 0
    %453 = vmatpush1.bf16.msra.mxu0 0
    %454 = vmatprep.subr.bf16.mxu0 0
    %455 = vmatpush1.bf16.msra.mxu0 0
    %456 = vmatprep.subr.bf16.mxu0 0
    %457 = vmatpush1.bf16.msra.mxu0 0
    %458 = vmatprep.subr.bf16.mxu0 0
    %459 = vmatpush1.bf16.msra.mxu0 0
    %460 = vmatprep.mubr.bf16.mxu0 0
    %461 = vmatmul.mubr.bf16.gmra.mrb[0].mxu0 %v383
    %v462 = vpop.f32.mrb[0].mxu0
    %v463 = vadd.f32 %v293, %v462
    %v464 = vpop.f32.mrb[0].mxu0
    %v465 = vadd.f32 %v297, %v464
    %v466 = vpop.f32.mrb[0].mxu0
    %v467 = vadd.f32 %v293, %v466
    %v468 = vpop.f32.mrb[0].mxu0
    %v469 = vadd.f32 %v297, %v468
    %470 = vdwg.mxu0
    %v471 = vmax.f32 %v420, 0.0
    %v472 = vmax.f32 %v422, 0.0
    %v473 = vmax.f32 %v463, 0.0
    %v474 = vmax.f32 %v465, 0.0
    %v475 = vmax.f32 %v424, 0.0
    %v476 = vmax.f32 %v426, 0.0
    %v477 = vmax.f32 %v467, 0.0
    %v478 = vmax.f32 %v469, 0.0
    %v479 = vpack.c.bf16 %v475, %v471
    %v480 = vpack.c.bf16 %v476, %v472
    %v481 = vpack.c.bf16 %v477, %v473
    %v482 = vpack.c.bf16 %v478, %v474
    %v483 = vld [vmem:[%s0] sm:$0xff]
    %v484 = vld [vmem:[%s0 + $0x8] sm:$0xff]
    %v485 = vld [vmem:[%s0 + $0x10] sm:$0xff]
    %v486 = vld [vmem:[%s0 + $0x18] sm:$0xff]
    %v487 = vld [vmem:[%s0 + $0x20] sm:$0xff]
    %v488 = vld [vmem:[%s0 + $0x28] sm:$0xff]
    %v489 = vld [vmem:[%s0 + $0x30] sm:$0xff]
    %v490 = vld [vmem:[%s0 + $0x38] sm:$0xff]
    %v491 = vld [vmem:[%s8] sm:$0xff]
    %v492 = vld [vmem:[%s8 + $0x8] sm:$0xff]
    %v493 = vld [vmem:[%s8 + $0x10] sm:$0xff]
    %v494 = vld [vmem:[%s8 + $0x18] sm:$0xff]
    %v495 = vld [vmem:[%s8 + $0x20] sm:$0xff]
    %v496 = vld [vmem:[%s8 + $0x28] sm:$0xff]
    %v497 = vld [vmem:[%s8 + $0x30] sm:$0xff]
    %v498 = vld [vmem:[%s8 + $0x38] sm:$0xff]
    %v499 = vld [vmem:[%s8 + $0x40] sm:$0xff]
    %v500 = vld [vmem:[%s8 + $0x48] sm:$0xff]
    %v501 = vld [vmem:[%s8 + $0x50] sm:$0xff]
    %v502 = vld [vmem:[%s8 + $0x58] sm:$0xff]
    %v503 = vld [vmem:[%s8 + $0x60] sm:$0xff]
    %v504 = vld [vmem:[%s8 + $0x68] sm:$0xff]
    %v505 = vld [vmem:[%s8 + $0x70] sm:$0xff]
    %v506 = vld [vmem:[%s8 + $0x78] sm:$0xff]
    %v507 = vld [vmem:[%s8 + $0x80] sm:$0xff]
    %v508 = vld [vmem:[%s8 + $0x88] sm:$0xff]
    %v509 = vld [vmem:[%s8 + $0x90] sm:$0xff]
    %v510 = vld [vmem:[%s8 + $0x98] sm:$0xff]
    %v511 = vld [vmem:[%s8 + $0xa0] sm:$0xff]
    %v512 = vld [vmem:[%s8 + $0xa8] sm:$0xff]
    %v513 = vld [vmem:[%s8 + $0xb0] sm:$0xff]
    %v514 = vld [vmem:[%s8 + $0xb8] sm:$0xff]
    %v515 = vld [vmem:[%s8 + $0xc0] sm:$0xff]
    %v516 = vld [vmem:[%s8 + $0xc8] sm:$0xff]
    %v517 = vld [vmem:[%s8 + $0xd0] sm:$0xff]
    %v518 = vld [vmem:[%s8 + $0xd8] sm:$0xff]
    %v519 = vld [vmem:[%s8 + $0xe0] sm:$0xff]
    %v520 = vld [vmem:[%s8 + $0xe8] sm:$0xff]
    %v521 = vld [vmem:[%s8 + $0xf0] sm:$0xff]
    %v522 = vld [vmem:[%s8 + $0xf8] sm:$0xff]
    %v523 = vld [vmem:[%s8 + $0x100] sm:$0xff]
    %v524 = vld [vmem:[%s8 + $0x108] sm:$0xff]
    %v525 = vld [vmem:[%s8 + $0x110] sm:$0xff]
    %v526 = vld [vmem:[%s8 + $0x118] sm:$0xff]
    %v527 = vld [vmem:[%s8 + $0x120] sm:$0xff]
    %v528 = vld [vmem:[%s8 + $0x128] sm:$0xff]
    %v529 = vld [vmem:[%s8 + $0x130] sm:$0xff]
    %v530 = vld [vmem:[%s8 + $0x138] sm:$0xff]
    %v531 = vld [vmem:[%s8 + $0x140] sm:$0xff]
    %v532 = vld [vmem:[%s8 + $0x148] sm:$0xff]
    %v533 = vld [vmem:[%s8 + $0x150] sm:$0xff]
    %v534 = vld [vmem:[%s8 + $0x158] sm:$0xff]
    %v535 = vld [vmem:[%s8 + $0x160] sm:$0xff]
    %v536 = vld [vmem:[%s8 + $0x168] sm:$0xff]
    %v537 = vld [vmem:[%s8 + $0x170] sm:$0xff]
    %v538 = vld [vmem:[%s8 + $0x178] sm:$0xff]
    %v539 = vld [vmem:[%s8 + $0x180] sm:$0xff]
    %v540 = vld [vmem:[%s8 + $0x188] sm:$0xff]
    %v541 = vld [vmem:[%s8 + $0x190] sm:$0xff]
    %v542 = vld [vmem:[%s8 + $0x198] sm:$0xff]
    %v543 = vld [vmem:[%s8 + $0x1a0] sm:$0xff]
    %v544 = vld [vmem:[%s8 + $0x1a8] sm:$0xff]
    %v545 = vld [vmem:[%s8 + $0x1b0] sm:$0xff]
    %v546 = vld [vmem:[%s8 + $0x1b8] sm:$0xff]
    %v547 = vld [vmem:[%s8 + $0x1c0] sm:$0xff]
    %v548 = vld [vmem:[%s8 + $0x1c8] sm:$0xff]
    %v549 = vld [vmem:[%s8 + $0x1d0] sm:$0xff]
    %v550 = vld [vmem:[%s8 + $0x1d8] sm:$0xff]
    %v551 = vld [vmem:[%s8 + $0x1e0] sm:$0xff]
    %v552 = vld [vmem:[%s8 + $0x1e8] sm:$0xff]
    %v553 = vld [vmem:[%s8 + $0x1f0] sm:$0xff]
    %v554 = vld [vmem:[%s8 + $0x1f8] sm:$0xff]
    %v555 = vld [vmem:[%s8 + $0x200] sm:$0xff]
    %v556 = vld [vmem:[%s8 + $0x208] sm:$0xff]
    %v557 = vld [vmem:[%s8 + $0x210] sm:$0xff]
    %v558 = vld [vmem:[%s8 + $0x218] sm:$0xff]
    %v559 = vld [vmem:[%s8 + $0x220] sm:$0xff]
    %v560 = vld [vmem:[%s8 + $0x228] sm:$0xff]
    %v561 = vld [vmem:[%s8 + $0x230] sm:$0xff]
    %v562 = vld [vmem:[%s8 + $0x238] sm:$0xff]
    %v563 = vld [vmem:[%s8 + $0x240] sm:$0xff]
    %v564 = vld [vmem:[%s8 + $0x248] sm:$0xff]
    %v565 = vld [vmem:[%s8 + $0x250] sm:$0xff]
    %v566 = vld [vmem:[%s8 + $0x258] sm:$0xff]
    %v567 = vld [vmem:[%s8 + $0x260] sm:$0xff]
    %v568 = vld [vmem:[%s8 + $0x268] sm:$0xff]
    %v569 = vld [vmem:[%s8 + $0x270] sm:$0xff]
    %v570 = vld [vmem:[%s8 + $0x278] sm:$0xff]
    %v571 = vld [vmem:[%s8 + $0x280] sm:$0xff]
    %v572 = vld [vmem:[%s8 + $0x288] sm:$0xff]
    %v573 = vld [vmem:[%s8 + $0x290] sm:$0xff]
    %v574 = vld [vmem:[%s8 + $0x298] sm:$0xff]
    %v575 = vld [vmem:[%s8 + $0x2a0] sm:$0xff]
    %v576 = vld [vmem:[%s8 + $0x2a8] sm:$0xff]
    %v577 = vld [vmem:[%s8 + $0x2b0] sm:$0xff]
    %v578 = vld [vmem:[%s8 + $0x2b8] sm:$0xff]
    %v579 = vld [vmem:[%s8 + $0x2c0] sm:$0xff]
    %v580 = vld [vmem:[%s8 + $0x2c8] sm:$0xff]
    %v581 = vld [vmem:[%s8 + $0x2d0] sm:$0xff]
    %v582 = vld [vmem:[%s8 + $0x2d8] sm:$0xff]
    %v583 = vld [vmem:[%s8 + $0x2e0] sm:$0xff]
    %v584 = vld [vmem:[%s8 + $0x2e8] sm:$0xff]
    %v585 = vld [vmem:[%s8 + $0x2f0] sm:$0xff]
    %v586 = vld [vmem:[%s8 + $0x2f8] sm:$0xff]
    %v587 = vld [vmem:[%s8 + $0x300] sm:$0xff]
    %v588 = vld [vmem:[%s8 + $0x308] sm:$0xff]
    %v589 = vld [vmem:[%s8 + $0x310] sm:$0xff]
    %v590 = vld [vmem:[%s8 + $0x318] sm:$0xff]
    %v591 = vld [vmem:[%s8 + $0x320] sm:$0xff]
    %v592 = vld [vmem:[%s8 + $0x328] sm:$0xff]
    %v593 = vld [vmem:[%s8 + $0x330] sm:$0xff]
    %v594 = vld [vmem:[%s8 + $0x338] sm:$0xff]
    %v595 = vld [vmem:[%s8 + $0x340] sm:$0xff]
    %v596 = vld [vmem:[%s8 + $0x348] sm:$0xff]
    %v597 = vld [vmem:[%s8 + $0x350] sm:$0xff]
    %v598 = vld [vmem:[%s8 + $0x358] sm:$0xff]
    %v599 = vld [vmem:[%s8 + $0x360] sm:$0xff]
    %v600 = vld [vmem:[%s8 + $0x368] sm:$0xff]
    %v601 = vld [vmem:[%s8 + $0x370] sm:$0xff]
    %v602 = vld [vmem:[%s8 + $0x378] sm:$0xff]
    %v603 = vld [vmem:[%s8 + $0x380] sm:$0xff]
    %v604 = vld [vmem:[%s8 + $0x388] sm:$0xff]
    %v605 = vld [vmem:[%s8 + $0x390] sm:$0xff]
    %v606 = vld [vmem:[%s8 + $0x398] sm:$0xff]
    %v607 = vld [vmem:[%s8 + $0x3a0] sm:$0xff]
    %v608 = vld [vmem:[%s8 + $0x3a8] sm:$0xff]
    %v609 = vld [vmem:[%s8 + $0x3b0] sm:$0xff]
    %v610 = vld [vmem:[%s8 + $0x3b8] sm:$0xff]
    %v611 = vld [vmem:[%s8 + $0x3c0] sm:$0xff]
    %v612 = vld [vmem:[%s8 + $0x3c8] sm:$0xff]
    %v613 = vld [vmem:[%s8 + $0x3d0] sm:$0xff]
    %v614 = vld [vmem:[%s8 + $0x3d8] sm:$0xff]
    %v615 = vld [vmem:[%s8 + $0x3e0] sm:$0xff]
    %v616 = vld [vmem:[%s8 + $0x3e8] sm:$0xff]
    %v617 = vld [vmem:[%s8 + $0x3f0] sm:$0xff]
    %v618 = vld [vmem:[%s8 + $0x3f8] sm:$0xff]
    %v619 = vld [vmem:[%s8 + $0x400] sm:$0xff]
    %v620 = vld [vmem:[%s8 + $0x408] sm:$0xff]
    %v621 = vld [vmem:[%s8 + $0x410] sm:$0xff]
    %v622 = vld [vmem:[%s8 + $0x418] sm:$0xff]
    %v623 = vld [vmem:[%s8 + $0x420] sm:$0xff]
    %v624 = vld [vmem:[%s8 + $0x428] sm:$0xff]
    %v625 = vld [vmem:[%s8 + $0x430] sm:$0xff]
    %v626 = vld [vmem:[%s8 + $0x438] sm:$0xff]
    %v627 = vld [vmem:[%s8 + $0x440] sm:$0xff]
    %v628 = vld [vmem:[%s8 + $0x448] sm:$0xff]
    %v629 = vld [vmem:[%s8 + $0x450] sm:$0xff]
    %v630 = vld [vmem:[%s8 + $0x458] sm:$0xff]
    %v631 = vld [vmem:[%s8 + $0x460] sm:$0xff]
    %v632 = vld [vmem:[%s8 + $0x468] sm:$0xff]
    %v633 = vld [vmem:[%s8 + $0x470] sm:$0xff]
    %v634 = vld [vmem:[%s8 + $0x478] sm:$0xff]
    %v635 = vld [vmem:[%s8 + $0x480] sm:$0xff]
    %v636 = vld [vmem:[%s8 + $0x488] sm:$0xff]
    %v637 = vld [vmem:[%s8 + $0x490] sm:$0xff]
    %v638 = vld [vmem:[%s8 + $0x498] sm:$0xff]
    %v639 = vld [vmem:[%s8 + $0x4a0] sm:$0xff]
    %v640 = vld [vmem:[%s8 + $0x4a8] sm:$0xff]
    %v641 = vld [vmem:[%s8 + $0x4b0] sm:$0xff]
    %v642 = vld [vmem:[%s8 + $0x4b8] sm:$0xff]
    %v643 = vld [vmem:[%s8 + $0x4c0] sm:$0xff]
    %v644 = vld [vmem:[%s8 + $0x4c8] sm:$0xff]
    %v645 = vld [vmem:[%s8 + $0x4d0] sm:$0xff]
    %v646 = vld [vmem:[%s8 + $0x4d8] sm:$0xff]
    %v647 = vld [vmem:[%s8 + $0x4e0] sm:$0xff]
    %v648 = vld [vmem:[%s8 + $0x4e8] sm:$0xff]
    %v649 = vld [vmem:[%s8 + $0x4f0] sm:$0xff]
    %v650 = vld [vmem:[%s8 + $0x4f8] sm:$0xff]
    %v651 = vld [vmem:[%s8 + $0x500] sm:$0xff]
    %v652 = vld [vmem:[%s8 + $0x508] sm:$0xff]
    %v653 = vld [vmem:[%s8 + $0x510] sm:$0xff]
    %v654 = vld [vmem:[%s8 + $0x518] sm:$0xff]
    %v655 = vld [vmem:[%s8 + $0x520] sm:$0xff]
    %v656 = vld [vmem:[%s8 + $0x528] sm:$0xff]
    %v657 = vld [vmem:[%s8 + $0x530] sm:$0xff]
    %v658 = vld [vmem:[%s8 + $0x538] sm:$0xff]
    %v659 = vld [vmem:[%s8 + $0x540] sm:$0xff]
    %v660 = vld [vmem:[%s8 + $0x548] sm:$0xff]
    %v661 = vld [vmem:[%s8 + $0x550] sm:$0xff]
    %v662 = vld [vmem:[%s8 + $0x558] sm:$0xff]
    %v663 = vld [vmem:[%s8 + $0x560] sm:$0xff]
    %v664 = vld [vmem:[%s8 + $0x568] sm:$0xff]
    %v665 = vld [vmem:[%s8 + $0x570] sm:$0xff]
    %v666 = vld [vmem:[%s8 + $0x578] sm:$0xff]
    %v667 = vld [vmem:[%s8 + $0x580] sm:$0xff]
    %v668 = vld [vmem:[%s8 + $0x588] sm:$0xff]
    %v669 = vld [vmem:[%s8 + $0x590] sm:$0xff]
    %v670 = vld [vmem:[%s8 + $0x598] sm:$0xff]
    %v671 = vld [vmem:[%s8 + $0x5a0] sm:$0xff]
    %v672 = vld [vmem:[%s8 + $0x5a8] sm:$0xff]
    %v673 = vld [vmem:[%s8 + $0x5b0] sm:$0xff]
    %v674 = vld [vmem:[%s8 + $0x5b8] sm:$0xff]
    %v675 = vld [vmem:[%s8 + $0x5c0] sm:$0xff]
    %v676 = vld [vmem:[%s8 + $0x5c8] sm:$0xff]
    %v677 = vld [vmem:[%s8 + $0x5d0] sm:$0xff]
    %v678 = vld [vmem:[%s8 + $0x5d8] sm:$0xff]
    %v679 = vld [vmem:[%s8 + $0x5e0] sm:$0xff]
    %v680 = vld [vmem:[%s8 + $0x5e8] sm:$0xff]
    %v681 = vld [vmem:[%s8 + $0x5f0] sm:$0xff]
    %v682 = vld [vmem:[%s8 + $0x5f8] sm:$0xff]
    %v683 = vld [vmem:[%s8 + $0x600] sm:$0xff]
    %v684 = vld [vmem:[%s8 + $0x608] sm:$0xff]
    %v685 = vld [vmem:[%s8 + $0x610] sm:$0xff]
    %v686 = vld [vmem:[%s8 + $0x618] sm:$0xff]
    %v687 = vld [vmem:[%s8 + $0x620] sm:$0xff]
    %v688 = vld [vmem:[%s8 + $0x628] sm:$0xff]
    %v689 = vld [vmem:[%s8 + $0x630] sm:$0xff]
    %v690 = vld [vmem:[%s8 + $0x638] sm:$0xff]
    %v691 = vld [vmem:[%s8 + $0x640] sm:$0xff]
    %v692 = vld [vmem:[%s8 + $0x648] sm:$0xff]
    %v693 = vld [vmem:[%s8 + $0x650] sm:$0xff]
    %v694 = vld [vmem:[%s8 + $0x658] sm:$0xff]
    %v695 = vld [vmem:[%s8 + $0x660] sm:$0xff]
    %v696 = vld [vmem:[%s8 + $0x668] sm:$0xff]
    %v697 = vld [vmem:[%s8 + $0x670] sm:$0xff]
    %v698 = vld [vmem:[%s8 + $0x678] sm:$0xff]
    %v699 = vld [vmem:[%s8 + $0x680] sm:$0xff]
    %v700 = vld [vmem:[%s8 + $0x688] sm:$0xff]
    %v701 = vld [vmem:[%s8 + $0x690] sm:$0xff]
    %v702 = vld [vmem:[%s8 + $0x698] sm:$0xff]
    %v703 = vld [vmem:[%s8 + $0x6a0] sm:$0xff]
    %v704 = vld [vmem:[%s8 + $0x6a8] sm:$0xff]
    %v705 = vld [vmem:[%s8 + $0x6b0] sm:$0xff]
    %v706 = vld [vmem:[%s8 + $0x6b8] sm:$0xff]
    %v707 = vld [vmem:[%s8 + $0x6c0] sm:$0xff]
    %v708 = vld [vmem:[%s8 + $0x6c8] sm:$0xff]
    %v709 = vld [vmem:[%s8 + $0x6d0] sm:$0xff]
    %v710 = vld [vmem:[%s8 + $0x6d8] sm:$0xff]
    %v711 = vld [vmem:[%s8 + $0x6e0] sm:$0xff]
    %v712 = vld [vmem:[%s8 + $0x6e8] sm:$0xff]
    %v713 = vld [vmem:[%s8 + $0x6f0] sm:$0xff]
    %v714 = vld [vmem:[%s8 + $0x6f8] sm:$0xff]
    %v715 = vld [vmem:[%s8 + $0x700] sm:$0xff]
    %v716 = vld [vmem:[%s8 + $0x708] sm:$0xff]
    %v717 = vld [vmem:[%s8 + $0x710] sm:$0xff]
    %v718 = vld [vmem:[%s8 + $0x718] sm:$0xff]
    %v719 = vld [vmem:[%s8 + $0x720] sm:$0xff]
    %v720 = vld [vmem:[%s8 + $0x728] sm:$0xff]
    %v721 = vld [vmem:[%s8 + $0x730] sm:$0xff]
    %v722 = vld [vmem:[%s8 + $0x738] sm:$0xff]
    %v723 = vld [vmem:[%s8 + $0x740] sm:$0xff]
    %v724 = vld [vmem:[%s8 + $0x748] sm:$0xff]
    %v725 = vld [vmem:[%s8 + $0x750] sm:$0xff]
    %v726 = vld [vmem:[%s8 + $0x758] sm:$0xff]
    %v727 = vld [vmem:[%s8 + $0x760] sm:$0xff]
    %v728 = vld [vmem:[%s8 + $0x768] sm:$0xff]
    %v729 = vld [vmem:[%s8 + $0x770] sm:$0xff]
    %v730 = vld [vmem:[%s8 + $0x778] sm:$0xff]
    %v731 = vld [vmem:[%s8 + $0x780] sm:$0xff]
    %v732 = vld [vmem:[%s8 + $0x788] sm:$0xff]
    %v733 = vld [vmem:[%s8 + $0x790] sm:$0xff]
    %v734 = vld [vmem:[%s8 + $0x798] sm:$0xff]
    %v735 = vld [vmem:[%s8 + $0x7a0] sm:$0xff]
    %v736 = vld [vmem:[%s8 + $0x7a8] sm:$0xff]
    %v737 = vld [vmem:[%s8 + $0x7b0] sm:$0xff]
    %v738 = vld [vmem:[%s8 + $0x7b8] sm:$0xff]
    %v739 = vld [vmem:[%s8 + $0x7c0] sm:$0xff]
    %v740 = vld [vmem:[%s8 + $0x7c8] sm:$0xff]
    %v741 = vld [vmem:[%s8 + $0x7d0] sm:$0xff]
    %v742 = vld [vmem:[%s8 + $0x7d8] sm:$0xff]
    %v743 = vld [vmem:[%s8 + $0x7e0] sm:$0xff]
    %v744 = vld [vmem:[%s8 + $0x7e8] sm:$0xff]
    %v745 = vld [vmem:[%s8 + $0x7f0] sm:$0xff]
    %v746 = vld [vmem:[%s8 + $0x7f8] sm:$0xff]
    %v747 = vld [vmem:[%s9] sm:$0xf]
    %v749 = vlaneseq
    %v750 = vshrl.u32 %v749, 7
    %v751 = vsub.s32 0, %v750
    %v752 = vrot.slane %v747, %v751
    %v753 = vlaneseq
    %v754 = vshrl.u32 %v753, 7
    %v755 = vsub.s32 1, %v754
    %v756 = vrot.slane %v747, %v755
    %v757 = vlaneseq
    %v758 = vshrl.u32 %v757, 7
    %v759 = vsub.s32 2, %v758
    %v760 = vrot.slane %v747, %v759
    %v761 = vlaneseq
    %v762 = vshrl.u32 %v761, 7
    %v763 = vsub.s32 3, %v762
    %v764 = vrot.slane %v747, %v763
    %v777 = vcombine.low %v483, %v484
    %v778 = vcombine.high %v483, %v484
    %v779 = vcombine.low %v485, %v486
    %v780 = vcombine.high %v485, %v486
    %v781 = vcombine.low %v487, %v488
    %v782 = vcombine.high %v487, %v488
    %v783 = vcombine.low %v489, %v490
    %v784 = vcombine.high %v489, %v490
    %v786 = vunpack.c.l.s4 1966171168
    %v787 = vunpack.c.0.s8 %v786
    %v788 = vlaneseq
    %v789 = vshrl.u32 %v788, 7
    %v790 = vsub.s32 %v787, %v789
    %v791 = vrot.slane %v777, %v790
    %v793 = vunpack.c.l.s4 1966171168
    %v794 = vunpack.c.0.s8 %v793
    %v795 = vlaneseq
    %v796 = vshrl.u32 %v795, 7
    %v797 = vsub.s32 %v794, %v796
    %v798 = vrot.slane %v778, %v797
    %v800 = vunpack.c.l.s4 1966171168
    %v801 = vunpack.c.0.s8 %v800
    %v802 = vlaneseq
    %v803 = vshrl.u32 %v802, 7
    %v804 = vsub.s32 %v801, %v803
    %v805 = vrot.slane %v779, %v804
    %v807 = vunpack.c.l.s4 1966171168
    %v808 = vunpack.c.0.s8 %v807
    %v809 = vlaneseq
    %v810 = vshrl.u32 %v809, 7
    %v811 = vsub.s32 %v808, %v810
    %v812 = vrot.slane %v780, %v811
    %v814 = vunpack.c.l.s4 1966171168
    %v815 = vunpack.c.0.s8 %v814
    %v816 = vlaneseq
    %v817 = vshrl.u32 %v816, 7
    %v818 = vsub.s32 %v815, %v817
    %v819 = vrot.slane %v781, %v818
    %v821 = vunpack.c.l.s4 1966171168
    %v822 = vunpack.c.0.s8 %v821
    %v823 = vlaneseq
    %v824 = vshrl.u32 %v823, 7
    %v825 = vsub.s32 %v822, %v824
    %v826 = vrot.slane %v782, %v825
    %v828 = vunpack.c.l.s4 1966171168
    %v829 = vunpack.c.0.s8 %v828
    %v830 = vlaneseq
    %v831 = vshrl.u32 %v830, 7
    %v832 = vsub.s32 %v829, %v831
    %v833 = vrot.slane %v783, %v832
    %v835 = vunpack.c.l.s4 1966171168
    %v836 = vunpack.c.0.s8 %v835
    %v837 = vlaneseq
    %v838 = vshrl.u32 %v837, 7
    %v839 = vsub.s32 %v836, %v838
    %v840 = vrot.slane %v784, %v839
    %v841 = vcombine.low %v791, %v805
    %v842 = vcombine.high %v791, %v805
    %v843 = vcombine.low %v798, %v812
    %v844 = vcombine.high %v798, %v812
    %v845 = vcombine.low %v819, %v833
    %v846 = vcombine.high %v819, %v833
    %v847 = vcombine.low %v826, %v840
    %v848 = vcombine.high %v826, %v840
    %v850 = vunpack.c.l.s4 1966171168
    %v851 = vunpack.c.0.s8 %v850
    %v852 = vlaneseq
    %v853 = vshrl.u32 %v852, 7
    %v854 = vsub.s32 %v851, %v853
    %v855 = vrot.slane %v841, %v854
    %v857 = vunpack.c.l.s4 1966171168
    %v858 = vunpack.c.0.s8 %v857
    %v859 = vlaneseq
    %v860 = vshrl.u32 %v859, 7
    %v861 = vsub.s32 %v858, %v860
    %v862 = vrot.slane %v843, %v861
    %v864 = vunpack.c.l.s4 1966171168
    %v865 = vunpack.c.0.s8 %v864
    %v866 = vlaneseq
    %v867 = vshrl.u32 %v866, 7
    %v868 = vsub.s32 %v865, %v867
    %v869 = vrot.slane %v842, %v868
    %v871 = vunpack.c.l.s4 1966171168
    %v872 = vunpack.c.0.s8 %v871
    %v873 = vlaneseq
    %v874 = vshrl.u32 %v873, 7
    %v875 = vsub.s32 %v872, %v874
    %v876 = vrot.slane %v844, %v875
    %v878 = vunpack.c.l.s4 1966171168
    %v879 = vunpack.c.0.s8 %v878
    %v880 = vlaneseq
    %v881 = vshrl.u32 %v880, 7
    %v882 = vsub.s32 %v879, %v881
    %v883 = vrot.slane %v845, %v882
    %v885 = vunpack.c.l.s4 1966171168
    %v886 = vunpack.c.0.s8 %v885
    %v887 = vlaneseq
    %v888 = vshrl.u32 %v887, 7
    %v889 = vsub.s32 %v886, %v888
    %v890 = vrot.slane %v847, %v889
    %v892 = vunpack.c.l.s4 1966171168
    %v893 = vunpack.c.0.s8 %v892
    %v894 = vlaneseq
    %v895 = vshrl.u32 %v894, 7
    %v896 = vsub.s32 %v893, %v895
    %v897 = vrot.slane %v846, %v896
    %v899 = vunpack.c.l.s4 1966171168
    %v900 = vunpack.c.0.s8 %v899
    %v901 = vlaneseq
    %v902 = vshrl.u32 %v901, 7
    %v903 = vsub.s32 %v900, %v902
    %v904 = vrot.slane %v848, %v903
    %v905 = vcombine.low %v855, %v883
    %v906 = vcombine.high %v855, %v883
    %v907 = vcombine.low %v862, %v890
    %v908 = vcombine.high %v862, %v890
    %v909 = vcombine.low %v869, %v897
    %v910 = vcombine.high %v869, %v897
    %v911 = vcombine.low %v876, %v904
    %v912 = vcombine.high %v876, %v904
    %v1177 = vunpack.c.l.b16 %v491
    %v1178 = vunpack.c.h.b16 %v491
    %v1179 = vunpack.c.l.b16 %v492
    %v1180 = vunpack.c.h.b16 %v492
    %v1181 = vunpack.c.l.b16 %v493
    %v1182 = vunpack.c.h.b16 %v493
    %v1183 = vunpack.c.l.b16 %v494
    %v1184 = vunpack.c.h.b16 %v494
    %v1185 = vunpack.c.l.b16 %v495
    %v1186 = vunpack.c.h.b16 %v495
    %v1187 = vunpack.c.l.b16 %v496
    %v1188 = vunpack.c.h.b16 %v496
    %v1189 = vunpack.c.l.b16 %v497
    %v1190 = vunpack.c.h.b16 %v497
    %v1191 = vunpack.c.l.b16 %v498
    %v1192 = vunpack.c.h.b16 %v498
    %v1193 = vunpack.c.l.b16 %v499
    %v1194 = vunpack.c.h.b16 %v499
    %v1195 = vunpack.c.l.b16 %v500
    %v1196 = vunpack.c.h.b16 %v500
    %v1197 = vunpack.c.l.b16 %v501
    %v1198 = vunpack.c.h.b16 %v501
    %v1199 = vunpack.c.l.b16 %v502
    %v1200 = vunpack.c.h.b16 %v502
    %v1201 = vunpack.c.l.b16 %v503
    %v1202 = vunpack.c.h.b16 %v503
    %v1203 = vunpack.c.l.b16 %v504
    %v1204 = vunpack.c.h.b16 %v504
    %v1205 = vunpack.c.l.b16 %v505
    %v1206 = vunpack.c.h.b16 %v505
    %v1207 = vunpack.c.l.b16 %v506
    %v1208 = vunpack.c.h.b16 %v506
    %v1209 = vunpack.c.l.b16 %v507
    %v1210 = vunpack.c.h.b16 %v507
    %v1211 = vunpack.c.l.b16 %v508
    %v1212 = vunpack.c.h.b16 %v508
    %v1213 = vunpack.c.l.b16 %v509
    %v1214 = vunpack.c.h.b16 %v509
    %v1215 = vunpack.c.l.b16 %v510
    %v1216 = vunpack.c.h.b16 %v510
    %v1217 = vunpack.c.l.b16 %v511
    %v1218 = vunpack.c.h.b16 %v511
    %v1219 = vunpack.c.l.b16 %v512
    %v1220 = vunpack.c.h.b16 %v512
    %v1221 = vunpack.c.l.b16 %v513
    %v1222 = vunpack.c.h.b16 %v513
    %v1223 = vunpack.c.l.b16 %v514
    %v1224 = vunpack.c.h.b16 %v514
    %v1225 = vunpack.c.l.b16 %v515
    %v1226 = vunpack.c.h.b16 %v515
    %v1227 = vunpack.c.l.b16 %v516
    %v1228 = vunpack.c.h.b16 %v516
    %v1229 = vunpack.c.l.b16 %v517
    %v1230 = vunpack.c.h.b16 %v517
    %v1231 = vunpack.c.l.b16 %v518
    %v1232 = vunpack.c.h.b16 %v518
    %v1233 = vunpack.c.l.b16 %v519
    %v1234 = vunpack.c.h.b16 %v519
    %v1235 = vunpack.c.l.b16 %v520
    %v1236 = vunpack.c.h.b16 %v520
    %v1237 = vunpack.c.l.b16 %v521
    %v1238 = vunpack.c.h.b16 %v521
    %v1239 = vunpack.c.l.b16 %v522
    %v1240 = vunpack.c.h.b16 %v522
    %v1241 = vunpack.c.l.b16 %v523
    %v1242 = vunpack.c.h.b16 %v523
    %v1243 = vunpack.c.l.b16 %v524
    %v1244 = vunpack.c.h.b16 %v524
    %v1245 = vunpack.c.l.b16 %v525
    %v1246 = vunpack.c.h.b16 %v525
    %v1247 = vunpack.c.l.b16 %v526
    %v1248 = vunpack.c.h.b16 %v526
    %v1249 = vunpack.c.l.b16 %v527
    %v1250 = vunpack.c.h.b16 %v527
    %v1251 = vunpack.c.l.b16 %v528
    %v1252 = vunpack.c.h.b16 %v528
    %v1253 = vunpack.c.l.b16 %v529
    %v1254 = vunpack.c.h.b16 %v529
    %v1255 = vunpack.c.l.b16 %v530
    %v1256 = vunpack.c.h.b16 %v530
    %v1257 = vunpack.c.l.b16 %v531
    %v1258 = vunpack.c.h.b16 %v531
    %v1259 = vunpack.c.l.b16 %v532
    %v1260 = vunpack.c.h.b16 %v532
    %v1261 = vunpack.c.l.b16 %v533
    %v1262 = vunpack.c.h.b16 %v533
    %v1263 = vunpack.c.l.b16 %v534
    %v1264 = vunpack.c.h.b16 %v534
    %v1265 = vunpack.c.l.b16 %v535
    %v1266 = vunpack.c.h.b16 %v535
    %v1267 = vunpack.c.l.b16 %v536
    %v1268 = vunpack.c.h.b16 %v536
    %v1269 = vunpack.c.l.b16 %v537
    %v1270 = vunpack.c.h.b16 %v537
    %v1271 = vunpack.c.l.b16 %v538
    %v1272 = vunpack.c.h.b16 %v538
    %v1273 = vunpack.c.l.b16 %v539
    %v1274 = vunpack.c.h.b16 %v539
    %v1275 = vunpack.c.l.b16 %v540
    %v1276 = vunpack.c.h.b16 %v540
    %v1277 = vunpack.c.l.b16 %v541
    %v1278 = vunpack.c.h.b16 %v541
    %v1279 = vunpack.c.l.b16 %v542
    %v1280 = vunpack.c.h.b16 %v542
    %v1281 = vunpack.c.l.b16 %v543
    %v1282 = vunpack.c.h.b16 %v543
    %v1283 = vunpack.c.l.b16 %v544
    %v1284 = vunpack.c.h.b16 %v544
    %v1285 = vunpack.c.l.b16 %v545
    %v1286 = vunpack.c.h.b16 %v545
    %v1287 = vunpack.c.l.b16 %v546
    %v1288 = vunpack.c.h.b16 %v546
    %v1289 = vunpack.c.l.b16 %v547
    %v1290 = vunpack.c.h.b16 %v547
    %v1291 = vunpack.c.l.b16 %v548
    %v1292 = vunpack.c.h.b16 %v548
    %v1293 = vunpack.c.l.b16 %v549
    %v1294 = vunpack.c.h.b16 %v549
    %v1295 = vunpack.c.l.b16 %v550
    %v1296 = vunpack.c.h.b16 %v550
    %v1297 = vunpack.c.l.b16 %v551
    %v1298 = vunpack.c.h.b16 %v551
    %v1299 = vunpack.c.l.b16 %v552
    %v1300 = vunpack.c.h.b16 %v552
    %v1301 = vunpack.c.l.b16 %v553
    %v1302 = vunpack.c.h.b16 %v553
    %v1303 = vunpack.c.l.b16 %v554
    %v1304 = vunpack.c.h.b16 %v554
    %v1305 = vunpack.c.l.b16 %v555
    %v1306 = vunpack.c.h.b16 %v555
    %v1307 = vunpack.c.l.b16 %v556
    %v1308 = vunpack.c.h.b16 %v556
    %v1309 = vunpack.c.l.b16 %v557
    %v1310 = vunpack.c.h.b16 %v557
    %v1311 = vunpack.c.l.b16 %v558
    %v1312 = vunpack.c.h.b16 %v558
    %v1313 = vunpack.c.l.b16 %v559
    %v1314 = vunpack.c.h.b16 %v559
    %v1315 = vunpack.c.l.b16 %v560
    %v1316 = vunpack.c.h.b16 %v560
    %v1317 = vunpack.c.l.b16 %v561
    %v1318 = vunpack.c.h.b16 %v561
    %v1319 = vunpack.c.l.b16 %v562
    %v1320 = vunpack.c.h.b16 %v562
    %v1321 = vunpack.c.l.b16 %v563
    %v1322 = vunpack.c.h.b16 %v563
    %v1323 = vunpack.c.l.b16 %v564
    %v1324 = vunpack.c.h.b16 %v564
    %v1325 = vunpack.c.l.b16 %v565
    %v1326 = vunpack.c.h.b16 %v565
    %v1327 = vunpack.c.l.b16 %v566
    %v1328 = vunpack.c.h.b16 %v566
    %v1329 = vunpack.c.l.b16 %v567
    %v1330 = vunpack.c.h.b16 %v567
    %v1331 = vunpack.c.l.b16 %v568
    %v1332 = vunpack.c.h.b16 %v568
    %v1333 = vunpack.c.l.b16 %v569
    %v1334 = vunpack.c.h.b16 %v569
    %v1335 = vunpack.c.l.b16 %v570
    %v1336 = vunpack.c.h.b16 %v570
    %v1337 = vunpack.c.l.b16 %v571
    %v1338 = vunpack.c.h.b16 %v571
    %v1339 = vunpack.c.l.b16 %v572
    %v1340 = vunpack.c.h.b16 %v572
    %v1341 = vunpack.c.l.b16 %v573
    %v1342 = vunpack.c.h.b16 %v573
    %v1343 = vunpack.c.l.b16 %v574
    %v1344 = vunpack.c.h.b16 %v574
    %v1345 = vunpack.c.l.b16 %v575
    %v1346 = vunpack.c.h.b16 %v575
    %v1347 = vunpack.c.l.b16 %v576
    %v1348 = vunpack.c.h.b16 %v576
    %v1349 = vunpack.c.l.b16 %v577
    %v1350 = vunpack.c.h.b16 %v577
    %v1351 = vunpack.c.l.b16 %v578
    %v1352 = vunpack.c.h.b16 %v578
    %v1353 = vunpack.c.l.b16 %v579
    %v1354 = vunpack.c.h.b16 %v579
    %v1355 = vunpack.c.l.b16 %v580
    %v1356 = vunpack.c.h.b16 %v580
    %v1357 = vunpack.c.l.b16 %v581
    %v1358 = vunpack.c.h.b16 %v581
    %v1359 = vunpack.c.l.b16 %v582
    %v1360 = vunpack.c.h.b16 %v582
    %v1361 = vunpack.c.l.b16 %v583
    %v1362 = vunpack.c.h.b16 %v583
    %v1363 = vunpack.c.l.b16 %v584
    %v1364 = vunpack.c.h.b16 %v584
    %v1365 = vunpack.c.l.b16 %v585
    %v1366 = vunpack.c.h.b16 %v585
    %v1367 = vunpack.c.l.b16 %v586
    %v1368 = vunpack.c.h.b16 %v586
    %v1369 = vunpack.c.l.b16 %v587
    %v1370 = vunpack.c.h.b16 %v587
    %v1371 = vunpack.c.l.b16 %v588
    %v1372 = vunpack.c.h.b16 %v588
    %v1373 = vunpack.c.l.b16 %v589
    %v1374 = vunpack.c.h.b16 %v589
    %v1375 = vunpack.c.l.b16 %v590
    %v1376 = vunpack.c.h.b16 %v590
    %v1377 = vunpack.c.l.b16 %v591
    %v1378 = vunpack.c.h.b16 %v591
    %v1379 = vunpack.c.l.b16 %v592
    %v1380 = vunpack.c.h.b16 %v592
    %v1381 = vunpack.c.l.b16 %v593
    %v1382 = vunpack.c.h.b16 %v593
    %v1383 = vunpack.c.l.b16 %v594
    %v1384 = vunpack.c.h.b16 %v594
    %v1385 = vunpack.c.l.b16 %v595
    %v1386 = vunpack.c.h.b16 %v595
    %v1387 = vunpack.c.l.b16 %v596
    %v1388 = vunpack.c.h.b16 %v596
    %v1389 = vunpack.c.l.b16 %v597
    %v1390 = vunpack.c.h.b16 %v597
    %v1391 = vunpack.c.l.b16 %v598
    %v1392 = vunpack.c.h.b16 %v598
    %v1393 = vunpack.c.l.b16 %v599
    %v1394 = vunpack.c.h.b16 %v599
    %v1395 = vunpack.c.l.b16 %v600
    %v1396 = vunpack.c.h.b16 %v600
    %v1397 = vunpack.c.l.b16 %v601
    %v1398 = vunpack.c.h.b16 %v601
    %v1399 = vunpack.c.l.b16 %v602
    %v1400 = vunpack.c.h.b16 %v602
    %v1401 = vunpack.c.l.b16 %v603
    %v1402 = vunpack.c.h.b16 %v603
    %v1403 = vunpack.c.l.b16 %v604
    %v1404 = vunpack.c.h.b16 %v604
    %v1405 = vunpack.c.l.b16 %v605
    %v1406 = vunpack.c.h.b16 %v605
    %v1407 = vunpack.c.l.b16 %v606
    %v1408 = vunpack.c.h.b16 %v606
    %v1409 = vunpack.c.l.b16 %v607
    %v1410 = vunpack.c.h.b16 %v607
    %v1411 = vunpack.c.l.b16 %v608
    %v1412 = vunpack.c.h.b16 %v608
    %v1413 = vunpack.c.l.b16 %v609
    %v1414 = vunpack.c.h.b16 %v609
    %v1415 = vunpack.c.l.b16 %v610
    %v1416 = vunpack.c.h.b16 %v610
    %v1417 = vunpack.c.l.b16 %v611
    %v1418 = vunpack.c.h.b16 %v611
    %v1419 = vunpack.c.l.b16 %v612
    %v1420 = vunpack.c.h.b16 %v612
    %v1421 = vunpack.c.l.b16 %v613
    %v1422 = vunpack.c.h.b16 %v613
    %v1423 = vunpack.c.l.b16 %v614
    %v1424 = vunpack.c.h.b16 %v614
    %v1425 = vunpack.c.l.b16 %v615
    %v1426 = vunpack.c.h.b16 %v615
    %v1427 = vunpack.c.l.b16 %v616
    %v1428 = vunpack.c.h.b16 %v616
    %v1429 = vunpack.c.l.b16 %v617
    %v1430 = vunpack.c.h.b16 %v617
    %v1431 = vunpack.c.l.b16 %v618
    %v1432 = vunpack.c.h.b16 %v618
    %v1433 = vunpack.c.l.b16 %v619
    %v1434 = vunpack.c.h.b16 %v619
    %v1435 = vunpack.c.l.b16 %v620
    %v1436 = vunpack.c.h.b16 %v620
    %v1437 = vunpack.c.l.b16 %v621
    %v1438 = vunpack.c.h.b16 %v621
    %v1439 = vunpack.c.l.b16 %v622
    %v1440 = vunpack.c.h.b16 %v622
    %v1441 = vunpack.c.l.b16 %v623
    %v1442 = vunpack.c.h.b16 %v623
    %v1443 = vunpack.c.l.b16 %v624
    %v1444 = vunpack.c.h.b16 %v624
    %v1445 = vunpack.c.l.b16 %v625
    %v1446 = vunpack.c.h.b16 %v625
    %v1447 = vunpack.c.l.b16 %v626
    %v1448 = vunpack.c.h.b16 %v626
    %v1449 = vunpack.c.l.b16 %v627
    %v1450 = vunpack.c.h.b16 %v627
    %v1451 = vunpack.c.l.b16 %v628
    %v1452 = vunpack.c.h.b16 %v628
    %v1453 = vunpack.c.l.b16 %v629
    %v1454 = vunpack.c.h.b16 %v629
    %v1455 = vunpack.c.l.b16 %v630
    %v1456 = vunpack.c.h.b16 %v630
    %v1457 = vunpack.c.l.b16 %v631
    %v1458 = vunpack.c.h.b16 %v631
    %v1459 = vunpack.c.l.b16 %v632
    %v1460 = vunpack.c.h.b16 %v632
    %v1461 = vunpack.c.l.b16 %v633
    %v1462 = vunpack.c.h.b16 %v633
    %v1463 = vunpack.c.l.b16 %v634
    %v1464 = vunpack.c.h.b16 %v634
    %v1465 = vunpack.c.l.b16 %v635
    %v1466 = vunpack.c.h.b16 %v635
    %v1467 = vunpack.c.l.b16 %v636
    %v1468 = vunpack.c.h.b16 %v636
    %v1469 = vunpack.c.l.b16 %v637
    %v1470 = vunpack.c.h.b16 %v637
    %v1471 = vunpack.c.l.b16 %v638
    %v1472 = vunpack.c.h.b16 %v638
    %v1473 = vunpack.c.l.b16 %v639
    %v1474 = vunpack.c.h.b16 %v639
    %v1475 = vunpack.c.l.b16 %v640
    %v1476 = vunpack.c.h.b16 %v640
    %v1477 = vunpack.c.l.b16 %v641
    %v1478 = vunpack.c.h.b16 %v641
    %v1479 = vunpack.c.l.b16 %v642
    %v1480 = vunpack.c.h.b16 %v642
    %v1481 = vunpack.c.l.b16 %v643
    %v1482 = vunpack.c.h.b16 %v643
    %v1483 = vunpack.c.l.b16 %v644
    %v1484 = vunpack.c.h.b16 %v644
    %v1485 = vunpack.c.l.b16 %v645
    %v1486 = vunpack.c.h.b16 %v645
    %v1487 = vunpack.c.l.b16 %v646
    %v1488 = vunpack.c.h.b16 %v646
    %v1489 = vunpack.c.l.b16 %v647
    %v1490 = vunpack.c.h.b16 %v647
    %v1491 = vunpack.c.l.b16 %v648
    %v1492 = vunpack.c.h.b16 %v648
    %v1493 = vunpack.c.l.b16 %v649
    %v1494 = vunpack.c.h.b16 %v649
    %v1495 = vunpack.c.l.b16 %v650
    %v1496 = vunpack.c.h.b16 %v650
    %v1497 = vunpack.c.l.b16 %v651
    %v1498 = vunpack.c.h.b16 %v651
    %v1499 = vunpack.c.l.b16 %v652
    %v1500 = vunpack.c.h.b16 %v652
    %v1501 = vunpack.c.l.b16 %v653
    %v1502 = vunpack.c.h.b16 %v653
    %v1503 = vunpack.c.l.b16 %v654
    %v1504 = vunpack.c.h.b16 %v654
    %v1505 = vunpack.c.l.b16 %v655
    %v1506 = vunpack.c.h.b16 %v655
    %v1507 = vunpack.c.l.b16 %v656
    %v1508 = vunpack.c.h.b16 %v656
    %v1509 = vunpack.c.l.b16 %v657
    %v1510 = vunpack.c.h.b16 %v657
    %v1511 = vunpack.c.l.b16 %v658
    %v1512 = vunpack.c.h.b16 %v658
    %v1513 = vunpack.c.l.b16 %v659
    %v1514 = vunpack.c.h.b16 %v659
    %v1515 = vunpack.c.l.b16 %v660
    %v1516 = vunpack.c.h.b16 %v660
    %v1517 = vunpack.c.l.b16 %v661
    %v1518 = vunpack.c.h.b16 %v661
    %v1519 = vunpack.c.l.b16 %v662
    %v1520 = vunpack.c.h.b16 %v662
    %v1521 = vunpack.c.l.b16 %v663
    %v1522 = vunpack.c.h.b16 %v663
    %v1523 = vunpack.c.l.b16 %v664
    %v1524 = vunpack.c.h.b16 %v664
    %v1525 = vunpack.c.l.b16 %v665
    %v1526 = vunpack.c.h.b16 %v665
    %v1527 = vunpack.c.l.b16 %v666
    %v1528 = vunpack.c.h.b16 %v666
    %v1529 = vunpack.c.l.b16 %v667
    %v1530 = vunpack.c.h.b16 %v667
    %v1531 = vunpack.c.l.b16 %v668
    %v1532 = vunpack.c.h.b16 %v668
    %v1533 = vunpack.c.l.b16 %v669
    %v1534 = vunpack.c.h.b16 %v669
    %v1535 = vunpack.c.l.b16 %v670
    %v1536 = vunpack.c.h.b16 %v670
    %v1537 = vunpack.c.l.b16 %v671
    %v1538 = vunpack.c.h.b16 %v671
    %v1539 = vunpack.c.l.b16 %v672
    %v1540 = vunpack.c.h.b16 %v672
    %v1541 = vunpack.c.l.b16 %v673
    %v1542 = vunpack.c.h.b16 %v673
    %v1543 = vunpack.c.l.b16 %v674
    %v1544 = vunpack.c.h.b16 %v674
    %v1545 = vunpack.c.l.b16 %v675
    %v1546 = vunpack.c.h.b16 %v675
    %v1547 = vunpack.c.l.b16 %v676
    %v1548 = vunpack.c.h.b16 %v676
    %v1549 = vunpack.c.l.b16 %v677
    %v1550 = vunpack.c.h.b16 %v677
    %v1551 = vunpack.c.l.b16 %v678
    %v1552 = vunpack.c.h.b16 %v678
    %v1553 = vunpack.c.l.b16 %v679
    %v1554 = vunpack.c.h.b16 %v679
    %v1555 = vunpack.c.l.b16 %v680
    %v1556 = vunpack.c.h.b16 %v680
    %v1557 = vunpack.c.l.b16 %v681
    %v1558 = vunpack.c.h.b16 %v681
    %v1559 = vunpack.c.l.b16 %v682
    %v1560 = vunpack.c.h.b16 %v682
    %v1561 = vunpack.c.l.b16 %v683
    %v1562 = vunpack.c.h.b16 %v683
    %v1563 = vunpack.c.l.b16 %v684
    %v1564 = vunpack.c.h.b16 %v684
    %v1565 = vunpack.c.l.b16 %v685
    %v1566 = vunpack.c.h.b16 %v685
    %v1567 = vunpack.c.l.b16 %v686
    %v1568 = vunpack.c.h.b16 %v686
    %v1569 = vunpack.c.l.b16 %v687
    %v1570 = vunpack.c.h.b16 %v687
    %v1571 = vunpack.c.l.b16 %v688
    %v1572 = vunpack.c.h.b16 %v688
    %v1573 = vunpack.c.l.b16 %v689
    %v1574 = vunpack.c.h.b16 %v689
    %v1575 = vunpack.c.l.b16 %v690
    %v1576 = vunpack.c.h.b16 %v690
    %v1577 = vunpack.c.l.b16 %v691
    %v1578 = vunpack.c.h.b16 %v691
    %v1579 = vunpack.c.l.b16 %v692
    %v1580 = vunpack.c.h.b16 %v692
    %v1581 = vunpack.c.l.b16 %v693
    %v1582 = vunpack.c.h.b16 %v693
    %v1583 = vunpack.c.l.b16 %v694
    %v1584 = vunpack.c.h.b16 %v694
    %v1585 = vunpack.c.l.b16 %v695
    %v1586 = vunpack.c.h.b16 %v695
    %v1587 = vunpack.c.l.b16 %v696
    %v1588 = vunpack.c.h.b16 %v696
    %v1589 = vunpack.c.l.b16 %v697
    %v1590 = vunpack.c.h.b16 %v697
    %v1591 = vunpack.c.l.b16 %v698
    %v1592 = vunpack.c.h.b16 %v698
    %v1593 = vunpack.c.l.b16 %v699
    %v1594 = vunpack.c.h.b16 %v699
    %v1595 = vunpack.c.l.b16 %v700
    %v1596 = vunpack.c.h.b16 %v700
    %v1597 = vunpack.c.l.b16 %v701
    %v1598 = vunpack.c.h.b16 %v701
    %v1599 = vunpack.c.l.b16 %v702
    %v1600 = vunpack.c.h.b16 %v702
    %v1601 = vunpack.c.l.b16 %v703
    %v1602 = vunpack.c.h.b16 %v703
    %v1603 = vunpack.c.l.b16 %v704
    %v1604 = vunpack.c.h.b16 %v704
    %v1605 = vunpack.c.l.b16 %v705
    %v1606 = vunpack.c.h.b16 %v705
    %v1607 = vunpack.c.l.b16 %v706
    %v1608 = vunpack.c.h.b16 %v706
    %v1609 = vunpack.c.l.b16 %v707
    %v1610 = vunpack.c.h.b16 %v707
    %v1611 = vunpack.c.l.b16 %v708
    %v1612 = vunpack.c.h.b16 %v708
    %v1613 = vunpack.c.l.b16 %v709
    %v1614 = vunpack.c.h.b16 %v709
    %v1615 = vunpack.c.l.b16 %v710
    %v1616 = vunpack.c.h.b16 %v710
    %v1617 = vunpack.c.l.b16 %v711
    %v1618 = vunpack.c.h.b16 %v711
    %v1619 = vunpack.c.l.b16 %v712
    %v1620 = vunpack.c.h.b16 %v712
    %v1621 = vunpack.c.l.b16 %v713
    %v1622 = vunpack.c.h.b16 %v713
    %v1623 = vunpack.c.l.b16 %v714
    %v1624 = vunpack.c.h.b16 %v714
    %v1625 = vunpack.c.l.b16 %v715
    %v1626 = vunpack.c.h.b16 %v715
    %v1627 = vunpack.c.l.b16 %v716
    %v1628 = vunpack.c.h.b16 %v716
    %v1629 = vunpack.c.l.b16 %v717
    %v1630 = vunpack.c.h.b16 %v717
    %v1631 = vunpack.c.l.b16 %v718
    %v1632 = vunpack.c.h.b16 %v718
    %v1633 = vunpack.c.l.b16 %v719
    %v1634 = vunpack.c.h.b16 %v719
    %v1635 = vunpack.c.l.b16 %v720
    %v1636 = vunpack.c.h.b16 %v720
    %v1637 = vunpack.c.l.b16 %v721
    %v1638 = vunpack.c.h.b16 %v721
    %v1639 = vunpack.c.l.b16 %v722
    %v1640 = vunpack.c.h.b16 %v722
    %v1641 = vunpack.c.l.b16 %v723
    %v1642 = vunpack.c.h.b16 %v723
    %v1643 = vunpack.c.l.b16 %v724
    %v1644 = vunpack.c.h.b16 %v724
    %v1645 = vunpack.c.l.b16 %v725
    %v1646 = vunpack.c.h.b16 %v725
    %v1647 = vunpack.c.l.b16 %v726
    %v1648 = vunpack.c.h.b16 %v726
    %v1649 = vunpack.c.l.b16 %v727
    %v1650 = vunpack.c.h.b16 %v727
    %v1651 = vunpack.c.l.b16 %v728
    %v1652 = vunpack.c.h.b16 %v728
    %v1653 = vunpack.c.l.b16 %v729
    %v1654 = vunpack.c.h.b16 %v729
    %v1655 = vunpack.c.l.b16 %v730
    %v1656 = vunpack.c.h.b16 %v730
    %v1657 = vunpack.c.l.b16 %v731
    %v1658 = vunpack.c.h.b16 %v731
    %v1659 = vunpack.c.l.b16 %v732
    %v1660 = vunpack.c.h.b16 %v732
    %v1661 = vunpack.c.l.b16 %v733
    %v1662 = vunpack.c.h.b16 %v733
    %v1663 = vunpack.c.l.b16 %v734
    %v1664 = vunpack.c.h.b16 %v734
    %v1665 = vunpack.c.l.b16 %v735
    %v1666 = vunpack.c.h.b16 %v735
    %v1667 = vunpack.c.l.b16 %v736
    %v1668 = vunpack.c.h.b16 %v736
    %v1669 = vunpack.c.l.b16 %v737
    %v1670 = vunpack.c.h.b16 %v737
    %v1671 = vunpack.c.l.b16 %v738
    %v1672 = vunpack.c.h.b16 %v738
    %v1673 = vunpack.c.l.b16 %v739
    %v1674 = vunpack.c.h.b16 %v739
    %v1675 = vunpack.c.l.b16 %v740
    %v1676 = vunpack.c.h.b16 %v740
    %v1677 = vunpack.c.l.b16 %v741
    %v1678 = vunpack.c.h.b16 %v741
    %v1679 = vunpack.c.l.b16 %v742
    %v1680 = vunpack.c.h.b16 %v742
    %v1681 = vunpack.c.l.b16 %v743
    %v1682 = vunpack.c.h.b16 %v743
    %v1683 = vunpack.c.l.b16 %v744
    %v1684 = vunpack.c.h.b16 %v744
    %v1685 = vunpack.c.l.b16 %v745
    %v1686 = vunpack.c.h.b16 %v745
    %v1687 = vunpack.c.l.b16 %v746
    %v1688 = vunpack.c.h.b16 %v746
    %v1689 = vpack.c.b16 %v1181, %v1177
    %v1690 = vpack.c.b16 %v1182, %v1178
    %v1691 = vpack.c.b16 %v1183, %v1179
    %v1692 = vpack.c.b16 %v1184, %v1180
    %v1693 = vpack.c.b16 %v1189, %v1185
    %v1694 = vpack.c.b16 %v1190, %v1186
    %v1695 = vpack.c.b16 %v1191, %v1187
    %v1696 = vpack.c.b16 %v1192, %v1188
    %v1697 = vpack.c.b16 %v1197, %v1193
    %v1698 = vpack.c.b16 %v1198, %v1194
    %v1699 = vpack.c.b16 %v1199, %v1195
    %v1700 = vpack.c.b16 %v1200, %v1196
    %v1701 = vpack.c.b16 %v1205, %v1201
    %v1702 = vpack.c.b16 %v1206, %v1202
    %v1703 = vpack.c.b16 %v1207, %v1203
    %v1704 = vpack.c.b16 %v1208, %v1204
    %v1705 = vpack.c.b16 %v1213, %v1209
    %v1706 = vpack.c.b16 %v1214, %v1210
    %v1707 = vpack.c.b16 %v1215, %v1211
    %v1708 = vpack.c.b16 %v1216, %v1212
    %v1709 = vpack.c.b16 %v1221, %v1217
    %v1710 = vpack.c.b16 %v1222, %v1218
    %v1711 = vpack.c.b16 %v1223, %v1219
    %v1712 = vpack.c.b16 %v1224, %v1220
    %v1713 = vpack.c.b16 %v1229, %v1225
    %v1714 = vpack.c.b16 %v1230, %v1226
    %v1715 = vpack.c.b16 %v1231, %v1227
    %v1716 = vpack.c.b16 %v1232, %v1228
    %v1717 = vpack.c.b16 %v1237, %v1233
    %v1718 = vpack.c.b16 %v1238, %v1234
    %v1719 = vpack.c.b16 %v1239, %v1235
    %v1720 = vpack.c.b16 %v1240, %v1236
    %v1721 = vpack.c.b16 %v1245, %v1241
    %v1722 = vpack.c.b16 %v1246, %v1242
    %v1723 = vpack.c.b16 %v1247, %v1243
    %v1724 = vpack.c.b16 %v1248, %v1244
    %v1725 = vpack.c.b16 %v1253, %v1249
    %v1726 = vpack.c.b16 %v1254, %v1250
    %v1727 = vpack.c.b16 %v1255, %v1251
    %v1728 = vpack.c.b16 %v1256, %v1252
    %v1729 = vpack.c.b16 %v1261, %v1257
    %v1730 = vpack.c.b16 %v1262, %v1258
    %v1731 = vpack.c.b16 %v1263, %v1259
    %v1732 = vpack.c.b16 %v1264, %v1260
    %v1733 = vpack.c.b16 %v1269, %v1265
    %v1734 = vpack.c.b16 %v1270, %v1266
    %v1735 = vpack.c.b16 %v1271, %v1267
    %v1736 = vpack.c.b16 %v1272, %v1268
    %v1737 = vpack.c.b16 %v1277, %v1273
    %v1738 = vpack.c.b16 %v1278, %v1274
    %v1739 = vpack.c.b16 %v1279, %v1275
    %v1740 = vpack.c.b16 %v1280, %v1276
    %v1741 = vpack.c.b16 %v1285, %v1281
    %v1742 = vpack.c.b16 %v1286, %v1282
    %v1743 = vpack.c.b16 %v1287, %v1283
    %v1744 = vpack.c.b16 %v1288, %v1284
    %v1745 = vpack.c.b16 %v1293, %v1289
    %v1746 = vpack.c.b16 %v1294, %v1290
    %v1747 = vpack.c.b16 %v1295, %v1291
    %v1748 = vpack.c.b16 %v1296, %v1292
    %v1749 = vpack.c.b16 %v1301, %v1297
    %v1750 = vpack.c.b16 %v1302, %v1298
    %v1751 = vpack.c.b16 %v1303, %v1299
    %v1752 = vpack.c.b16 %v1304, %v1300
    %v1753 = vpack.c.b16 %v1309, %v1305
    %v1754 = vpack.c.b16 %v1310, %v1306
    %v1755 = vpack.c.b16 %v1311, %v1307
    %v1756 = vpack.c.b16 %v1312, %v1308
    %v1757 = vpack.c.b16 %v1317, %v1313
    %v1758 = vpack.c.b16 %v1318, %v1314
    %v1759 = vpack.c.b16 %v1319, %v1315
    %v1760 = vpack.c.b16 %v1320, %v1316
    %v1761 = vpack.c.b16 %v1325, %v1321
    %v1762 = vpack.c.b16 %v1326, %v1322
    %v1763 = vpack.c.b16 %v1327, %v1323
    %v1764 = vpack.c.b16 %v1328, %v1324
    %v1765 = vpack.c.b16 %v1333, %v1329
    %v1766 = vpack.c.b16 %v1334, %v1330
    %v1767 = vpack.c.b16 %v1335, %v1331
    %v1768 = vpack.c.b16 %v1336, %v1332
    %v1769 = vpack.c.b16 %v1341, %v1337
    %v1770 = vpack.c.b16 %v1342, %v1338
    %v1771 = vpack.c.b16 %v1343, %v1339
    %v1772 = vpack.c.b16 %v1344, %v1340
    %v1773 = vpack.c.b16 %v1349, %v1345
    %v1774 = vpack.c.b16 %v1350, %v1346
    %v1775 = vpack.c.b16 %v1351, %v1347
    %v1776 = vpack.c.b16 %v1352, %v1348
    %v1777 = vpack.c.b16 %v1357, %v1353
    %v1778 = vpack.c.b16 %v1358, %v1354
    %v1779 = vpack.c.b16 %v1359, %v1355
    %v1780 = vpack.c.b16 %v1360, %v1356
    %v1781 = vpack.c.b16 %v1365, %v1361
    %v1782 = vpack.c.b16 %v1366, %v1362
    %v1783 = vpack.c.b16 %v1367, %v1363
    %v1784 = vpack.c.b16 %v1368, %v1364
    %v1785 = vpack.c.b16 %v1373, %v1369
    %v1786 = vpack.c.b16 %v1374, %v1370
    %v1787 = vpack.c.b16 %v1375, %v1371
    %v1788 = vpack.c.b16 %v1376, %v1372
    %v1789 = vpack.c.b16 %v1381, %v1377
    %v1790 = vpack.c.b16 %v1382, %v1378
    %v1791 = vpack.c.b16 %v1383, %v1379
    %v1792 = vpack.c.b16 %v1384, %v1380
    %v1793 = vpack.c.b16 %v1389, %v1385
    %v1794 = vpack.c.b16 %v1390, %v1386
    %v1795 = vpack.c.b16 %v1391, %v1387
    %v1796 = vpack.c.b16 %v1392, %v1388
    %v1797 = vpack.c.b16 %v1397, %v1393
    %v1798 = vpack.c.b16 %v1398, %v1394
    %v1799 = vpack.c.b16 %v1399, %v1395
    %v1800 = vpack.c.b16 %v1400, %v1396
    %v1801 = vpack.c.b16 %v1405, %v1401
    %v1802 = vpack.c.b16 %v1406, %v1402
    %v1803 = vpack.c.b16 %v1407, %v1403
    %v1804 = vpack.c.b16 %v1408, %v1404
    %v1805 = vpack.c.b16 %v1413, %v1409
    %v1806 = vpack.c.b16 %v1414, %v1410
    %v1807 = vpack.c.b16 %v1415, %v1411
    %v1808 = vpack.c.b16 %v1416, %v1412
    %v1809 = vpack.c.b16 %v1421, %v1417
    %v1810 = vpack.c.b16 %v1422, %v1418
    %v1811 = vpack.c.b16 %v1423, %v1419
    %v1812 = vpack.c.b16 %v1424, %v1420
    %v1813 = vpack.c.b16 %v1429, %v1425
    %v1814 = vpack.c.b16 %v1430, %v1426
    %v1815 = vpack.c.b16 %v1431, %v1427
    %v1816 = vpack.c.b16 %v1432, %v1428
    %v1817 = vpack.c.b16 %v1437, %v1433
    %v1818 = vpack.c.b16 %v1438, %v1434
    %v1819 = vpack.c.b16 %v1439, %v1435
    %v1820 = vpack.c.b16 %v1440, %v1436
    %v1821 = vpack.c.b16 %v1445, %v1441
    %v1822 = vpack.c.b16 %v1446, %v1442
    %v1823 = vpack.c.b16 %v1447, %v1443
    %v1824 = vpack.c.b16 %v1448, %v1444
    %v1825 = vpack.c.b16 %v1453, %v1449
    %v1826 = vpack.c.b16 %v1454, %v1450
    %v1827 = vpack.c.b16 %v1455, %v1451
    %v1828 = vpack.c.b16 %v1456, %v1452
    %v1829 = vpack.c.b16 %v1461, %v1457
    %v1830 = vpack.c.b16 %v1462, %v1458
    %v1831 = vpack.c.b16 %v1463, %v1459
    %v1832 = vpack.c.b16 %v1464, %v1460
    %v1833 = vpack.c.b16 %v1469, %v1465
    %v1834 = vpack.c.b16 %v1470, %v1466
    %v1835 = vpack.c.b16 %v1471, %v1467
    %v1836 = vpack.c.b16 %v1472, %v1468
    %v1837 = vpack.c.b16 %v1477, %v1473
    %v1838 = vpack.c.b16 %v1478, %v1474
    %v1839 = vpack.c.b16 %v1479, %v1475
    %v1840 = vpack.c.b16 %v1480, %v1476
    %v1841 = vpack.c.b16 %v1485, %v1481
    %v1842 = vpack.c.b16 %v1486, %v1482
    %v1843 = vpack.c.b16 %v1487, %v1483
    %v1844 = vpack.c.b16 %v1488, %v1484
    %v1845 = vpack.c.b16 %v1493, %v1489
    %v1846 = vpack.c.b16 %v1494, %v1490
    %v1847 = vpack.c.b16 %v1495, %v1491
    %v1848 = vpack.c.b16 %v1496, %v1492
    %v1849 = vpack.c.b16 %v1501, %v1497
    %v1850 = vpack.c.b16 %v1502, %v1498
    %v1851 = vpack.c.b16 %v1503, %v1499
    %v1852 = vpack.c.b16 %v1504, %v1500
    %v1853 = vpack.c.b16 %v1509, %v1505
    %v1854 = vpack.c.b16 %v1510, %v1506
    %v1855 = vpack.c.b16 %v1511, %v1507
    %v1856 = vpack.c.b16 %v1512, %v1508
    %v1857 = vpack.c.b16 %v1517, %v1513
    %v1858 = vpack.c.b16 %v1518, %v1514
    %v1859 = vpack.c.b16 %v1519, %v1515
    %v1860 = vpack.c.b16 %v1520, %v1516
    %v1861 = vpack.c.b16 %v1525, %v1521
    %v1862 = vpack.c.b16 %v1526, %v1522
    %v1863 = vpack.c.b16 %v1527, %v1523
    %v1864 = vpack.c.b16 %v1528, %v1524
    %v1865 = vpack.c.b16 %v1533, %v1529
    %v1866 = vpack.c.b16 %v1534, %v1530
    %v1867 = vpack.c.b16 %v1535, %v1531
    %v1868 = vpack.c.b16 %v1536, %v1532
    %v1869 = vpack.c.b16 %v1541, %v1537
    %v1870 = vpack.c.b16 %v1542, %v1538
    %v1871 = vpack.c.b16 %v1543, %v1539
    %v1872 = vpack.c.b16 %v1544, %v1540
    %v1873 = vpack.c.b16 %v1549, %v1545
    %v1874 = vpack.c.b16 %v1550, %v1546
    %v1875 = vpack.c.b16 %v1551, %v1547
    %v1876 = vpack.c.b16 %v1552, %v1548
    %v1877 = vpack.c.b16 %v1557, %v1553
    %v1878 = vpack.c.b16 %v1558, %v1554
    %v1879 = vpack.c.b16 %v1559, %v1555
    %v1880 = vpack.c.b16 %v1560, %v1556
    %v1881 = vpack.c.b16 %v1565, %v1561
    %v1882 = vpack.c.b16 %v1566, %v1562
    %v1883 = vpack.c.b16 %v1567, %v1563
    %v1884 = vpack.c.b16 %v1568, %v1564
    %v1885 = vpack.c.b16 %v1573, %v1569
    %v1886 = vpack.c.b16 %v1574, %v1570
    %v1887 = vpack.c.b16 %v1575, %v1571
    %v1888 = vpack.c.b16 %v1576, %v1572
    %v1889 = vpack.c.b16 %v1581, %v1577
    %v1890 = vpack.c.b16 %v1582, %v1578
    %v1891 = vpack.c.b16 %v1583, %v1579
    %v1892 = vpack.c.b16 %v1584, %v1580
    %v1893 = vpack.c.b16 %v1589, %v1585
    %v1894 = vpack.c.b16 %v1590, %v1586
    %v1895 = vpack.c.b16 %v1591, %v1587
    %v1896 = vpack.c.b16 %v1592, %v1588
    %v1897 = vpack.c.b16 %v1597, %v1593
    %v1898 = vpack.c.b16 %v1598, %v1594
    %v1899 = vpack.c.b16 %v1599, %v1595
    %v1900 = vpack.c.b16 %v1600, %v1596
    %v1901 = vpack.c.b16 %v1605, %v1601
    %v1902 = vpack.c.b16 %v1606, %v1602
    %v1903 = vpack.c.b16 %v1607, %v1603
    %v1904 = vpack.c.b16 %v1608, %v1604
    %v1905 = vpack.c.b16 %v1613, %v1609
    %v1906 = vpack.c.b16 %v1614, %v1610
    %v1907 = vpack.c.b16 %v1615, %v1611
    %v1908 = vpack.c.b16 %v1616, %v1612
    %v1909 = vpack.c.b16 %v1621, %v1617
    %v1910 = vpack.c.b16 %v1622, %v1618
    %v1911 = vpack.c.b16 %v1623, %v1619
    %v1912 = vpack.c.b16 %v1624, %v1620
    %v1913 = vpack.c.b16 %v1629, %v1625
    %v1914 = vpack.c.b16 %v1630, %v1626
    %v1915 = vpack.c.b16 %v1631, %v1627
    %v1916 = vpack.c.b16 %v1632, %v1628
    %v1917 = vpack.c.b16 %v1637, %v1633
    %v1918 = vpack.c.b16 %v1638, %v1634
    %v1919 = vpack.c.b16 %v1639, %v1635
    %v1920 = vpack.c.b16 %v1640, %v1636
    %v1921 = vpack.c.b16 %v1645, %v1641
    %v1922 = vpack.c.b16 %v1646, %v1642
    %v1923 = vpack.c.b16 %v1647, %v1643
    %v1924 = vpack.c.b16 %v1648, %v1644
    %v1925 = vpack.c.b16 %v1653, %v1649
    %v1926 = vpack.c.b16 %v1654, %v1650
    %v1927 = vpack.c.b16 %v1655, %v1651
    %v1928 = vpack.c.b16 %v1656, %v1652
    %v1929 = vpack.c.b16 %v1661, %v1657
    %v1930 = vpack.c.b16 %v1662, %v1658
    %v1931 = vpack.c.b16 %v1663, %v1659
    %v1932 = vpack.c.b16 %v1664, %v1660
    %v1933 = vpack.c.b16 %v1669, %v1665
    %v1934 = vpack.c.b16 %v1670, %v1666
    %v1935 = vpack.c.b16 %v1671, %v1667
    %v1936 = vpack.c.b16 %v1672, %v1668
    %v1937 = vpack.c.b16 %v1677, %v1673
    %v1938 = vpack.c.b16 %v1678, %v1674
    %v1939 = vpack.c.b16 %v1679, %v1675
    %v1940 = vpack.c.b16 %v1680, %v1676
    %v1941 = vpack.c.b16 %v1685, %v1681
    %v1942 = vpack.c.b16 %v1686, %v1682
    %v1943 = vpack.c.b16 %v1687, %v1683
    %v1944 = vpack.c.b16 %v1688, %v1684
    %2201 = vmatprep.subr.bf16.mxu0 %v1690
    %2202 = vmatpush1.bf16.msra.mxu0 %v1689
    %2203 = vmatprep.subr.bf16.mxu0 %v1694
    %2204 = vmatpush1.bf16.msra.mxu0 %v1693
    %2205 = vmatprep.subr.bf16.mxu0 %v1698
    %2206 = vmatpush1.bf16.msra.mxu0 %v1697
    %2207 = vmatprep.subr.bf16.mxu0 %v1702
    %2208 = vmatpush1.bf16.msra.mxu0 %v1701
    %2209 = vmatprep.subr.bf16.mxu0 %v1706
    %2210 = vmatpush1.bf16.msra.mxu0 %v1705
    %2211 = vmatprep.subr.bf16.mxu0 %v1710
    %2212 = vmatpush1.bf16.msra.mxu0 %v1709
    %2213 = vmatprep.subr.bf16.mxu0 %v1714
    %2214 = vmatpush1.bf16.msra.mxu0 %v1713
    %2215 = vmatprep.subr.bf16.mxu0 %v1718
    %2216 = vmatpush1.bf16.msra.mxu0 %v1717
    %2217 = vmatprep.subr.bf16.mxu0 %v1722
    %2218 = vmatpush1.bf16.msra.mxu0 %v1721
    %2219 = vmatprep.subr.bf16.mxu0 %v1726
    %2220 = vmatpush1.bf16.msra.mxu0 %v1725
    %2221 = vmatprep.subr.bf16.mxu0 %v1730
    %2222 = vmatpush1.bf16.msra.mxu0 %v1729
    %2223 = vmatprep.subr.bf16.mxu0 %v1734
    %2224 = vmatpush1.bf16.msra.mxu0 %v1733
    %2225 = vmatprep.subr.bf16.mxu0 %v1738
    %2226 = vmatpush1.bf16.msra.mxu0 %v1737
    %2227 = vmatprep.subr.bf16.mxu0 %v1742
    %2228 = vmatpush1.bf16.msra.mxu0 %v1741
    %2229 = vmatprep.subr.bf16.mxu0 %v1746
    %2230 = vmatpush1.bf16.msra.mxu0 %v1745
    %2231 = vmatprep.subr.bf16.mxu0 %v1750
    %2232 = vmatpush1.bf16.msra.mxu0 %v1749
    %2233 = vmatprep.mubr.bf16.mxu0 %v909
    %2234 = vmatmul.mubr.bf16.gmra.mrb[0].mxu0 %v905
    %v2235 = vpop.f32.mrb[0].mxu0
    %v2236 = vadd.f32 %v752, %v2235
    %v2237 = vpop.f32.mrb[0].mxu0
    %v2238 = vadd.f32 %v756, %v2237
    %v2239 = vpop.f32.mrb[0].mxu0
    %v2240 = vadd.f32 %v752, %v2239
    %v2241 = vpop.f32.mrb[0].mxu0
    %v2242 = vadd.f32 %v756, %v2241
    %2243 = vdwg.mxu0
    %2244 = vmatprep.subr.bf16.mxu0 %v1754
    %2245 = vmatpush1.bf16.msra.mxu0 %v1753
    %2246 = vmatprep.subr.bf16.mxu0 %v1758
    %2247 = vmatpush1.bf16.msra.mxu0 %v1757
    %2248 = vmatprep.subr.bf16.mxu0 %v1762
    %2249 = vmatpush1.bf16.msra.mxu0 %v1761
    %2250 = vmatprep.subr.bf16.mxu0 %v1766
    %2251 = vmatpush1.bf16.msra.mxu0 %v1765
    %2252 = vmatprep.subr.bf16.mxu0 %v1770
    %2253 = vmatpush1.bf16.msra.mxu0 %v1769
    %2254 = vmatprep.subr.bf16.mxu0 %v1774
    %2255 = vmatpush1.bf16.msra.mxu0 %v1773
    %2256 = vmatprep.subr.bf16.mxu0 %v1778
    %2257 = vmatpush1.bf16.msra.mxu0 %v1777
    %2258 = vmatprep.subr.bf16.mxu0 %v1782
    %2259 = vmatpush1.bf16.msra.mxu0 %v1781
    %2260 = vmatprep.subr.bf16.mxu0 %v1786
    %2261 = vmatpush1.bf16.msra.mxu0 %v1785
    %2262 = vmatprep.subr.bf16.mxu0 %v1790
    %2263 = vmatpush1.bf16.msra.mxu0 %v1789
    %2264 = vmatprep.subr.bf16.mxu0 %v1794
    %2265 = vmatpush1.bf16.msra.mxu0 %v1793
    %2266 = vmatprep.subr.bf16.mxu0 %v1798
    %2267 = vmatpush1.bf16.msra.mxu0 %v1797
    %2268 = vmatprep.subr.bf16.mxu0 %v1802
    %2269 = vmatpush1.bf16.msra.mxu0 %v1801
    %2270 = vmatprep.subr.bf16.mxu0 %v1806
    %2271 = vmatpush1.bf16.msra.mxu0 %v1805
    %2272 = vmatprep.subr.bf16.mxu0 %v1810
    %2273 = vmatpush1.bf16.msra.mxu0 %v1809
    %2274 = vmatprep.subr.bf16.mxu0 %v1814
    %2275 = vmatpush1.bf16.msra.mxu0 %v1813
    %2276 = vmatprep.mubr.bf16.mxu0 %v910
    %2277 = vmatmul.mubr.bf16.gmra.mrb[0].mxu0 %v906
    %v2278 = vpop.f32.mrb[0].mxu0
    %v2279 = vadd.f32 %v2236, %v2278
    %v2280 = vpop.f32.mrb[0].mxu0
    %v2281 = vadd.f32 %v2238, %v2280
    %v2282 = vpop.f32.mrb[0].mxu0
    %v2283 = vadd.f32 %v2240, %v2282
    %v2284 = vpop.f32.mrb[0].mxu0
    %v2285 = vadd.f32 %v2242, %v2284
    %2286 = vdwg.mxu0
    %2287 = vmatprep.subr.bf16.mxu0 %v1818
    %2288 = vmatpush1.bf16.msra.mxu0 %v1817
    %2289 = vmatprep.subr.bf16.mxu0 %v1822
    %2290 = vmatpush1.bf16.msra.mxu0 %v1821
    %2291 = vmatprep.subr.bf16.mxu0 %v1826
    %2292 = vmatpush1.bf16.msra.mxu0 %v1825
    %2293 = vmatprep.subr.bf16.mxu0 %v1830
    %2294 = vmatpush1.bf16.msra.mxu0 %v1829
    %2295 = vmatprep.subr.bf16.mxu0 %v1834
    %2296 = vmatpush1.bf16.msra.mxu0 %v1833
    %2297 = vmatprep.subr.bf16.mxu0 %v1838
    %2298 = vmatpush1.bf16.msra.mxu0 %v1837
    %2299 = vmatprep.subr.bf16.mxu0 %v1842
    %2300 = vmatpush1.bf16.msra.mxu0 %v1841
    %2301 = vmatprep.subr.bf16.mxu0 %v1846
    %2302 = vmatpush1.bf16.msra.mxu0 %v1845
    %2303 = vmatprep.subr.bf16.mxu0 %v1850
    %2304 = vmatpush1.bf16.msra.mxu0 %v1849
    %2305 = vmatprep.subr.bf16.mxu0 %v1854
    %2306 = vmatpush1.bf16.msra.mxu0 %v1853
    %2307 = vmatprep.subr.bf16.mxu0 %v1858
    %2308 = vmatpush1.bf16.msra.mxu0 %v1857
    %2309 = vmatprep.subr.bf16.mxu0 %v1862
    %2310 = vmatpush1.bf16.msra.mxu0 %v1861
    %2311 = vmatprep.subr.bf16.mxu0 %v1866
    %2312 = vmatpush1.bf16.msra.mxu0 %v1865
    %2313 = vmatprep.subr.bf16.mxu0 %v1870
    %2314 = vmatpush1.bf16.msra.mxu0 %v1869
    %2315 = vmatprep.subr.bf16.mxu0 %v1874
    %2316 = vmatpush1.bf16.msra.mxu0 %v1873
    %2317 = vmatprep.subr.bf16.mxu0 %v1878
    %2318 = vmatpush1.bf16.msra.mxu0 %v1877
    %2319 = vmatprep.mubr.bf16.mxu0 %v911
    %2320 = vmatmul.mubr.bf16.gmra.mrb[0].mxu0 %v907
    %v2321 = vpop.f32.mrb[0].mxu0
    %v2322 = vadd.f32 %v2279, %v2321
    %v2323 = vpop.f32.mrb[0].mxu0
    %v2324 = vadd.f32 %v2281, %v2323
    %v2325 = vpop.f32.mrb[0].mxu0
    %v2326 = vadd.f32 %v2283, %v2325
    %v2327 = vpop.f32.mrb[0].mxu0
    %v2328 = vadd.f32 %v2285, %v2327
    %2329 = vdwg.mxu0
    %2330 = vmatprep.subr.bf16.mxu0 %v1882
    %2331 = vmatpush1.bf16.msra.mxu0 %v1881
    %2332 = vmatprep.subr.bf16.mxu0 %v1886
    %2333 = vmatpush1.bf16.msra.mxu0 %v1885
    %2334 = vmatprep.subr.bf16.mxu0 %v1890
    %2335 = vmatpush1.bf16.msra.mxu0 %v1889
    %2336 = vmatprep.subr.bf16.mxu0 %v1894
    %2337 = vmatpush1.bf16.msra.mxu0 %v1893
    %2338 = vmatprep.subr.bf16.mxu0 %v1898
    %2339 = vmatpush1.bf16.msra.mxu0 %v1897
    %2340 = vmatprep.subr.bf16.mxu0 %v1902
    %2341 = vmatpush1.bf16.msra.mxu0 %v1901
    %2342 = vmatprep.subr.bf16.mxu0 %v1906
    %2343 = vmatpush1.bf16.msra.mxu0 %v1905
    %2344 = vmatprep.subr.bf16.mxu0 %v1910
    %2345 = vmatpush1.bf16.msra.mxu0 %v1909
    %2346 = vmatprep.subr.bf16.mxu0 %v1914
    %2347 = vmatpush1.bf16.msra.mxu0 %v1913
    %2348 = vmatprep.subr.bf16.mxu0 %v1918
    %2349 = vmatpush1.bf16.msra.mxu0 %v1917
    %2350 = vmatprep.subr.bf16.mxu0 %v1922
    %2351 = vmatpush1.bf16.msra.mxu0 %v1921
    %2352 = vmatprep.subr.bf16.mxu0 %v1926
    %2353 = vmatpush1.bf16.msra.mxu0 %v1925
    %2354 = vmatprep.subr.bf16.mxu0 %v1930
    %2355 = vmatpush1.bf16.msra.mxu0 %v1929
    %2356 = vmatprep.subr.bf16.mxu0 %v1934
    %2357 = vmatpush1.bf16.msra.mxu0 %v1933
    %2358 = vmatprep.subr.bf16.mxu0 %v1938
    %2359 = vmatpush1.bf16.msra.mxu0 %v1937
    %2360 = vmatprep.subr.bf16.mxu0 %v1942
    %2361 = vmatpush1.bf16.msra.mxu0 %v1941
    %2362 = vmatprep.mubr.bf16.mxu0 %v912
    %2363 = vmatmul.mubr.bf16.gmra.mrb[0].mxu0 %v908
    %v2364 = vpop.f32.mrb[0].mxu0
    %v2365 = vadd.f32 %v2322, %v2364
    %v2366 = vpop.f32.mrb[0].mxu0
    %v2367 = vadd.f32 %v2324, %v2366
    %v2368 = vpop.f32.mrb[0].mxu0
    %v2369 = vadd.f32 %v2326, %v2368
    %v2370 = vpop.f32.mrb[0].mxu0
    %v2371 = vadd.f32 %v2328, %v2370
    %2372 = vdwg.mxu0
    %2373 = vmatprep.subr.bf16.mxu0 %v1692
    %2374 = vmatpush1.bf16.msra.mxu0 %v1691
    %2375 = vmatprep.subr.bf16.mxu0 %v1696
    %2376 = vmatpush1.bf16.msra.mxu0 %v1695
    %2377 = vmatprep.subr.bf16.mxu0 %v1700
    %2378 = vmatpush1.bf16.msra.mxu0 %v1699
    %2379 = vmatprep.subr.bf16.mxu0 %v1704
    %2380 = vmatpush1.bf16.msra.mxu0 %v1703
    %2381 = vmatprep.subr.bf16.mxu0 %v1708
    %2382 = vmatpush1.bf16.msra.mxu0 %v1707
    %2383 = vmatprep.subr.bf16.mxu0 %v1712
    %2384 = vmatpush1.bf16.msra.mxu0 %v1711
    %2385 = vmatprep.subr.bf16.mxu0 %v1716
    %2386 = vmatpush1.bf16.msra.mxu0 %v1715
    %2387 = vmatprep.subr.bf16.mxu0 %v1720
    %2388 = vmatpush1.bf16.msra.mxu0 %v1719
    %2389 = vmatprep.subr.bf16.mxu0 %v1724
    %2390 = vmatpush1.bf16.msra.mxu0 %v1723
    %2391 = vmatprep.subr.bf16.mxu0 %v1728
    %2392 = vmatpush1.bf16.msra.mxu0 %v1727
    %2393 = vmatprep.subr.bf16.mxu0 %v1732
    %2394 = vmatpush1.bf16.msra.mxu0 %v1731
    %2395 = vmatprep.subr.bf16.mxu0 %v1736
    %2396 = vmatpush1.bf16.msra.mxu0 %v1735
    %2397 = vmatprep.subr.bf16.mxu0 %v1740
    %2398 = vmatpush1.bf16.msra.mxu0 %v1739
    %2399 = vmatprep.subr.bf16.mxu0 %v1744
    %2400 = vmatpush1.bf16.msra.mxu0 %v1743
    %2401 = vmatprep.subr.bf16.mxu0 %v1748
    %2402 = vmatpush1.bf16.msra.mxu0 %v1747
    %2403 = vmatprep.subr.bf16.mxu0 %v1752
    %2404 = vmatpush1.bf16.msra.mxu0 %v1751
    %2405 = vmatprep.mubr.bf16.mxu0 %v909
    %2406 = vmatmul.mubr.bf16.gmra.mrb[0].mxu0 %v905
    %v2407 = vpop.f32.mrb[0].mxu0
    %v2408 = vadd.f32 %v760, %v2407
    %v2409 = vpop.f32.mrb[0].mxu0
    %v2410 = vadd.f32 %v764, %v2409
    %v2411 = vpop.f32.mrb[0].mxu0
    %v2412 = vadd.f32 %v760, %v2411
    %v2413 = vpop.f32.mrb[0].mxu0
    %v2414 = vadd.f32 %v764, %v2413
    %2415 = vdwg.mxu0
    %2416 = vmatprep.subr.bf16.mxu0 %v1756
    %2417 = vmatpush1.bf16.msra.mxu0 %v1755
    %2418 = vmatprep.subr.bf16.mxu0 %v1760
    %2419 = vmatpush1.bf16.msra.mxu0 %v1759
    %2420 = vmatprep.subr.bf16.mxu0 %v1764
    %2421 = vmatpush1.bf16.msra.mxu0 %v1763
    %2422 = vmatprep.subr.bf16.mxu0 %v1768
    %2423 = vmatpush1.bf16.msra.mxu0 %v1767
    %2424 = vmatprep.subr.bf16.mxu0 %v1772
    %2425 = vmatpush1.bf16.msra.mxu0 %v1771
    %2426 = vmatprep.subr.bf16.mxu0 %v1776
    %2427 = vmatpush1.bf16.msra.mxu0 %v1775
    %2428 = vmatprep.subr.bf16.mxu0 %v1780
    %2429 = vmatpush1.bf16.msra.mxu0 %v1779
    %2430 = vmatprep.subr.bf16.mxu0 %v1784
    %2431 = vmatpush1.bf16.msra.mxu0 %v1783
    %2432 = vmatprep.subr.bf16.mxu0 %v1788
    %2433 = vmatpush1.bf16.msra.mxu0 %v1787
    %2434 = vmatprep.subr.bf16.mxu0 %v1792
    %2435 = vmatpush1.bf16.msra.mxu0 %v1791
    %2436 = vmatprep.subr.bf16.mxu0 %v1796
    %2437 = vmatpush1.bf16.msra.mxu0 %v1795
    %2438 = vmatprep.subr.bf16.mxu0 %v1800
    %2439 = vmatpush1.bf16.msra.mxu0 %v1799
    %2440 = vmatprep.subr.bf16.mxu0 %v1804
    %2441 = vmatpush1.bf16.msra.mxu0 %v1803
    %2442 = vmatprep.subr.bf16.mxu0 %v1808
    %2443 = vmatpush1.bf16.msra.mxu0 %v1807
    %2444 = vmatprep.subr.bf16.mxu0 %v1812
    %2445 = vmatpush1.bf16.msra.mxu0 %v1811
    %2446 = vmatprep.subr.bf16.mxu0 %v1816
    %2447 = vmatpush1.bf16.msra.mxu0 %v1815
    %2448 = vmatprep.mubr.bf16.mxu0 %v910
    %2449 = vmatmul.mubr.bf16.gmra.mrb[0].mxu0 %v906
    %v2450 = vpop.f32.mrb[0].mxu0
    %v2451 = vadd.f32 %v2408, %v2450
    %v2452 = vpop.f32.mrb[0].mxu0
    %v2453 = vadd.f32 %v2410, %v2452
    %v2454 = vpop.f32.mrb[0].mxu0
    %v2455 = vadd.f32 %v2412, %v2454
    %v2456 = vpop.f32.mrb[0].mxu0
    %v2457 = vadd.f32 %v2414, %v2456
    %2458 = vdwg.mxu0
    %2459 = vmatprep.subr.bf16.mxu0 %v1820
    %2460 = vmatpush1.bf16.msra.mxu0 %v1819
    %2461 = vmatprep.subr.bf16.mxu0 %v1824
    %2462 = vmatpush1.bf16.msra.mxu0 %v1823
    %2463 = vmatprep.subr.bf16.mxu0 %v1828
    %2464 = vmatpush1.bf16.msra.mxu0 %v1827
    %2465 = vmatprep.subr.bf16.mxu0 %v1832
    %2466 = vmatpush1.bf16.msra.mxu0 %v1831
    %2467 = vmatprep.subr.bf16.mxu0 %v1836
    %2468 = vmatpush1.bf16.msra.mxu0 %v1835
    %2469 = vmatprep.subr.bf16.mxu0 %v1840
    %2470 = vmatpush1.bf16.msra.mxu0 %v1839
    %2471 = vmatprep.subr.bf16.mxu0 %v1844
    %2472 = vmatpush1.bf16.msra.mxu0 %v1843
    %2473 = vmatprep.subr.bf16.mxu0 %v1848
    %2474 = vmatpush1.bf16.msra.mxu0 %v1847
    %2475 = vmatprep.subr.bf16.mxu0 %v1852
    %2476 = vmatpush1.bf16.msra.mxu0 %v1851
    %2477 = vmatprep.subr.bf16.mxu0 %v1856
    %2478 = vmatpush1.bf16.msra.mxu0 %v1855
    %2479 = vmatprep.subr.bf16.mxu0 %v1860
    %2480 = vmatpush1.bf16.msra.mxu0 %v1859
    %2481 = vmatprep.subr.bf16.mxu0 %v1864
    %2482 = vmatpush1.bf16.msra.mxu0 %v1863
    %2483 = vmatprep.subr.bf16.mxu0 %v1868
    %2484 = vmatpush1.bf16.msra.mxu0 %v1867
    %2485 = vmatprep.subr.bf16.mxu0 %v1872
    %2486 = vmatpush1.bf16.msra.mxu0 %v1871
    %2487 = vmatprep.subr.bf16.mxu0 %v1876
    %2488 = vmatpush1.bf16.msra.mxu0 %v1875
    %2489 = vmatprep.subr.bf16.mxu0 %v1880
    %2490 = vmatpush1.bf16.msra.mxu0 %v1879
    %2491 = vmatprep.mubr.bf16.mxu0 %v911
    %2492 = vmatmul.mubr.bf16.gmra.mrb[0].mxu0 %v907
    %v2493 = vpop.f32.mrb[0].mxu0
    %v2494 = vadd.f32 %v2451, %v2493
    %v2495 = vpop.f32.mrb[0].mxu0
    %v2496 = vadd.f32 %v2453, %v2495
    %v2497 = vpop.f32.mrb[0].mxu0
    %v2498 = vadd.f32 %v2455, %v2497
    %v2499 = vpop.f32.mrb[0].mxu0
    %v2500 = vadd.f32 %v2457, %v2499
    %2501 = vdwg.mxu0
    %2502 = vmatprep.subr.bf16.mxu0 %v1884
    %2503 = vmatpush1.bf16.msra.mxu0 %v1883
    %2504 = vmatprep.subr.bf16.mxu0 %v1888
    %2505 = vmatpush1.bf16.msra.mxu0 %v1887
    %2506 = vmatprep.subr.bf16.mxu0 %v1892
    %2507 = vmatpush1.bf16.msra.mxu0 %v1891
    %2508 = vmatprep.subr.bf16.mxu0 %v1896
    %2509 = vmatpush1.bf16.msra.mxu0 %v1895
    %2510 = vmatprep.subr.bf16.mxu0 %v1900
    %2511 = vmatpush1.bf16.msra.mxu0 %v1899
    %2512 = vmatprep.subr.bf16.mxu0 %v1904
    %2513 = vmatpush1.bf16.msra.mxu0 %v1903
    %2514 = vmatprep.subr.bf16.mxu0 %v1908
    %2515 = vmatpush1.bf16.msra.mxu0 %v1907
    %2516 = vmatprep.subr.bf16.mxu0 %v1912
    %2517 = vmatpush1.bf16.msra.mxu0 %v1911
    %2518 = vmatprep.subr.bf16.mxu0 %v1916
    %2519 = vmatpush1.bf16.msra.mxu0 %v1915
    %2520 = vmatprep.subr.bf16.mxu0 %v1920
    %2521 = vmatpush1.bf16.msra.mxu0 %v1919
    %2522 = vmatprep.subr.bf16.mxu0 %v1924
    %2523 = vmatpush1.bf16.msra.mxu0 %v1923
    %2524 = vmatprep.subr.bf16.mxu0 %v1928
    %2525 = vmatpush1.bf16.msra.mxu0 %v1927
    %2526 = vmatprep.subr.bf16.mxu0 %v1932
    %2527 = vmatpush1.bf16.msra.mxu0 %v1931
    %2528 = vmatprep.subr.bf16.mxu0 %v1936
    %2529 = vmatpush1.bf16.msra.mxu0 %v1935
    %2530 = vmatprep.subr.bf16.mxu0 %v1940
    %2531 = vmatpush1.bf16.msra.mxu0 %v1939
    %2532 = vmatprep.subr.bf16.mxu0 %v1944
    %2533 = vmatpush1.bf16.msra.mxu0 %v1943
    %2534 = vmatprep.mubr.bf16.mxu0 %v912
    %2535 = vmatmul.mubr.bf16.gmra.mrb[0].mxu0 %v908
    %v2536 = vpop.f32.mrb[0].mxu0
    %v2537 = vadd.f32 %v2494, %v2536
    %v2538 = vpop.f32.mrb[0].mxu0
    %v2539 = vadd.f32 %v2496, %v2538
    %v2540 = vpop.f32.mrb[0].mxu0
    %v2541 = vadd.f32 %v2498, %v2540
    %v2542 = vpop.f32.mrb[0].mxu0
    %v2543 = vadd.f32 %v2500, %v2542
    %2544 = vdwg.mxu0
    %v2545 = vmax.f32 %v2365, 0.0
    %v2546 = vmax.f32 %v2367, 0.0
    %v2547 = vmax.f32 %v2537, 0.0
    %v2548 = vmax.f32 %v2539, 0.0
    %v2549 = vmax.f32 %v2369, 0.0
    %v2550 = vmax.f32 %v2371, 0.0
    %v2551 = vmax.f32 %v2541, 0.0
    %v2552 = vmax.f32 %v2543, 0.0
    %v2553 = vpack.c.bf16 %v2549, %v2545
    %v2554 = vpack.c.bf16 %v2550, %v2546
    %v2555 = vpack.c.bf16 %v2551, %v2547
    %v2556 = vpack.c.bf16 %v2552, %v2548
    %v2557 = vld [vmem:[%s10] sm:$0xf]
    %v2558 = vld [vmem:[%s10 + $0x4] sm:$0xf]
    %v2559 = vld [vmem:[%s10 + $0x8] sm:$0xf]
    %v2560 = vld [vmem:[%s10 + $0xc] sm:$0xf]
    %v2561 = vld [vmem:[%s10 + $0x10] sm:$0xf]
    %v2562 = vld [vmem:[%s10 + $0x14] sm:$0xf]
    %v2563 = vld [vmem:[%s10 + $0x18] sm:$0xf]
    %v2564 = vld [vmem:[%s10 + $0x1c] sm:$0xf]
    %v2565 = vld [vmem:[%s10 + $0x20] sm:$0xf]
    %v2566 = vld [vmem:[%s10 + $0x24] sm:$0xf]
    %v2567 = vld [vmem:[%s10 + $0x28] sm:$0xf]
    %v2568 = vld [vmem:[%s10 + $0x2c] sm:$0xf]
    %v2569 = vld [vmem:[%s10 + $0x30] sm:$0xf]
    %v2570 = vld [vmem:[%s10 + $0x34] sm:$0xf]
    %v2571 = vld [vmem:[%s10 + $0x38] sm:$0xf]
    %v2572 = vld [vmem:[%s10 + $0x3c] sm:$0xf]
    %v2573 = vld [vmem:[%s10 + $0x40] sm:$0xf]
    %v2574 = vld [vmem:[%s10 + $0x44] sm:$0xf]
    %v2575 = vld [vmem:[%s10 + $0x48] sm:$0xf]
    %v2576 = vld [vmem:[%s10 + $0x4c] sm:$0xf]
    %v2577 = vld [vmem:[%s10 + $0x50] sm:$0xf]
    %v2578 = vld [vmem:[%s10 + $0x54] sm:$0xf]
    %v2579 = vld [vmem:[%s10 + $0x58] sm:$0xf]
    %v2580 = vld [vmem:[%s10 + $0x5c] sm:$0xf]
    %v2581 = vld [vmem:[%s10 + $0x60] sm:$0xf]
    %v2582 = vld [vmem:[%s10 + $0x64] sm:$0xf]
    %v2583 = vld [vmem:[%s10 + $0x68] sm:$0xf]
    %v2584 = vld [vmem:[%s10 + $0x6c] sm:$0xf]
    %v2585 = vld [vmem:[%s10 + $0x70] sm:$0xf]
    %v2586 = vld [vmem:[%s10 + $0x74] sm:$0xf]
    %v2587 = vld [vmem:[%s10 + $0x78] sm:$0xf]
    %v2588 = vld [vmem:[%s10 + $0x7c] sm:$0xf]
    %v2589 = vld [vmem:[%s10 + $0x80] sm:$0xf]
    %v2590 = vld [vmem:[%s10 + $0x84] sm:$0xf]
    %v2591 = vld [vmem:[%s10 + $0x88] sm:$0xf]
    %v2592 = vld [vmem:[%s10 + $0x8c] sm:$0xf]
    %v2593 = vld [vmem:[%s10 + $0x90] sm:$0xf]
    %v2594 = vld [vmem:[%s10 + $0x94] sm:$0xf]
    %v2595 = vld [vmem:[%s10 + $0x98] sm:$0xf]
    %v2596 = vld [vmem:[%s10 + $0x9c] sm:$0xf]
    %v2597 = vld [vmem:[%s10 + $0xa0] sm:$0xf]
    %v2598 = vld [vmem:[%s10 + $0xa4] sm:$0xf]
    %v2599 = vld [vmem:[%s10 + $0xa8] sm:$0xf]
    %v2600 = vld [vmem:[%s10 + $0xac] sm:$0xf]
    %v2601 = vld [vmem:[%s10 + $0xb0] sm:$0xf]
    %v2602 = vld [vmem:[%s10 + $0xb4] sm:$0xf]
    %v2603 = vld [vmem:[%s10 + $0xb8] sm:$0xf]
    %v2604 = vld [vmem:[%s10 + $0xbc] sm:$0xf]
    %v2605 = vld [vmem:[%s10 + $0xc0] sm:$0xf]
    %v2606 = vld [vmem:[%s10 + $0xc4] sm:$0xf]
    %v2607 = vld [vmem:[%s10 + $0xc8] sm:$0xf]
    %v2608 = vld [vmem:[%s10 + $0xcc] sm:$0xf]
    %v2609 = vld [vmem:[%s10 + $0xd0] sm:$0xf]
    %v2610 = vld [vmem:[%s10 + $0xd4] sm:$0xf]
    %v2611 = vld [vmem:[%s10 + $0xd8] sm:$0xf]
    %v2612 = vld [vmem:[%s10 + $0xdc] sm:$0xf]
    %v2613 = vld [vmem:[%s10 + $0xe0] sm:$0xf]
    %v2614 = vld [vmem:[%s10 + $0xe4] sm:$0xf]
    %v2615 = vld [vmem:[%s10 + $0xe8] sm:$0xf]
    %v2616 = vld [vmem:[%s10 + $0xec] sm:$0xf]
    %v2617 = vld [vmem:[%s10 + $0xf0] sm:$0xf]
    %v2618 = vld [vmem:[%s10 + $0xf4] sm:$0xf]
    %v2619 = vld [vmem:[%s10 + $0xf8] sm:$0xf]
    %v2620 = vld [vmem:[%s10 + $0xfc] sm:$0xf]
    %v2621 = vld [vmem:[%s11] sm:$0xf]
    %v2622 = vld [vmem:[%s11 + $0x4] sm:$0xf]
    %v2623 = vld [vmem:[%s11 + $0x8] sm:$0xf]
    %v2624 = vld [vmem:[%s11 + $0xc] sm:$0xf]
    %v2625 = vld [vmem:[%s11 + $0x10] sm:$0xf]
    %v2626 = vld [vmem:[%s11 + $0x14] sm:$0xf]
    %v2627 = vld [vmem:[%s11 + $0x18] sm:$0xf]
    %v2628 = vld [vmem:[%s11 + $0x1c] sm:$0xf]
    %v2629 = vld [vmem:[%s11 + $0x20] sm:$0xf]
    %v2630 = vld [vmem:[%s11 + $0x24] sm:$0xf]
    %v2631 = vld [vmem:[%s11 + $0x28] sm:$0xf]
    %v2632 = vld [vmem:[%s11 + $0x2c] sm:$0xf]
    %v2633 = vld [vmem:[%s11 + $0x30] sm:$0xf]
    %v2634 = vld [vmem:[%s11 + $0x34] sm:$0xf]
    %v2635 = vld [vmem:[%s11 + $0x38] sm:$0xf]
    %v2636 = vld [vmem:[%s11 + $0x3c] sm:$0xf]
    %v2637 = vld [vmem:[%s11 + $0x40] sm:$0xf]
    %v2638 = vld [vmem:[%s11 + $0x44] sm:$0xf]
    %v2639 = vld [vmem:[%s11 + $0x48] sm:$0xf]
    %v2640 = vld [vmem:[%s11 + $0x4c] sm:$0xf]
    %v2641 = vld [vmem:[%s11 + $0x50] sm:$0xf]
    %v2642 = vld [vmem:[%s11 + $0x54] sm:$0xf]
    %v2643 = vld [vmem:[%s11 + $0x58] sm:$0xf]
    %v2644 = vld [vmem:[%s11 + $0x5c] sm:$0xf]
    %v2645 = vld [vmem:[%s11 + $0x60] sm:$0xf]
    %v2646 = vld [vmem:[%s11 + $0x64] sm:$0xf]
    %v2647 = vld [vmem:[%s11 + $0x68] sm:$0xf]
    %v2648 = vld [vmem:[%s11 + $0x6c] sm:$0xf]
    %v2649 = vld [vmem:[%s11 + $0x70] sm:$0xf]
    %v2650 = vld [vmem:[%s11 + $0x74] sm:$0xf]
    %v2651 = vld [vmem:[%s11 + $0x78] sm:$0xf]
    %v2652 = vld [vmem:[%s11 + $0x7c] sm:$0xf]
    %v2653 = vld [vmem:[%s11 + $0x80] sm:$0xf]
    %v2654 = vld [vmem:[%s11 + $0x84] sm:$0xf]
    %v2655 = vld [vmem:[%s11 + $0x88] sm:$0xf]
    %v2656 = vld [vmem:[%s11 + $0x8c] sm:$0xf]
    %v2657 = vld [vmem:[%s11 + $0x90] sm:$0xf]
    %v2658 = vld [vmem:[%s11 + $0x94] sm:$0xf]
    %v2659 = vld [vmem:[%s11 + $0x98] sm:$0xf]
    %v2660 = vld [vmem:[%s11 + $0x9c] sm:$0xf]
    %v2661 = vld [vmem:[%s11 + $0xa0] sm:$0xf]
    %v2662 = vld [vmem:[%s11 + $0xa4] sm:$0xf]
    %v2663 = vld [vmem:[%s11 + $0xa8] sm:$0xf]
    %v2664 = vld [vmem:[%s11 + $0xac] sm:$0xf]
    %v2665 = vld [vmem:[%s11 + $0xb0] sm:$0xf]
    %v2666 = vld [vmem:[%s11 + $0xb4] sm:$0xf]
    %v2667 = vld [vmem:[%s11 + $0xb8] sm:$0xf]
    %v2668 = vld [vmem:[%s11 + $0xbc] sm:$0xf]
    %v2669 = vld [vmem:[%s11 + $0xc0] sm:$0xf]
    %v2670 = vld [vmem:[%s11 + $0xc4] sm:$0xf]
    %v2671 = vld [vmem:[%s11 + $0xc8] sm:$0xf]
    %v2672 = vld [vmem:[%s11 + $0xcc] sm:$0xf]
    %v2673 = vld [vmem:[%s11 + $0xd0] sm:$0xf]
    %v2674 = vld [vmem:[%s11 + $0xd4] sm:$0xf]
    %v2675 = vld [vmem:[%s11 + $0xd8] sm:$0xf]
    %v2676 = vld [vmem:[%s11 + $0xdc] sm:$0xf]
    %v2677 = vld [vmem:[%s11 + $0xe0] sm:$0xf]
    %v2678 = vld [vmem:[%s11 + $0xe4] sm:$0xf]
    %v2679 = vld [vmem:[%s11 + $0xe8] sm:$0xf]
    %v2680 = vld [vmem:[%s11 + $0xec] sm:$0xf]
    %v2681 = vld [vmem:[%s11 + $0xf0] sm:$0xf]
    %v2682 = vld [vmem:[%s11 + $0xf4] sm:$0xf]
    %v2683 = vld [vmem:[%s11 + $0xf8] sm:$0xf]
    %v2684 = vld [vmem:[%s11 + $0xfc] sm:$0xf]
    %v2749 = vunpack.c.l.b16 %v2621
    %v2750 = vunpack.c.l.b16 %v2622
    %v2751 = vunpack.c.l.b16 %v2623
    %v2752 = vunpack.c.l.b16 %v2624
    %v2753 = vunpack.c.l.b16 %v2625
    %v2754 = vunpack.c.l.b16 %v2626
    %v2755 = vunpack.c.l.b16 %v2627
    %v2756 = vunpack.c.l.b16 %v2628
    %v2757 = vunpack.c.l.b16 %v2629
    %v2758 = vunpack.c.l.b16 %v2630
    %v2759 = vunpack.c.l.b16 %v2631
    %v2760 = vunpack.c.l.b16 %v2632
    %v2761 = vunpack.c.l.b16 %v2633
    %v2762 = vunpack.c.l.b16 %v2634
    %v2763 = vunpack.c.l.b16 %v2635
    %v2764 = vunpack.c.l.b16 %v2636
    %v2765 = vunpack.c.l.b16 %v2637
    %v2766 = vunpack.c.l.b16 %v2638
    %v2767 = vunpack.c.l.b16 %v2639
    %v2768 = vunpack.c.l.b16 %v2640
    %v2769 = vunpack.c.l.b16 %v2641
    %v2770 = vunpack.c.l.b16 %v2642
    %v2771 = vunpack.c.l.b16 %v2643
    %v2772 = vunpack.c.l.b16 %v2644
    %v2773 = vunpack.c.l.b16 %v2645
    %v2774 = vunpack.c.l.b16 %v2646
    %v2775 = vunpack.c.l.b16 %v2647
    %v2776 = vunpack.c.l.b16 %v2648
    %v2777 = vunpack.c.l.b16 %v2649
    %v2778 = vunpack.c.l.b16 %v2650
    %v2779 = vunpack.c.l.b16 %v2651
    %v2780 = vunpack.c.l.b16 %v2652
    %v2781 = vunpack.c.l.b16 %v2653
    %v2782 = vunpack.c.l.b16 %v2654
    %v2783 = vunpack.c.l.b16 %v2655
    %v2784 = vunpack.c.l.b16 %v2656
    %v2785 = vunpack.c.l.b16 %v2657
    %v2786 = vunpack.c.l.b16 %v2658
    %v2787 = vunpack.c.l.b16 %v2659
    %v2788 = vunpack.c.l.b16 %v2660
    %v2789 = vunpack.c.l.b16 %v2661
    %v2790 = vunpack.c.l.b16 %v2662
    %v2791 = vunpack.c.l.b16 %v2663
    %v2792 = vunpack.c.l.b16 %v2664
    %v2793 = vunpack.c.l.b16 %v2665
    %v2794 = vunpack.c.l.b16 %v2666
    %v2795 = vunpack.c.l.b16 %v2667
    %v2796 = vunpack.c.l.b16 %v2668
    %v2797 = vunpack.c.l.b16 %v2669
    %v2798 = vunpack.c.l.b16 %v2670
    %v2799 = vunpack.c.l.b16 %v2671
    %v2800 = vunpack.c.l.b16 %v2672
    %v2801 = vunpack.c.l.b16 %v2673
    %v2802 = vunpack.c.l.b16 %v2674
    %v2803 = vunpack.c.l.b16 %v2675
    %v2804 = vunpack.c.l.b16 %v2676
    %v2805 = vunpack.c.l.b16 %v2677
    %v2806 = vunpack.c.l.b16 %v2678
    %v2807 = vunpack.c.l.b16 %v2679
    %v2808 = vunpack.c.l.b16 %v2680
    %v2809 = vunpack.c.l.b16 %v2681
    %v2810 = vunpack.c.l.b16 %v2682
    %v2811 = vunpack.c.l.b16 %v2683
    %v2812 = vunpack.c.l.b16 %v2684
    %v2813 = vpack.c.b16 %v2750, %v2749
    %v2814 = vpack.c.b16 %v2752, %v2751
    %v2815 = vpack.c.b16 %v2754, %v2753
    %v2816 = vpack.c.b16 %v2756, %v2755
    %v2817 = vpack.c.b16 %v2758, %v2757
    %v2818 = vpack.c.b16 %v2760, %v2759
    %v2819 = vpack.c.b16 %v2762, %v2761
    %v2820 = vpack.c.b16 %v2764, %v2763
    %v2821 = vpack.c.b16 %v2766, %v2765
    %v2822 = vpack.c.b16 %v2768, %v2767
    %v2823 = vpack.c.b16 %v2770, %v2769
    %v2824 = vpack.c.b16 %v2772, %v2771
    %v2825 = vpack.c.b16 %v2774, %v2773
    %v2826 = vpack.c.b16 %v2776, %v2775
    %v2827 = vpack.c.b16 %v2778, %v2777
    %v2828 = vpack.c.b16 %v2780, %v2779
    %v2829 = vpack.c.b16 %v2782, %v2781
    %v2830 = vpack.c.b16 %v2784, %v2783
    %v2831 = vpack.c.b16 %v2786, %v2785
    %v2832 = vpack.c.b16 %v2788, %v2787
    %v2833 = vpack.c.b16 %v2790, %v2789
    %v2834 = vpack.c.b16 %v2792, %v2791
    %v2835 = vpack.c.b16 %v2794, %v2793
    %v2836 = vpack.c.b16 %v2796, %v2795
    %v2837 = vpack.c.b16 %v2798, %v2797
    %v2838 = vpack.c.b16 %v2800, %v2799
    %v2839 = vpack.c.b16 %v2802, %v2801
    %v2840 = vpack.c.b16 %v2804, %v2803
    %v2841 = vpack.c.b16 %v2806, %v2805
    %v2842 = vpack.c.b16 %v2808, %v2807
    %v2843 = vpack.c.b16 %v2810, %v2809
    %v2844 = vpack.c.b16 %v2812, %v2811
    %2877 = vmatprep.subr.bf16.mxu0 0
    %2878 = vmatpush1.bf16.msra.mxu0 %v2813
    %2879 = vmatprep.subr.bf16.mxu0 0
    %2880 = vmatpush1.bf16.msra.mxu0 %v2814
    %2881 = vmatprep.subr.bf16.mxu0 0
    %2882 = vmatpush1.bf16.msra.mxu0 %v2815
    %2883 = vmatprep.subr.bf16.mxu0 0
    %2884 = vmatpush1.bf16.msra.mxu0 %v2816
    %2885 = vmatprep.subr.bf16.mxu0 0
    %2886 = vmatpush1.bf16.msra.mxu0 %v2817
    %2887 = vmatprep.subr.bf16.mxu0 0
    %2888 = vmatpush1.bf16.msra.mxu0 %v2818
    %2889 = vmatprep.subr.bf16.mxu0 0
    %2890 = vmatpush1.bf16.msra.mxu0 %v2819
    %2891 = vmatprep.subr.bf16.mxu0 0
    %2892 = vmatpush1.bf16.msra.mxu0 %v2820
    %2893 = vmatprep.subr.bf16.mxu0 0
    %2894 = vmatpush1.bf16.msra.mxu0 %v2821
    %2895 = vmatprep.subr.bf16.mxu0 0
    %2896 = vmatpush1.bf16.msra.mxu0 %v2822
    %2897 = vmatprep.subr.bf16.mxu0 0
    %2898 = vmatpush1.bf16.msra.mxu0 %v2823
    %2899 = vmatprep.subr.bf16.mxu0 0
    %2900 = vmatpush1.bf16.msra.mxu0 %v2824
    %2901 = vmatprep.subr.bf16.mxu0 0
    %2902 = vmatpush1.bf16.msra.mxu0 %v2825
    %2903 = vmatprep.subr.bf16.mxu0 0
    %2904 = vmatpush1.bf16.msra.mxu0 %v2826
    %2905 = vmatprep.subr.bf16.mxu0 0
    %2906 = vmatpush1.bf16.msra.mxu0 %v2827
    %2907 = vmatprep.subr.bf16.mxu0 0
    %2908 = vmatpush1.bf16.msra.mxu0 %v2828
    %2909 = vmatprep.mubr.bf16.mxu0 %v480
    %2910 = vmatmul.mubr.bf16.gmra.mrb[0].mxu0 %v479
    %v2911 = vpop.f32.mrb[0].mxu0
    %v2912 = vadd.f32 0.0, %v2911
    %v2913 = vpop.f32.mrb[0].mxu0
    %v2914 = vpop.f32.mrb[0].mxu0
    %v2915 = vadd.f32 0.0, %v2914
    %v2916 = vpop.f32.mrb[0].mxu0
    %2917 = vdwg.mxu0
    %2918 = vmatprep.subr.bf16.mxu0 0
    %2919 = vmatpush1.bf16.msra.mxu0 %v2829
    %2920 = vmatprep.subr.bf16.mxu0 0
    %2921 = vmatpush1.bf16.msra.mxu0 %v2830
    %2922 = vmatprep.subr.bf16.mxu0 0
    %2923 = vmatpush1.bf16.msra.mxu0 %v2831
    %2924 = vmatprep.subr.bf16.mxu0 0
    %2925 = vmatpush1.bf16.msra.mxu0 %v2832
    %2926 = vmatprep.subr.bf16.mxu0 0
    %2927 = vmatpush1.bf16.msra.mxu0 %v2833
    %2928 = vmatprep.subr.bf16.mxu0 0
    %2929 = vmatpush1.bf16.msra.mxu0 %v2834
    %2930 = vmatprep.subr.bf16.mxu0 0
    %2931 = vmatpush1.bf16.msra.mxu0 %v2835
    %2932 = vmatprep.subr.bf16.mxu0 0
    %2933 = vmatpush1.bf16.msra.mxu0 %v2836
    %2934 = vmatprep.subr.bf16.mxu0 0
    %2935 = vmatpush1.bf16.msra.mxu0 %v2837
    %2936 = vmatprep.subr.bf16.mxu0 0
    %2937 = vmatpush1.bf16.msra.mxu0 %v2838
    %2938 = vmatprep.subr.bf16.mxu0 0
    %2939 = vmatpush1.bf16.msra.mxu0 %v2839
    %2940 = vmatprep.subr.bf16.mxu0 0
    %2941 = vmatpush1.bf16.msra.mxu0 %v2840
    %2942 = vmatprep.subr.bf16.mxu0 0
    %2943 = vmatpush1.bf16.msra.mxu0 %v2841
    %2944 = vmatprep.subr.bf16.mxu0 0
    %2945 = vmatpush1.bf16.msra.mxu0 %v2842
    %2946 = vmatprep.subr.bf16.mxu0 0
    %2947 = vmatpush1.bf16.msra.mxu0 %v2843
    %2948 = vmatprep.subr.bf16.mxu0 0
    %2949 = vmatpush1.bf16.msra.mxu0 %v2844
    %2950 = vmatprep.mubr.bf16.mxu0 %v482
    %2951 = vmatmul.mubr.bf16.gmra.mrb[0].mxu0 %v481
    %v2952 = vpop.f32.mrb[0].mxu0
    %v2953 = vadd.f32 %v2912, %v2952
    %v2954 = vpop.f32.mrb[0].mxu0
    %v2955 = vpop.f32.mrb[0].mxu0
    %v2956 = vadd.f32 %v2915, %v2955
    %v2957 = vpop.f32.mrb[0].mxu0
    %2958 = vdwg.mxu0
    %v3023 = vunpack.c.l.b16 %v2557
    %v3024 = vunpack.c.l.b16 %v2558
    %v3025 = vunpack.c.l.b16 %v2559
    %v3026 = vunpack.c.l.b16 %v2560
    %v3027 = vunpack.c.l.b16 %v2561
    %v3028 = vunpack.c.l.b16 %v2562
    %v3029 = vunpack.c.l.b16 %v2563
    %v3030 = vunpack.c.l.b16 %v2564
    %v3031 = vunpack.c.l.b16 %v2565
    %v3032 = vunpack.c.l.b16 %v2566
    %v3033 = vunpack.c.l.b16 %v2567
    %v3034 = vunpack.c.l.b16 %v2568
    %v3035 = vunpack.c.l.b16 %v2569
    %v3036 = vunpack.c.l.b16 %v2570
    %v3037 = vunpack.c.l.b16 %v2571
    %v3038 = vunpack.c.l.b16 %v2572
    %v3039 = vunpack.c.l.b16 %v2573
    %v3040 = vunpack.c.l.b16 %v2574
    %v3041 = vunpack.c.l.b16 %v2575
    %v3042 = vunpack.c.l.b16 %v2576
    %v3043 = vunpack.c.l.b16 %v2577
    %v3044 = vunpack.c.l.b16 %v2578
    %v3045 = vunpack.c.l.b16 %v2579
    %v3046 = vunpack.c.l.b16 %v2580
    %v3047 = vunpack.c.l.b16 %v2581
    %v3048 = vunpack.c.l.b16 %v2582
    %v3049 = vunpack.c.l.b16 %v2583
    %v3050 = vunpack.c.l.b16 %v2584
    %v3051 = vunpack.c.l.b16 %v2585
    %v3052 = vunpack.c.l.b16 %v2586
    %v3053 = vunpack.c.l.b16 %v2587
    %v3054 = vunpack.c.l.b16 %v2588
    %v3055 = vunpack.c.l.b16 %v2589
    %v3056 = vunpack.c.l.b16 %v2590
    %v3057 = vunpack.c.l.b16 %v2591
    %v3058 = vunpack.c.l.b16 %v2592
    %v3059 = vunpack.c.l.b16 %v2593
    %v3060 = vunpack.c.l.b16 %v2594
    %v3061 = vunpack.c.l.b16 %v2595
    %v3062 = vunpack.c.l.b16 %v2596
    %v3063 = vunpack.c.l.b16 %v2597
    %v3064 = vunpack.c.l.b16 %v2598
    %v3065 = vunpack.c.l.b16 %v2599
    %v3066 = vunpack.c.l.b16 %v2600
    %v3067 = vunpack.c.l.b16 %v2601
    %v3068 = vunpack.c.l.b16 %v2602
    %v3069 = vunpack.c.l.b16 %v2603
    %v3070 = vunpack.c.l.b16 %v2604
    %v3071 = vunpack.c.l.b16 %v2605
    %v3072 = vunpack.c.l.b16 %v2606
    %v3073 = vunpack.c.l.b16 %v2607
    %v3074 = vunpack.c.l.b16 %v2608
    %v3075 = vunpack.c.l.b16 %v2609
    %v3076 = vunpack.c.l.b16 %v2610
    %v3077 = vunpack.c.l.b16 %v2611
    %v3078 = vunpack.c.l.b16 %v2612
    %v3079 = vunpack.c.l.b16 %v2613
    %v3080 = vunpack.c.l.b16 %v2614
    %v3081 = vunpack.c.l.b16 %v2615
    %v3082 = vunpack.c.l.b16 %v2616
    %v3083 = vunpack.c.l.b16 %v2617
    %v3084 = vunpack.c.l.b16 %v2618
    %v3085 = vunpack.c.l.b16 %v2619
    %v3086 = vunpack.c.l.b16 %v2620
    %v3087 = vpack.c.b16 %v3024, %v3023
    %v3088 = vpack.c.b16 %v3026, %v3025
    %v3089 = vpack.c.b16 %v3028, %v3027
    %v3090 = vpack.c.b16 %v3030, %v3029
    %v3091 = vpack.c.b16 %v3032, %v3031
    %v3092 = vpack.c.b16 %v3034, %v3033
    %v3093 = vpack.c.b16 %v3036, %v3035
    %v3094 = vpack.c.b16 %v3038, %v3037
    %v3095 = vpack.c.b16 %v3040, %v3039
    %v3096 = vpack.c.b16 %v3042, %v3041
    %v3097 = vpack.c.b16 %v3044, %v3043
    %v3098 = vpack.c.b16 %v3046, %v3045
    %v3099 = vpack.c.b16 %v3048, %v3047
    %v3100 = vpack.c.b16 %v3050, %v3049
    %v3101 = vpack.c.b16 %v3052, %v3051
    %v3102 = vpack.c.b16 %v3054, %v3053
    %v3103 = vpack.c.b16 %v3056, %v3055
    %v3104 = vpack.c.b16 %v3058, %v3057
    %v3105 = vpack.c.b16 %v3060, %v3059
    %v3106 = vpack.c.b16 %v3062, %v3061
    %v3107 = vpack.c.b16 %v3064, %v3063
    %v3108 = vpack.c.b16 %v3066, %v3065
    %v3109 = vpack.c.b16 %v3068, %v3067
    %v3110 = vpack.c.b16 %v3070, %v3069
    %v3111 = vpack.c.b16 %v3072, %v3071
    %v3112 = vpack.c.b16 %v3074, %v3073
    %v3113 = vpack.c.b16 %v3076, %v3075
    %v3114 = vpack.c.b16 %v3078, %v3077
    %v3115 = vpack.c.b16 %v3080, %v3079
    %v3116 = vpack.c.b16 %v3082, %v3081
    %v3117 = vpack.c.b16 %v3084, %v3083
    %v3118 = vpack.c.b16 %v3086, %v3085
    %3151 = vmatprep.subr.bf16.mxu0 0
    %3152 = vmatpush1.bf16.msra.mxu0 %v3087
    %3153 = vmatprep.subr.bf16.mxu0 0
    %3154 = vmatpush1.bf16.msra.mxu0 %v3088
    %3155 = vmatprep.subr.bf16.mxu0 0
    %3156 = vmatpush1.bf16.msra.mxu0 %v3089
    %3157 = vmatprep.subr.bf16.mxu0 0
    %3158 = vmatpush1.bf16.msra.mxu0 %v3090
    %3159 = vmatprep.subr.bf16.mxu0 0
    %3160 = vmatpush1.bf16.msra.mxu0 %v3091
    %3161 = vmatprep.subr.bf16.mxu0 0
    %3162 = vmatpush1.bf16.msra.mxu0 %v3092
    %3163 = vmatprep.subr.bf16.mxu0 0
    %3164 = vmatpush1.bf16.msra.mxu0 %v3093
    %3165 = vmatprep.subr.bf16.mxu0 0
    %3166 = vmatpush1.bf16.msra.mxu0 %v3094
    %3167 = vmatprep.subr.bf16.mxu0 0
    %3168 = vmatpush1.bf16.msra.mxu0 %v3095
    %3169 = vmatprep.subr.bf16.mxu0 0
    %3170 = vmatpush1.bf16.msra.mxu0 %v3096
    %3171 = vmatprep.subr.bf16.mxu0 0
    %3172 = vmatpush1.bf16.msra.mxu0 %v3097
    %3173 = vmatprep.subr.bf16.mxu0 0
    %3174 = vmatpush1.bf16.msra.mxu0 %v3098
    %3175 = vmatprep.subr.bf16.mxu0 0
    %3176 = vmatpush1.bf16.msra.mxu0 %v3099
    %3177 = vmatprep.subr.bf16.mxu0 0
    %3178 = vmatpush1.bf16.msra.mxu0 %v3100
    %3179 = vmatprep.subr.bf16.mxu0 0
    %3180 = vmatpush1.bf16.msra.mxu0 %v3101
    %3181 = vmatprep.subr.bf16.mxu0 0
    %3182 = vmatpush1.bf16.msra.mxu0 %v3102
    %3183 = vmatprep.mubr.bf16.mxu0 %v2554
    %3184 = vmatmul.mubr.bf16.gmra.mrb[0].mxu0 %v2553
    %v3185 = vpop.f32.mrb[0].mxu0
    %v3186 = vadd.f32 %v2953, %v3185
    %v3187 = vpop.f32.mrb[0].mxu0
    %v3188 = vpop.f32.mrb[0].mxu0
    %v3189 = vadd.f32 %v2956, %v3188
    %v3190 = vpop.f32.mrb[0].mxu0
    %3191 = vdwg.mxu0
    %3192 = vmatprep.subr.bf16.mxu0 0
    %3193 = vmatpush1.bf16.msra.mxu0 %v3103
    %3194 = vmatprep.subr.bf16.mxu0 0
    %3195 = vmatpush1.bf16.msra.mxu0 %v3104
    %3196 = vmatprep.subr.bf16.mxu0 0
    %3197 = vmatpush1.bf16.msra.mxu0 %v3105
    %3198 = vmatprep.subr.bf16.mxu0 0
    %3199 = vmatpush1.bf16.msra.mxu0 %v3106
    %3200 = vmatprep.subr.bf16.mxu0 0
    %3201 = vmatpush1.bf16.msra.mxu0 %v3107
    %3202 = vmatprep.subr.bf16.mxu0 0
    %3203 = vmatpush1.bf16.msra.mxu0 %v3108
    %3204 = vmatprep.subr.bf16.mxu0 0
    %3205 = vmatpush1.bf16.msra.mxu0 %v3109
    %3206 = vmatprep.subr.bf16.mxu0 0
    %3207 = vmatpush1.bf16.msra.mxu0 %v3110
    %3208 = vmatprep.subr.bf16.mxu0 0
    %3209 = vmatpush1.bf16.msra.mxu0 %v3111
    %3210 = vmatprep.subr.bf16.mxu0 0
    %3211 = vmatpush1.bf16.msra.mxu0 %v3112
    %3212 = vmatprep.subr.bf16.mxu0 0
    %3213 = vmatpush1.bf16.msra.mxu0 %v3113
    %3214 = vmatprep.subr.bf16.mxu0 0
    %3215 = vmatpush1.bf16.msra.mxu0 %v3114
    %3216 = vmatprep.subr.bf16.mxu0 0
    %3217 = vmatpush1.bf16.msra.mxu0 %v3115
    %3218 = vmatprep.subr.bf16.mxu0 0
    %3219 = vmatpush1.bf16.msra.mxu0 %v3116
    %3220 = vmatprep.subr.bf16.mxu0 0
    %3221 = vmatpush1.bf16.msra.mxu0 %v3117
    %3222 = vmatprep.subr.bf16.mxu0 0
    %3223 = vmatpush1.bf16.msra.mxu0 %v3118
    %3224 = vmatprep.mubr.bf16.mxu0 %v2556
    %3225 = vmatmul.mubr.bf16.gmra.mrb[0].mxu0 %v2555
    %v3226 = vpop.f32.mrb[0].mxu0
    %v3227 = vadd.f32 %v3186, %v3226
    %v3228 = vpop.f32.mrb[0].mxu0
    %v3229 = vpop.f32.mrb[0].mxu0
    %v3230 = vadd.f32 %v3189, %v3229
    %v3231 = vpop.f32.mrb[0].mxu0
    %3232 = vdwg.mxu0
    %v3233 = vld [vmem:[%s12] sm:$0x1]
    %v3235 = vlaneseq
    %v3236 = vshrl.u32 %v3235, 7
    %v3237 = vsub.s32 0, %v3236
    %v3238 = vrot.slane %v3233, %v3237
    %v3240 = vadd.f32 %v3227, %v3238
    %v3241 = vadd.f32 %v3230, %v3238
    %v3242 = vmax.f32 %v3240, 0.0
    %v3243 = vmax.f32 %v3241, 0.0
    %v3244 = vpack.c.bf16 %v3243, %v3242
    %v3245 = vld [vmem:[%s13] sm:$0xf]
    %v3246 = vld [vmem:[%s13 + $0x4] sm:$0xf]
    %v3247 = vld [vmem:[%s13 + $0x8] sm:$0xf]
    %v3248 = vld [vmem:[%s13 + $0xc] sm:$0xf]
    %v3249 = vld [vmem:[%s13 + $0x10] sm:$0xf]
    %v3250 = vld [vmem:[%s13 + $0x14] sm:$0xf]
    %v3251 = vld [vmem:[%s13 + $0x18] sm:$0xf]
    %v3252 = vld [vmem:[%s13 + $0x1c] sm:$0xf]
    %v3253 = vld [vmem:[%s14] sm:$0x1]
    %v3255 = vlaneseq
    %v3256 = vshrl.u32 %v3255, 7
    %v3257 = vsub.s32 0, %v3256
    %v3258 = vrot.slane %v3253, %v3257
    %v3268 = vunpack.c.l.b16 %v3245
    %v3269 = vunpack.c.l.b16 %v3246
    %v3270 = vunpack.c.l.b16 %v3247
    %v3271 = vunpack.c.l.b16 %v3248
    %v3272 = vunpack.c.l.b16 %v3249
    %v3273 = vunpack.c.l.b16 %v3250
    %v3274 = vunpack.c.l.b16 %v3251
    %v3275 = vunpack.c.l.b16 %v3252
    %v3276 = vpack.c.b16 %v3269, %v3268
    %v3277 = vpack.c.b16 %v3271, %v3270
    %v3278 = vpack.c.b16 %v3273, %v3272
    %v3279 = vpack.c.b16 %v3275, %v3274
    %v3285 = vsel %vm216, %v3244, 0
    %3287 = vmatprep.subr.bf16.mxu0 0
    %3288 = vmatpush1.bf16.msra.mxu0 %v3276
    %3289 = vmatprep.subr.bf16.mxu0 0
    %3290 = vmatpush1.bf16.msra.mxu0 %v3277
    %3291 = vmatprep.subr.bf16.mxu0 0
    %3292 = vmatpush1.bf16.msra.mxu0 %v3278
    %3293 = vmatprep.subr.bf16.mxu0 0
    %3294 = vmatpush1.bf16.msra.mxu0 %v3279
    %3295 = vmatprep.subr.bf16.mxu0 0
    %3296 = vmatpush1.bf16.msra.mxu0 0
    %3297 = vmatprep.subr.bf16.mxu0 0
    %3298 = vmatpush1.bf16.msra.mxu0 0
    %3299 = vmatprep.subr.bf16.mxu0 0
    %3300 = vmatpush1.bf16.msra.mxu0 0
    %3301 = vmatprep.subr.bf16.mxu0 0
    %3302 = vmatpush1.bf16.msra.mxu0 0
    %3303 = vmatprep.subr.bf16.mxu0 0
    %3304 = vmatpush1.bf16.msra.mxu0 0
    %3305 = vmatprep.subr.bf16.mxu0 0
    %3306 = vmatpush1.bf16.msra.mxu0 0
    %3307 = vmatprep.subr.bf16.mxu0 0
    %3308 = vmatpush1.bf16.msra.mxu0 0
    %3309 = vmatprep.subr.bf16.mxu0 0
    %3310 = vmatpush1.bf16.msra.mxu0 0
    %3311 = vmatprep.subr.bf16.mxu0 0
    %3312 = vmatpush1.bf16.msra.mxu0 0
    %3313 = vmatprep.subr.bf16.mxu0 0
    %3314 = vmatpush1.bf16.msra.mxu0 0
    %3315 = vmatprep.subr.bf16.mxu0 0
    %3316 = vmatpush1.bf16.msra.mxu0 0
    %3317 = vmatprep.subr.bf16.mxu0 0
    %3318 = vmatpush1.bf16.msra.mxu0 0
    %3319 = vmatprep.mubr.bf16.mxu0 0
    %3320 = vmatmul.mubr.bf16.gmra.mrb[0].mxu0 %v3285
    %v3321 = vpop.f32.mrb[0].mxu0
    %v3322 = vadd.f32 %v3258, %v3321
    %v3323 = vpop.f32.mrb[0].mxu0
    %v3324 = vpop.f32.mrb[0].mxu0
    %v3325 = vadd.f32 %v3258, %v3324
    %v3326 = vpop.f32.mrb[0].mxu0
    %3327 = vdwg.mxu0
    %3328 = vst.msk [vmem:[#allocation2] sm:$0xff] %vm125, %v3322
    %3329 = vst.msk [vmem:[#allocation2 + $0x8] sm:$0xff] %vm125, %v3325
    // Predicated region
    $region62: #{cnn_q_forward.7} parent=1 // pred_check
      _
    $region63: #{cnn_q_forward.7} parent=1 // pred_check_branch
      %3331 = sbr.rel (0) target = $region65
    $region64: #{cnn_q_forward.7} parent=1 // pred_region
      %s3333 = ssub.s32 256, 32
      %3334 = vsyncadd [#allocation3], %s3333
      %s3335 = sshll.u32 [#allocation2], 4
      %s3336 = int_to_ptr.vmem [resolvable:$true] %s3335
      %3341 = dma.vmem_to_hbm [thread:$0]  %s3336, 32, %s15, [#allocation3], 32, 32, 2
    $region65: #{cnn_q_forward.7} parent=1 // pred_fallthru
      _
    // Predicated region
    $region66: #{cnn_q_forward.7} parent=1 // pred_check
      _
    $region67: #{cnn_q_forward.7} parent=1 // pred_check_branch
      %3343 = sbr.rel (0) target = $region69
    $region68: #{cnn_q_forward.7} parent=1 // pred_region
      %3344 = dma.done [#allocation3], 256
    $region69: #{cnn_q_forward.7} parent=1 // pred_fallthru
      _
    %3345 = vsyncpa [#allocation3], 1

</llo_original>
